<compile_context>
chip_gen: v6e
topology: v6e:2x2x1
jax: 0.10.0
libtpu: 0.0.40
codegen_flags: <defaults>
</compile_context>

<pallas_src>
import functools
import numpy as np

import jax
import jax.numpy as jnp
from jax.experimental import pallas as pl
from jax.experimental.pallas import tpu as pltpu

# ----------------------------------------------------------------------------
# Model constants (reduced NUM_VERTICES for a small, runnable demo; the
# original module uses 24533 vertices — the kernel pads V to a multiple of TV
# so any vertex count works identically).
# ----------------------------------------------------------------------------
NUM_JOINTS = 1
EXPRESSION_SPACE_DIM = 32
NUM_VERTICES = 6000                     # original: 24533
COEFF_DIM = EXPRESSION_SPACE_DIM + 3    # coeffs[:7]+coeffs[10:] -> 32 expr, coeffs[7:10] -> jaw
TV = 4096                               # vertex tile (lane axis), multiple of 128
KDIM = 48                               # fused basis rows: 32 expr + 9 pose + 1 template + 6 pad
A1_OFF = KDIM                           # offset of A1' (folded jaw transform) in `small`
DA_OFF = KDIM + 12                      # offset of dA' = A0' - A1'
SMALL_DIM = KDIM + 24                   # (B, 72) packed per-batch operand

# Subset of the module's INIT_POINTS that fall below the reduced NUM_VERTICES.
INIT_POINTS = (
    {3026} | set(range(3028, 3038)) | {3047} | set(range(3049, 3073))
    | set(range(3074, 3127)) | {3165, 3167, 3169} | set(range(3171, 3226))
)


# ----------------------------------------------------------------------------
# Plain-JAX glue (batch-sized work: Rodrigues, 2-joint kinematic chain)
# ----------------------------------------------------------------------------
def batch_rodrigues(rot_vecs):
    """rot_vecs: (B, 3) axis-angle -> (B, 3, 3) rotation matrices (smplx semantics)."""
    angle = jnp.linalg.norm(rot_vecs + 1e-8, axis=1, keepdims=True)      # (B, 1)
    rot_dir = rot_vecs / angle
    cos = jnp.cos(angle)[:, None, :]
    sin = jnp.sin(angle)[:, None, :]
    rx, ry, rz = rot_dir[:, 0], rot_dir[:, 1], rot_dir[:, 2]
    zeros = jnp.zeros_like(rx)
    K = jnp.stack([zeros, -rz, ry, rz, zeros, -rx, -ry, rx, zeros],
                  axis=1).reshape(-1, 3, 3)
    ident = jnp.eye(3, dtype=rot_vecs.dtype)[None]
    return ident + sin * K + (1.0 - cos) * jnp.matmul(K, K)


def batch_rigid_transform(rot_mats, joints):
    """rot_mats: (B, 2, 3, 3), joints: (B, 2, 3), parents = [-1, 0].
    Returns the relative (skinning) transforms A: (B, 2, 4, 4)."""
    B = rot_mats.shape[0]
    rel = joints.at[:, 1:].add(-joints[:, [0]])

    def tmat(R, t):
        top = jnp.concatenate([R, t[..., None]], axis=-1)                # (B, 3, 4)
        bot = jnp.broadcast_to(jnp.array([[0.0, 0.0, 0.0, 1.0]], R.dtype),
                               (B, 1, 4))
        return jnp.concatenate([top, bot], axis=1)                       # (B, 4, 4)

    T0 = tmat(rot_mats[:, 0], rel[:, 0])
    T1 = jnp.matmul(T0, tmat(rot_mats[:, 1], rel[:, 1]))
    transforms = jnp.stack([T0, T1], axis=1)                             # (B, 2, 4, 4)
    Jh = jnp.concatenate([joints, jnp.zeros((B, 2, 1), joints.dtype)], axis=-1)
    corr = jnp.einsum('bjrc,bjc->bjr', transforms, Jh)                   # (B, 2, 4)
    return transforms.at[:, :, :, 3].add(-corr)


def _pose_glue(d, coeffs, index):
    """Shared tiny glue: expression coeffs, pose feature, skinning A, transl, scale."""
    B = coeffs.shape[0]
    jpb = d['jaw_pose_basis']
    jp9 = batch_rodrigues(jpb[0][None] * coeffs[:, 9:10])
    jp8 = batch_rodrigues(jpb[1][None] * coeffs[:, 8:9])
    jp7 = batch_rodrigues(jpb[2][None] * coeffs[:, 7:8])
    jaw = jnp.matmul(jnp.matmul(jp9, jp8), jp7)                          # (B, 3, 3)

    glob = d['global_matrix'][index]                                     # (B, 3, 3)
    rot_mats = jnp.stack([glob, jaw], axis=1)                            # (B, 2, 3, 3)
    pose_feature = (jaw - jnp.eye(3, dtype=coeffs.dtype)).reshape(B, 9)  # (B, 9)
    exp_coeffs = jnp.concatenate([coeffs[:, :7], coeffs[:, 10:]], axis=1)  # (B, 32)

    J = jnp.concatenate([d['J_root'], d['J_coordinate']], axis=0)
    J = jnp.broadcast_to(J[None], (B, 2, 3))
    A = batch_rigid_transform(rot_mats, J)                               # (B, 2, 4, 4)
    return exp_coeffs, pose_feature, A, d['transl'][index], d['scale'][index]


def _prepare_small(packed, coeffs, index):
    """Pack all per-batch operands into one (B, SMALL_DIM) f32 array:
       [:KDIM]   = [exp_coeffs(32), pose_feature(9), 1, zeros(6)]  (fused-basis coeffs)
       [KDIM:+12]= A1' = scale*(A_jaw  with transl folded into last column), 3x4 flat
       [+12:+24] = dA' = A0' - A1'   (so T' = A1' + w0*dA', since w0+w1=1)."""
    B = coeffs.shape[0]
    exp_coeffs, pose_feature, A, transl, scale = _pose_glue(packed, coeffs, index)

    A3 = A[:, :, :3, :]                                                  # (B, 2, 3, 4)
    A3 = A3.at[:, :, :, 3].add(transl[:, None, :])                       # fold transl
    A3 = A3 * scale[:, None, None]                                       # fold scale
    a1 = A3[:, 1].reshape(B, 12)
    dA = (A3[:, 0] - A3[:, 1]).reshape(B, 12)

    pad = jnp.zeros((B, KDIM - (EXPRESSION_SPACE_DIM + 9 + 1)), coeffs.dtype)
    coeffs_ext = jnp.concatenate(
        [exp_coeffs, pose_feature, jnp.ones((B, 1), coeffs.dtype), pad], axis=1)
    return jnp.concatenate([coeffs_ext, a1, dA], axis=1)                 # (B, SMALL_DIM)


# ----------------------------------------------------------------------------
# One-time pre-packing (model load time): fused bf16 basis + w0, hoisted out of
# the per-call path.
# ----------------------------------------------------------------------------
def prepack_model(params):
    V = params['v_template'].shape[0]
    L = EXPRESSION_SPACE_DIM
    Vp = ((V + TV - 1) // TV) * TV

    eb = jnp.transpose(params['expression_basis'], (1, 2, 0))            # (3, L, V)
    pb = jnp.transpose(params['pose_basis'].reshape(9, V, 3), (2, 0, 1)) # (3, 9, V)
    tm = params['v_template'].T[:, None, :]                              # (3, 1, V)
    zr = jnp.zeros((3, KDIM - (L + 9 + 1), V), jnp.float32)
    fused = jnp.concatenate([eb, pb, tm, zr], axis=1)                    # (3, KDIM, V)
    fused = jnp.pad(fused, ((0, 0), (0, 0), (0, Vp - V)))                # pad vertex axis
    fused = fused.astype(jnp.bfloat16)                                   # halve HBM traffic

    w0 = jax.nn.softmax(params['_lbs_weights'], axis=-1)[:, 0]           # (V,) joint-0 weight
    w0 = jnp.pad(w0, (0, Vp - V))[None, :]                               # (1, Vp) f32

    return {
        'fused_basis': fused,
        'w0': w0,
        'jaw_pose_basis': params['jaw_pose_basis'],
        'global_matrix': params['global_matrix'],
        'J_root': params['J_root'],
        'J_coordinate': params['J_coordinate'],
        'transl': params['transl'],
        'scale': params['scale'],
    }


# ----------------------------------------------------------------------------
# Pallas kernel: fused blend-shape matmul + LBS skinning (transl/scale folded)
# ----------------------------------------------------------------------------
def _lbs_kernel(small_ref,    # (B, SMALL_DIM) f32: coeffs_ext | A1' | dA'
                basis_ref,    # (3, KDIM, TV)  bf16 fused basis (expr+pose+template)
                w0_ref,       # (1, TV)        f32 joint-0 skinning weight
                out_ref):     # (3, B, TV)     f32
    coeffs = small_ref[:, 0:KDIM].astype(jnp.bfloat16)                   # (B, KDIM)
    w0 = w0_ref[...]                                                     # (1, TV)

    # v_posed per coordinate: single MXU matmul over the fused basis.
    vp = [jnp.dot(coeffs, basis_ref[k], preferred_element_type=jnp.float32)
          for k in range(3)]                                             # 3 x (B, TV)

    def col(base, r, c):  # per-batch scalar column -> (B, 1)
        idx = base + 4 * r + c
        return small_ref[:, idx:idx + 1]

    # T'[r,c] = A1'[r,c] + w0*dA'[r,c];  out_r = sum_c T'[r,c]*vp_c + T'[r,3]
    for r in range(3):
        acc = col(A1_OFF, r, 3) + w0 * col(DA_OFF, r, 3)                 # (B, TV)
        for c in range(3):
            t_rc = col(A1_OFF, r, c) + w0 * col(DA_OFF, r, c)
            acc = acc + t_rc * vp[c]
        out_ref[r] = acc


def _pallas_lbs(small, fused_basis, w0):
    B = small.shape[0]
    Vp = fused_basis.shape[2]
    assert Vp % TV == 0
    grid = (Vp // TV,)

    return pl.pallas_call(
        _lbs_kernel,
        out_shape=jax.ShapeDtypeStruct((3, B, Vp), jnp.float32),
        grid=grid,
        in_specs=[
            pl.BlockSpec((B, SMALL_DIM), lambda j: (0, 0)),
            pl.BlockSpec((3, KDIM, TV), lambda j: (0, 0, j)),
            pl.BlockSpec((1, TV), lambda j: (0, j)),
        ],
        out_specs=pl.BlockSpec((3, B, TV), lambda j: (0, 0, j)),
        compiler_params=pltpu.CompilerParams(
            dimension_semantics=("parallel",)),
    )(small, fused_basis, w0)


@functools.partial(jax.jit, static_argnames=('num_vertices',))
def metahuman_forward(packed, coeffs, index, *, num_vertices):
    """Pallas-accelerated MetahumanModel.forward. Returns (B, num_vertices, 3)."""
    small = _prepare_small(packed, coeffs, index)
    out = _pallas_lbs(small, packed['fused_basis'], packed['w0'])        # (3, B, Vp)
    verts = jnp.transpose(out, (1, 2, 0))                                # (B, Vp, 3)
    return verts[:, :num_vertices, :]


# ----------------------------------------------------------------------------
# Pure-JAX f32 reference (mirrors the torch lbs() with pose2rot=False)
# ----------------------------------------------------------------------------
def reference_forward(params, coeffs, index):
    exp_coeffs, pose_feature, A, transl, scale = _pose_glue(params, coeffs, index)
    B = coeffs.shape[0]
    V = params['v_template'].shape[0]
    lbs_w = jax.nn.softmax(params['_lbs_weights'], axis=-1)              # (V, 2)
    v_shaped = params['v_template'][None] + jnp.einsum(
        'bl,vkl->bvk', exp_coeffs, params['expression_basis'])
    pose_offsets = jnp.matmul(pose_feature, params['pose_basis']).reshape(B, V, 3)
    v_posed = v_shaped + pose_offsets
    T = jnp.einsum('vj,bjrc->bvrc', lbs_w, A)                            # (B, V, 4, 4)
    vh = jnp.concatenate([v_posed, jnp.ones((B, V, 1), jnp.float32)], axis=-1)
    verts = jnp.einsum('bvrc,bvc->bvr', T, vh)[..., :3]
    return (verts + transl[:, None, :]) * scale[:, None, :]


# ----------------------------------------------------------------------------
def make_params(key):
    """Deterministic synthetic parameters with the __init__ shapes.
    (expression/pose basis are zeros in __init__; small random here so the
    kernel compute is actually exercised.  v_template is synthesized since we
    do not load the trimesh template.)"""
    # TODO(synk): the real module loads v_template from a trimesh file; synthesized here.
    keys = jax.random.split(key, 6)
    V, L = NUM_VERTICES, EXPRESSION_SPACE_DIM
    NUM_IDS = 16  # original: 10000

    v_template = 0.1 * jax.random.normal(keys[0], (V, 3), jnp.float32)

    lbs_np = np.zeros((V, NUM_JOINTS + 1), dtype=np.float32)
    mask = np.zeros(V, dtype=bool)
    mask[np.array(sorted(p for p in INIT_POINTS if p < V), dtype=np.int64)] = True
    lbs_np[~mask, 0] = 1.0
    lbs_np[mask, 1] = 1.0

    return {
        'v_template': v_template,
        'expression_basis': 0.01 * jax.random.normal(keys[1], (V, 3, L), jnp.float32),
        'pose_basis': 0.01 * jax.random.normal(keys[2], (9 * NUM_JOINTS, 3 * V), jnp.float32),
        '_lbs_weights': jnp.asarray(lbs_np),
        'J_root': jnp.zeros((1, 3), jnp.float32),
        'J_coordinate': (jnp.mean(v_template, axis=0)
                         - jnp.array([0.0, 0.03, 0.02], jnp.float32))[None],
        'jaw_pose_basis': jnp.array([[np.pi / 4, 0.0, 0.0],
                                     [0.0, np.pi / 10, 0.0],
                                     [0.0, -np.pi / 10, 0.0]], jnp.float32),
        'transl': 0.01 * jax.random.normal(keys[3], (NUM_IDS, 3), jnp.float32),
        'global_matrix': jnp.broadcast_to(jnp.eye(3, dtype=jnp.float32),
                                          (NUM_IDS, 3, 3)),
        'scale': 1.0 + 0.05 * jax.random.normal(keys[4], (NUM_IDS, 1), jnp.float32),
    }


if __name__ == "__main__":
    key = jax.random.PRNGKey(0)
    pkey, ckey = jax.random.split(key)
    params = make_params(pkey)
    packed = prepack_model(params)          # one-time (model-load) re-layout

    B = 2
    coeffs = 0.5 * jax.random.normal(ckey, (B, COEFF_DIM), jnp.float32)
    index = jnp.array([0, 3], dtype=jnp.int32)

    verts = metahuman_forward(packed, coeffs, index, num_vertices=NUM_VERTICES)
    verts = jax.block_until_ready(verts)
    assert verts.shape == (B, NUM_VERTICES, 3)

    ref = reference_forward(params, coeffs, index)
    # bf16 basis storage (f32 accumulation) -> relaxed tolerance vs the f32 reference.
    np.testing.assert_allclose(np.asarray(verts), np.asarray(ref),
                               rtol=2e-2, atol=5e-3)
    print("KERNEL_OK")
</pallas_src>

<mosaic_0001>
module attributes {stable_mosaic.version = 11 : i64} {
  func.func @_lbs_kernel(%arg0: i32, %arg1: memref<2x72xf32, #tpu.memory_space<vmem>>, %arg2: memref<3x48x4096xbf16, #tpu.memory_space<vmem>>, %arg3: memref<1x4096xf32, #tpu.memory_space<vmem>>, %arg4: memref<3x2x4096xf32, #tpu.memory_space<vmem>>) attributes {dimension_semantics = [#tpu.dimension_semantics<parallel>], iteration_bounds = array<i64: 2>, scalar_prefetch = 0 : i64, scratch_operands = 0 : i64, tpu.core_type = #tpu.core_type<tc>, window_params = [{pipeline_mode = #tpu.pipeline_mode<synchronous>, transform_indices = @transform_0, window_bounds = array<i64: 2, 72>}, {transform_indices = @transform_1, window_bounds = array<i64: 3, 48, 4096>}, {transform_indices = @transform_2, window_bounds = array<i64: 1, 4096>}, {transform_indices = @transform_3, window_bounds = array<i64: 3, 2, 4096>}]} {
    %c0 = arith.constant 0 : index
    %c0_0 = arith.constant 0 : index
    %0 = vector.load %arg1[%c0, %c0_0] : memref<2x72xf32, #tpu.memory_space<vmem>>, vector<2x48xf32>
    %1 = arith.truncf %0 : vector<2x48xf32> to vector<2x48xbf16>
    %c0_1 = arith.constant 0 : index
    %c0_2 = arith.constant 0 : index
    %2 = vector.load %arg3[%c0_1, %c0_2] : memref<1x4096xf32, #tpu.memory_space<vmem>>, vector<1x4096xf32>
    %c0_3 = arith.constant 0 : index
    %c0_4 = arith.constant 0 : index
    %c0_5 = arith.constant 0 : index
    %3 = vector.load %arg2[%c0_3, %c0_4, %c0_5] : memref<3x48x4096xbf16, #tpu.memory_space<vmem>>, vector<1x48x4096xbf16>
    %4 = vector.shape_cast %3 : vector<1x48x4096xbf16> to vector<48x4096xbf16>
    %cst = arith.constant dense<0.000000e+00> : vector<2x4096xf32>
    %5 = tpu.matmul %1, %4, %cst {dimension_numbers = #tpu.dot_dimension_numbers<[1], [0], [0], [1], [0, 0, 1, 1], [], []>} : vector<2x48xbf16>, vector<48x4096xbf16>, vector<2x4096xf32> -> vector<2x4096xf32>
    %c1 = arith.constant 1 : index
    %c0_6 = arith.constant 0 : index
    %c0_7 = arith.constant 0 : index
    %6 = vector.load %arg2[%c1, %c0_6, %c0_7] : memref<3x48x4096xbf16, #tpu.memory_space<vmem>>, vector<1x48x4096xbf16>
    %7 = vector.shape_cast %6 : vector<1x48x4096xbf16> to vector<48x4096xbf16>
    %cst_8 = arith.constant dense<0.000000e+00> : vector<2x4096xf32>
    %8 = tpu.matmul %1, %7, %cst_8 {dimension_numbers = #tpu.dot_dimension_numbers<[1], [0], [0], [1], [0, 0, 1, 1], [], []>} : vector<2x48xbf16>, vector<48x4096xbf16>, vector<2x4096xf32> -> vector<2x4096xf32>
    %c2 = arith.constant 2 : index
    %c0_9 = arith.constant 0 : index
    %c0_10 = arith.constant 0 : index
    %9 = vector.load %arg2[%c2, %c0_9, %c0_10] : memref<3x48x4096xbf16, #tpu.memory_space<vmem>>, vector<1x48x4096xbf16>
    %10 = vector.shape_cast %9 : vector<1x48x4096xbf16> to vector<48x4096xbf16>
    %cst_11 = arith.constant dense<0.000000e+00> : vector<2x4096xf32>
    %11 = tpu.matmul %1, %10, %cst_11 {dimension_numbers = #tpu.dot_dimension_numbers<[1], [0], [0], [1], [0, 0, 1, 1], [], []>} : vector<2x48xbf16>, vector<48x4096xbf16>, vector<2x4096xf32> -> vector<2x4096xf32>
    %c0_12 = arith.constant 0 : index
    %c51 = arith.constant 51 : index
    %12 = vector.load %arg1[%c0_12, %c51] : memref<2x72xf32, #tpu.memory_space<vmem>>, vector<2x1xf32>
    %c0_13 = arith.constant 0 : index
    %c63 = arith.constant 63 : index
    %13 = vector.load %arg1[%c0_13, %c63] : memref<2x72xf32, #tpu.memory_space<vmem>>, vector<2x1xf32>
    %14 = vector.broadcast %2 : vector<1x4096xf32> to vector<2x4096xf32>
    %15 = vector.broadcast %13 : vector<2x1xf32> to vector<2x4096xf32>
    %16 = arith.mulf %14, %15 : vector<2x4096xf32>
    %17 = vector.broadcast %12 : vector<2x1xf32> to vector<2x4096xf32>
    %18 = arith.addf %17, %16 : vector<2x4096xf32>
    %c0_14 = arith.constant 0 : index
    %c48 = arith.constant 48 : index
    %19 = vector.load %arg1[%c0_14, %c48] : memref<2x72xf32, #tpu.memory_space<vmem>>, vector<2x1xf32>
    %c0_15 = arith.constant 0 : index
    %c60 = arith.constant 60 : index
    %20 = vector.load %arg1[%c0_15, %c60] : memref<2x72xf32, #tpu.memory_space<vmem>>, vector<2x1xf32>
    %21 = vector.broadcast %2 : vector<1x4096xf32> to vector<2x4096xf32>
    %22 = vector.broadcast %20 : vector<2x1xf32> to vector<2x4096xf32>
    %23 = arith.mulf %21, %22 : vector<2x4096xf32>
    %24 = vector.broadcast %19 : vector<2x1xf32> to vector<2x4096xf32>
    %25 = arith.addf %24, %23 : vector<2x4096xf32>
    %26 = arith.mulf %25, %5 : vector<2x4096xf32>
    %27 = arith.addf %18, %26 : vector<2x4096xf32>
    %c0_16 = arith.constant 0 : index
    %c49 = arith.constant 49 : index
    %28 = vector.load %arg1[%c0_16, %c49] : memref<2x72xf32, #tpu.memory_space<vmem>>, vector<2x1xf32>
    %c0_17 = arith.constant 0 : index
    %c61 = arith.constant 61 : index
    %29 = vector.load %arg1[%c0_17, %c61] : memref<2x72xf32, #tpu.memory_space<vmem>>, vector<2x1xf32>
    %30 = vector.broadcast %2 : vector<1x4096xf32> to vector<2x4096xf32>
    %31 = vector.broadcast %29 : vector<2x1xf32> to vector<2x4096xf32>
    %32 = arith.mulf %30, %31 : vector<2x4096xf32>
    %33 = vector.broadcast %28 : vector<2x1xf32> to vector<2x4096xf32>
    %34 = arith.addf %33, %32 : vector<2x4096xf32>
    %35 = arith.mulf %34, %8 : vector<2x4096xf32>
    %36 = arith.addf %27, %35 : vector<2x4096xf32>
    %c0_18 = arith.constant 0 : index
    %c50 = arith.constant 50 : index
    %37 = vector.load %arg1[%c0_18, %c50] : memref<2x72xf32, #tpu.memory_space<vmem>>, vector<2x1xf32>
    %c0_19 = arith.constant 0 : index
    %c62 = arith.constant 62 : index
    %38 = vector.load %arg1[%c0_19, %c62] : memref<2x72xf32, #tpu.memory_space<vmem>>, vector<2x1xf32>
    %39 = vector.broadcast %2 : vector<1x4096xf32> to vector<2x4096xf32>
    %40 = vector.broadcast %38 : vector<2x1xf32> to vector<2x4096xf32>
    %41 = arith.mulf %39, %40 : vector<2x4096xf32>
    %42 = vector.broadcast %37 : vector<2x1xf32> to vector<2x4096xf32>
    %43 = arith.addf %42, %41 : vector<2x4096xf32>
    %44 = arith.mulf %43, %11 : vector<2x4096xf32>
    %45 = arith.addf %36, %44 : vector<2x4096xf32>
    %c0_20 = arith.constant 0 : index
    %c0_21 = arith.constant 0 : index
    %c0_22 = arith.constant 0 : index
    %46 = vector.load %arg4[%c0_20, %c0_21, %c0_22] : memref<3x2x4096xf32, #tpu.memory_space<vmem>>, vector<1x2x4096xf32>
    %47 = vector.shape_cast %46 : vector<1x2x4096xf32> to vector<2x4096xf32>
    %48 = vector.shape_cast %45 : vector<2x4096xf32> to vector<1x2x4096xf32>
    tpu.vector_store %arg4[%c0_20, %c0_21, %c0_22], %48 {strides = array<i32>} : memref<3x2x4096xf32, #tpu.memory_space<vmem>>, vector<1x2x4096xf32>,
    %c0_23 = arith.constant 0 : index
    %c55 = arith.constant 55 : index
    %49 = vector.load %arg1[%c0_23, %c55] : memref<2x72xf32, #tpu.memory_space<vmem>>, vector<2x1xf32>
    %c0_24 = arith.constant 0 : index
    %c67 = arith.constant 67 : index
    %50 = vector.load %arg1[%c0_24, %c67] : memref<2x72xf32, #tpu.memory_space<vmem>>, vector<2x1xf32>
    %51 = vector.broadcast %2 : vector<1x4096xf32> to vector<2x4096xf32>
    %52 = vector.broadcast %50 : vector<2x1xf32> to vector<2x4096xf32>
    %53 = arith.mulf %51, %52 : vector<2x4096xf32>
    %54 = vector.broadcast %49 : vector<2x1xf32> to vector<2x4096xf32>
    %55 = arith.addf %54, %53 : vector<2x4096xf32>
    %c0_25 = arith.constant 0 : index
    %c52 = arith.constant 52 : index
    %56 = vector.load %arg1[%c0_25, %c52] : memref<2x72xf32, #tpu.memory_space<vmem>>, vector<2x1xf32>
    %c0_26 = arith.constant 0 : index
    %c64 = arith.constant 64 : index
    %57 = vector.load %arg1[%c0_26, %c64] : memref<2x72xf32, #tpu.memory_space<vmem>>, vector<2x1xf32>
    %58 = vector.broadcast %2 : vector<1x4096xf32> to vector<2x4096xf32>
    %59 = vector.broadcast %57 : vector<2x1xf32> to vector<2x4096xf32>
    %60 = arith.mulf %58, %59 : vector<2x4096xf32>
    %61 = vector.broadcast %56 : vector<2x1xf32> to vector<2x4096xf32>
    %62 = arith.addf %61, %60 : vector<2x4096xf32>
    %63 = arith.mulf %62, %5 : vector<2x4096xf32>
    %64 = arith.addf %55, %63 : vector<2x4096xf32>
    %c0_27 = arith.constant 0 : index
    %c53 = arith.constant 53 : index
    %65 = vector.load %arg1[%c0_27, %c53] : memref<2x72xf32, #tpu.memory_space<vmem>>, vector<2x1xf32>
    %c0_28 = arith.constant 0 : index
    %c65 = arith.constant 65 : index
    %66 = vector.load %arg1[%c0_28, %c65] : memref<2x72xf32, #tpu.memory_space<vmem>>, vector<2x1xf32>
    %67 = vector.broadcast %2 : vector<1x4096xf32> to vector<2x4096xf32>
    %68 = vector.broadcast %66 : vector<2x1xf32> to vector<2x4096xf32>
    %69 = arith.mulf %67, %68 : vector<2x4096xf32>
    %70 = vector.broadcast %65 : vector<2x1xf32> to vector<2x4096xf32>
    %71 = arith.addf %70, %69 : vector<2x4096xf32>
    %72 = arith.mulf %71, %8 : vector<2x4096xf32>
    %73 = arith.addf %64, %72 : vector<2x4096xf32>
    %c0_29 = arith.constant 0 : index
    %c54 = arith.constant 54 : index
    %74 = vector.load %arg1[%c0_29, %c54] : memref<2x72xf32, #tpu.memory_space<vmem>>, vector<2x1xf32>
    %c0_30 = arith.constant 0 : index
    %c66 = arith.constant 66 : index
    %75 = vector.load %arg1[%c0_30, %c66] : memref<2x72xf32, #tpu.memory_space<vmem>>, vector<2x1xf32>
    %76 = vector.broadcast %2 : vector<1x4096xf32> to vector<2x4096xf32>
    %77 = vector.broadcast %75 : vector<2x1xf32> to vector<2x4096xf32>
    %78 = arith.mulf %76, %77 : vector<2x4096xf32>
    %79 = vector.broadcast %74 : vector<2x1xf32> to vector<2x4096xf32>
    %80 = arith.addf %79, %78 : vector<2x4096xf32>
    %81 = arith.mulf %80, %11 : vector<2x4096xf32>
    %82 = arith.addf %73, %81 : vector<2x4096xf32>
    %c1_31 = arith.constant 1 : index
    %c0_32 = arith.constant 0 : index
    %c0_33 = arith.constant 0 : index
    %83 = vector.load %arg4[%c1_31, %c0_32, %c0_33] : memref<3x2x4096xf32, #tpu.memory_space<vmem>>, vector<1x2x4096xf32>
    %84 = vector.shape_cast %83 : vector<1x2x4096xf32> to vector<2x4096xf32>
    %85 = vector.shape_cast %82 : vector<2x4096xf32> to vector<1x2x4096xf32>
    tpu.vector_store %arg4[%c1_31, %c0_32, %c0_33], %85 {strides = array<i32>} : memref<3x2x4096xf32, #tpu.memory_space<vmem>>, vector<1x2x4096xf32>,
    %c0_34 = arith.constant 0 : index
    %c59 = arith.constant 59 : index
    %86 = vector.load %arg1[%c0_34, %c59] : memref<2x72xf32, #tpu.memory_space<vmem>>, vector<2x1xf32>
    %c0_35 = arith.constant 0 : index
    %c71 = arith.constant 71 : index
    %87 = vector.load %arg1[%c0_35, %c71] : memref<2x72xf32, #tpu.memory_space<vmem>>, vector<2x1xf32>
    %88 = vector.broadcast %2 : vector<1x4096xf32> to vector<2x4096xf32>
    %89 = vector.broadcast %87 : vector<2x1xf32> to vector<2x4096xf32>
    %90 = arith.mulf %88, %89 : vector<2x4096xf32>
    %91 = vector.broadcast %86 : vector<2x1xf32> to vector<2x4096xf32>
    %92 = arith.addf %91, %90 : vector<2x4096xf32>
    %c0_36 = arith.constant 0 : index
    %c56 = arith.constant 56 : index
    %93 = vector.load %arg1[%c0_36, %c56] : memref<2x72xf32, #tpu.memory_space<vmem>>, vector<2x1xf32>
    %c0_37 = arith.constant 0 : index
    %c68 = arith.constant 68 : index
    %94 = vector.load %arg1[%c0_37, %c68] : memref<2x72xf32, #tpu.memory_space<vmem>>, vector<2x1xf32>
    %95 = vector.broadcast %2 : vector<1x4096xf32> to vector<2x4096xf32>
    %96 = vector.broadcast %94 : vector<2x1xf32> to vector<2x4096xf32>
    %97 = arith.mulf %95, %96 : vector<2x4096xf32>
    %98 = vector.broadcast %93 : vector<2x1xf32> to vector<2x4096xf32>
    %99 = arith.addf %98, %97 : vector<2x4096xf32>
    %100 = arith.mulf %99, %5 : vector<2x4096xf32>
    %101 = arith.addf %92, %100 : vector<2x4096xf32>
    %c0_38 = arith.constant 0 : index
    %c57 = arith.constant 57 : index
    %102 = vector.load %arg1[%c0_38, %c57] : memref<2x72xf32, #tpu.memory_space<vmem>>, vector<2x1xf32>
    %c0_39 = arith.constant 0 : index
    %c69 = arith.constant 69 : index
    %103 = vector.load %arg1[%c0_39, %c69] : memref<2x72xf32, #tpu.memory_space<vmem>>, vector<2x1xf32>
    %104 = vector.broadcast %2 : vector<1x4096xf32> to vector<2x4096xf32>
    %105 = vector.broadcast %103 : vector<2x1xf32> to vector<2x4096xf32>
    %106 = arith.mulf %104, %105 : vector<2x4096xf32>
    %107 = vector.broadcast %102 : vector<2x1xf32> to vector<2x4096xf32>
    %108 = arith.addf %107, %106 : vector<2x4096xf32>
    %109 = arith.mulf %108, %8 : vector<2x4096xf32>
    %110 = arith.addf %101, %109 : vector<2x4096xf32>
    %c0_40 = arith.constant 0 : index
    %c58 = arith.constant 58 : index
    %111 = vector.load %arg1[%c0_40, %c58] : memref<2x72xf32, #tpu.memory_space<vmem>>, vector<2x1xf32>
    %c0_41 = arith.constant 0 : index
    %c70 = arith.constant 70 : index
    %112 = vector.load %arg1[%c0_41, %c70] : memref<2x72xf32, #tpu.memory_space<vmem>>, vector<2x1xf32>
    %113 = vector.broadcast %2 : vector<1x4096xf32> to vector<2x4096xf32>
    %114 = vector.broadcast %112 : vector<2x1xf32> to vector<2x4096xf32>
    %115 = arith.mulf %113, %114 : vector<2x4096xf32>
    %116 = vector.broadcast %111 : vector<2x1xf32> to vector<2x4096xf32>
    %117 = arith.addf %116, %115 : vector<2x4096xf32>
    %118 = arith.mulf %117, %11 : vector<2x4096xf32>
    %119 = arith.addf %110, %118 : vector<2x4096xf32>
    %c2_42 = arith.constant 2 : index
    %c0_43 = arith.constant 0 : index
    %c0_44 = arith.constant 0 : index
    %120 = vector.load %arg4[%c2_42, %c0_43, %c0_44] : memref<3x2x4096xf32, #tpu.memory_space<vmem>>, vector<1x2x4096xf32>
    %121 = vector.shape_cast %120 : vector<1x2x4096xf32> to vector<2x4096xf32>
    %122 = vector.shape_cast %119 : vector<2x4096xf32> to vector<1x2x4096xf32>
    tpu.vector_store %arg4[%c2_42, %c0_43, %c0_44], %122 {strides = array<i32>} : memref<3x2x4096xf32, #tpu.memory_space<vmem>>, vector<1x2x4096xf32>,
    return
  }
  func.func @transform_0(%arg0: i32) -> (i32, i32) {
    %c0_i32 = arith.constant 0 : i32
    %c0_i32_0 = arith.constant 0 : i32
    %c0_i32_1 = arith.constant 0 : i32
    return %c0_i32, %c0_i32_0 : i32, i32
  }
  func.func @transform_1(%arg0: i32) -> (i32, i32, i32) {
    %c0_i32 = arith.constant 0 : i32
    %c0_i32_0 = arith.constant 0 : i32
    %c0_i32_1 = arith.constant 0 : i32
    return %c0_i32, %c0_i32_0, %arg0 : i32, i32, i32
  }
  func.func @transform_2(%arg0: i32) -> (i32, i32) {
    %c0_i32 = arith.constant 0 : i32
    %c0_i32_0 = arith.constant 0 : i32
    return %c0_i32, %arg0 : i32, i32
  }
  func.func @transform_3(%arg0: i32) -> (i32, i32, i32) {
    %c0_i32 = arith.constant 0 : i32
    %c0_i32_0 = arith.constant 0 : i32
    %c0_i32_1 = arith.constant 0 : i32
    return %c0_i32, %c0_i32_0, %arg0 : i32, i32, i32
  }
}

</mosaic_0001>

<llo_original>
// kernel: sub.6
$region0: #{sub.6}
  #allocation0 [shape = 's32[1]{0}', space=sflag, size = 0x4, scoped, tag = 'scoped memory for sub.6']
  %s0 = inlined_call_operand.vmem [shape: f32[2,12], index: 0, kind: input, shape index: {}]
  %s1 = inlined_call_operand.vmem [shape: f32[2,12], index: 1, kind: input, shape index: {}]
  %s2 = inlined_call_operand.vmem [shape: f32[2,12], index: 2, kind: output, shape index: {}]
  %v3 = vld [vmem:[%s0] sm:$0x3]
  %v4 = vld [vmem:[%s1] sm:$0x3]
  %5 = xla_tuple %v3, %v4
  %6 = xla_tuple %5
  %v7 = vsub.f32 %v3, %v4
  %8 = xla_tuple %v7
  %9 = vst [vmem:[%s2] sm:$0x3] %v7

// kernel: metahuman_forward.1
$region0: #{metahuman_forward.1}
  #allocation0 [shape = 'u32[]', space=smem, size = 0x4, offset = 0x4, fixed_abs, tag = 'smem constant byte address 0x4 - core index']
  #allocation1 [shape = 'u32[144,128]{1,0:T(1,128)}', space=vmem, size = 0x12000, scoped, tag = 'internal scratch']
  %s0 = inlined_call_operand.vmem [shape: f32[2,72], index: 0, kind: input, shape index: {}]
  %s1 = inlined_call_operand.hbm [shape: bf16[3,48,8192], index: 1, kind: input, shape index: {}]
  %s2 = inlined_call_operand.hbm [shape: f32[1,8192], index: 2, kind: input, shape index: {}]
  %s3 = inlined_call_operand.vmem [shape: f32[3,2,8192], index: 3, kind: output, shape index: {}]
  %s4 = sld [smem:[#allocation0]]
  $region72: #{metahuman_forward.1} parent=0
    _
  %s6 = ssub.s32 1, %s4
  %s7 = scalar_select 0, %s6, %s4
  $region1: #{metahuman_forward.1} parent=0
    #allocation2 [shape = 'u8[2359296]{0}', space=vmem, size = 0x240000, scoped, tag = 'input window, operand 1']
    #allocation3 [shape = 's32[2]{0}', space=sflag, size = 0x8, scoped, tag = 'scoped memory for metahuman_forward.1']
    #allocation4 [shape = 'u8[32768]{0}', space=vmem, size = 0x8000, scoped, tag = 'input window, operand 2']
    #allocation5 [shape = 's32[2]{0}', space=sflag, size = 0x8, scoped, tag = 'scoped memory for metahuman_forward.1']
    #allocation6 [shape = 'u8[196608]{0}', space=vmem, size = 0x30000, scoped, tag = 'output window, operand 0']
    %8 = vsyncpa [#allocation3], 0
    %s9 = scalar_lea.sflag [#allocation3], 1
    %10 = vsyncpa %s9, 0
    %11 = vsyncpa [#allocation5], 0
    %s12 = scalar_lea.sflag [#allocation5], 1
    %13 = vsyncpa %s12, 0
    loop: start=0, step=1, limit=4
    $region2: #{metahuman_forward.1} parent=1 // loop_pre_header
      _
    $region3: #{metahuman_forward.1} parent=1 // loop_header
      %s15 = sphi 0, %s19
      %p16 = scmp.ge.s32.totalorder %s15, 4
      %s23 = sphi 0, %s23
      %s25 = sphi 0, %s23
      %s26 = sphi 0, %s25
      %s40 = sphi 0, %s26
      %s46 = sphi 0, %s48
      %s49 = sphi 0, %s46
      %s50 = sphi 0, %s49
      %s66 = sphi 0, %s50
      %s72 = sphi 0, %s74
      %s75 = sphi 0, %s72
      %s76 = sphi 0, %s75
      %s92 = sphi 0, %s76
      %s98 = sphi 0, %s100
      %s101 = sphi 0, %s98
      %s102 = sphi 0, %s101
      %s118 = sphi 0, %s102
    $region4: #{metahuman_forward.1} parent=1 // loop_header_branch
      %18 = sbr.rel (%p16) target = $region8
    $region5: #{metahuman_forward.1} parent=1 // loop_body
      %s20 = ssub.s32 %s15, 1
      %s21 = ssub.s32 %s15, 2
      %s22 = sadd.s32 %s15, 1
      %s24 = sadd.s32 %s23, 1
      %p27 = scmp.eq.s32.totalorder %s15, 1
      %p28 = scmp.ne.s32.totalorder %s23, %s25
      %p29 = scmp.eq.s32.totalorder %s15, 0
      %p30 = por %p28, %p29
      %p31 = scmp.ne.s32.totalorder %s23, %s25
      %p32 = scmp.eq.s32.totalorder %s20, 1
      %p33 = por %p31, %p32
      %p34 = scmp.ne.s32.totalorder %s25, %s26
      %p35 = scmp.eq.s32.totalorder %s20, 0
      %p36 = por %p34, %p35
      %p37 = scmp.ne.s32.totalorder %s25, %s26
      %p38 = scmp.eq.s32.totalorder %s21, 1
      %p39 = por %p37, %p38
      %p41 = scmp.ne.s32.totalorder %s26, %s40
      %p42 = scmp.eq.s32.totalorder %s21, 0
      %p43 = por %p41, %p42
      %s44 = ssub.s32 %s15, %s22
      %p45 = scmp.eq.s32.totalorder %s44, 0
      %s47 = sadd.s32 %s46, 1
      %s48 = scalar_select %p45, %s46, %s47
      %p51 = pneg %p45
      %p52 = scmp.eq.s32.totalorder %s15, 1
      %p53 = por %p51, %p52
      %p54 = scmp.ne.s32.totalorder %s46, %s49
      %p55 = scmp.eq.s32.totalorder %s15, 0
      %p56 = por %p54, %p55
      %p57 = scmp.ne.s32.totalorder %s46, %s49
      %p58 = scmp.eq.s32.totalorder %s20, 1
      %p59 = por %p57, %p58
      %p60 = scmp.ne.s32.totalorder %s49, %s50
      %p61 = scmp.eq.s32.totalorder %s20, 0
      %p62 = por %p60, %p61
      %p63 = scmp.ne.s32.totalorder %s49, %s50
      %p64 = scmp.eq.s32.totalorder %s21, 1
      %p65 = por %p63, %p64
      %p67 = scmp.ne.s32.totalorder %s50, %s66
      %p68 = scmp.eq.s32.totalorder %s21, 0
      %p69 = por %p67, %p68
      %s70 = ssub.s32 %s15, %s22
      %p71 = scmp.eq.s32.totalorder %s70, 0
      %s73 = sadd.s32 %s72, 1
      %s74 = scalar_select %p71, %s72, %s73
      %p77 = pneg %p71
      %p78 = scmp.eq.s32.totalorder %s15, 1
      %p79 = por %p77, %p78
      %p80 = scmp.ne.s32.totalorder %s72, %s75
      %p81 = scmp.eq.s32.totalorder %s15, 0
      %p82 = por %p80, %p81
      %p83 = scmp.ne.s32.totalorder %s72, %s75
      %p84 = scmp.eq.s32.totalorder %s20, 1
      %p85 = por %p83, %p84
      %p86 = scmp.ne.s32.totalorder %s75, %s76
      %p87 = scmp.eq.s32.totalorder %s20, 0
      %p88 = por %p86, %p87
      %p89 = scmp.ne.s32.totalorder %s75, %s76
      %p90 = scmp.eq.s32.totalorder %s21, 1
      %p91 = por %p89, %p90
      %p93 = scmp.ne.s32.totalorder %s76, %s92
      %p94 = scmp.eq.s32.totalorder %s21, 0
      %p95 = por %p93, %p94
      %s96 = ssub.s32 %s15, %s22
      %p97 = scmp.eq.s32.totalorder %s96, 0
      %s99 = sadd.s32 %s98, 1
      %s100 = scalar_select %p97, %s98, %s99
      %p103 = pneg %p97
      %p104 = scmp.eq.s32.totalorder %s15, 1
      %p105 = por %p103, %p104
      %p106 = scmp.ne.s32.totalorder %s98, %s101
      %p107 = scmp.eq.s32.totalorder %s15, 0
      %p108 = por %p106, %p107
      %p109 = scmp.ne.s32.totalorder %s98, %s101
      %p110 = scmp.eq.s32.totalorder %s20, 1
      %p111 = por %p109, %p110
      %p112 = scmp.ne.s32.totalorder %s101, %s102
      %p113 = scmp.eq.s32.totalorder %s20, 0
      %p114 = por %p112, %p113
      %p115 = scmp.ne.s32.totalorder %s101, %s102
      %p116 = scmp.eq.s32.totalorder %s21, 1
      %p117 = por %p115, %p116
      %p119 = scmp.ne.s32.totalorder %s102, %s118
      %p120 = scmp.eq.s32.totalorder %s21, 0
      %p121 = por %p119, %p120
      %p122 = scmp.le.s32.totalorder 1, %s15
      %p123 = scmp.lt.s32.totalorder %s15, 3
      %p124 = pnand %p122, %p123
      %p125 = pneg %p124
      // Predicated region
      $region9: #{metahuman_forward.1} parent=5 // pred_check
        _
      $region10: #{metahuman_forward.1} parent=5 // pred_check_branch
        %127 = sbr.rel (%p124) target = $region12
      $region11: #{metahuman_forward.1} parent=5 // pred_region
        %s128 = ssub.s32 %s15, 1
        // Predicated region
        $region13: #{metahuman_forward.1} parent=11 // pred_check
          %p129 = pneg %p36
        $region14: #{metahuman_forward.1} parent=11 // pred_check_branch
          %131 = sbr.rel (%p129) target = $region16
        $region15: #{metahuman_forward.1} parent=11 // pred_region
          _
        $region16: #{metahuman_forward.1} parent=11 // pred_fallthru
          _
      $region12: #{metahuman_forward.1} parent=5 // pred_fallthru
        _
      %p132 = scmp.lt.s32.totalorder %s15, 2
      // Predicated region
      $region17: #{metahuman_forward.1} parent=5 // pred_check
        %p133 = pneg %p132
      $region18: #{metahuman_forward.1} parent=5 // pred_check_branch
        %135 = sbr.rel (%p133) target = $region20
      $region19: #{metahuman_forward.1} parent=5 // pred_region
        // Predicated region
        $region21: #{metahuman_forward.1} parent=19 // pred_check
          %p136 = pneg %p56
        $region22: #{metahuman_forward.1} parent=19 // pred_check_branch
          %138 = sbr.rel (%p136) target = $region24
        $region23: #{metahuman_forward.1} parent=19 // pred_region
          %s139 = sand.u32 %s46, 1
          %s140 = scalar_lea.sflag [#allocation3], %s139
          %s141 = sand.u32 %s46, 1
          %s142 = smul.addr %s141, 2304
          %s143 = scalar_lea.vmem [#allocation2], %s142
          %s144 = smul.u32 32, %s15
          %s146 = ssub.s32 36864, 36864
          %147 = vsyncadd %s140, %s146
          %s148 = smul.addr %s144, 64
          %s149 = scalar_lea.hbm %s1, %s148
          %s150 = sshll.u32 %s143, 4
          %s151 = int_to_ptr.vmem [resolvable:$true] %s150
          %156 = dma.hbm_to_vmem [thread:$0]  %s149, 36864, %s151, %s140, 4096, 2048, 128
        $region24: #{metahuman_forward.1} parent=19 // pred_fallthru
          _
        // Predicated region
        $region25: #{metahuman_forward.1} parent=19 // pred_check
          %p157 = pneg %p82
        $region26: #{metahuman_forward.1} parent=19 // pred_check_branch
          %159 = sbr.rel (%p157) target = $region28
        $region27: #{metahuman_forward.1} parent=19 // pred_region
          %s160 = sand.u32 %s72, 1
          %s161 = scalar_lea.sflag [#allocation5], %s160
          %s162 = sand.u32 %s72, 1
          %s163 = smul.addr %s162, 32
          %s164 = scalar_lea.vmem [#allocation4], %s163
          %s165 = smul.u32 32, %s15
          %s167 = ssub.s32 512, 512
          %168 = vsyncadd %s161, %s167
          %s169 = smul.addr %s165, 16
          %s170 = scalar_lea.hbm %s2, %s169
          %s172 = sshll.u32 %s164, 4
          %s173 = int_to_ptr.vmem [resolvable:$true] %s172
          %175 = dma.hbm_to_vmem [thread:$0]  %s170, 512, %s173, %s161
        $region28: #{metahuman_forward.1} parent=19 // pred_fallthru
          _
      $region20: #{metahuman_forward.1} parent=5 // pred_fallthru
        _
      %p176 = scmp.le.s32.totalorder 1, %s15
      %p177 = scmp.lt.s32.totalorder %s15, 3
      %p178 = pnand %p176, %p177
      %p179 = pneg %p178
      // Predicated region
      $region29: #{metahuman_forward.1} parent=5 // pred_check
        _
      $region30: #{metahuman_forward.1} parent=5 // pred_check_branch
        %181 = sbr.rel (%p178) target = $region32
      $region31: #{metahuman_forward.1} parent=5 // pred_region
        %s182 = ssub.s32 %s15, 1
        %s183 = sand.u32 %s49, 1
        %s184 = scalar_lea.sflag [#allocation3], %s183
        %s185 = sand.u32 %s49, 1
        %s186 = smul.addr %s185, 2304
        %s187 = scalar_lea.vmem [#allocation2], %s186
        // Predicated region
        $region33: #{metahuman_forward.1} parent=31 // pred_check
          %p188 = pneg %p62
        $region34: #{metahuman_forward.1} parent=31 // pred_check_branch
          %190 = sbr.rel (%p188) target = $region36
        $region35: #{metahuman_forward.1} parent=31 // pred_region
          %191 = dma.done %s184, 36864
        $region36: #{metahuman_forward.1} parent=31 // pred_fallthru
          _
        %s192 = sand.u32 %s75, 1
        %s193 = scalar_lea.sflag [#allocation5], %s192
        %s194 = sand.u32 %s75, 1
        %s195 = smul.addr %s194, 32
        %s196 = scalar_lea.vmem [#allocation4], %s195
        // Predicated region
        $region37: #{metahuman_forward.1} parent=31 // pred_check
          %p197 = pneg %p88
        $region38: #{metahuman_forward.1} parent=31 // pred_check_branch
          %199 = sbr.rel (%p197) target = $region40
        $region39: #{metahuman_forward.1} parent=31 // pred_region
          %200 = dma.done %s193, 512
        $region40: #{metahuman_forward.1} parent=31 // pred_fallthru
          _
        %p201 = pneg %p36
        %p202 = pneg %p33
        %s203 = sand.u32 %s49, 1
        %s204 = scalar_lea.sflag [#allocation3], %s203
        %s205 = sand.u32 %s49, 1
        %s206 = smul.addr %s205, 2304
        %s207 = scalar_lea.vmem [#allocation2], %s206
        %p208 = pneg %p62
        %p209 = pneg %p59
        %s210 = sand.u32 %s75, 1
        %s211 = scalar_lea.sflag [#allocation5], %s210
        %s212 = sand.u32 %s75, 1
        %s213 = smul.addr %s212, 32
        %s214 = scalar_lea.vmem [#allocation4], %s213
        %p215 = pneg %p88
        %p216 = pneg %p85
        %p217 = pneg %p114
        %p218 = pneg %p111
        %s219 = sand.u32 %s101, 1
        %s220 = sand.u32 %s101, 1
        %s221 = smul.addr %s220, 192
        %s222 = scalar_lea.vmem [#allocation6], %s221
        %s223 = smul.u32 32, %s20
        %s224 = smul.u32 32, %s20
        %s225 = smul.u32 32, %s20
        %v227 = vld [vmem:[%s0] sm:$0x3]
        %v228 = vpack.c.bf16 %v227, %v227
        %v229 = vld [vmem:[%s196] sm:$0xff]
        %v230 = vld [vmem:[%s196 + $0x8] sm:$0xff]
        %v231 = vld [vmem:[%s196 + $0x10] sm:$0xff]
        %v232 = vld [vmem:[%s196 + $0x18] sm:$0xff]
        %v233 = vld [vmem:[%s187] sm:$0xff]
        %v234 = vld [vmem:[%s187 + $0x8] sm:$0xff]
        %v235 = vld [vmem:[%s187 + $0x10] sm:$0xff]
        %v236 = vld [vmem:[%s187 + $0x18] sm:$0xff]
        %v237 = vld [vmem:[%s187 + $0x20] sm:$0xff]
        %v238 = vld [vmem:[%s187 + $0x28] sm:$0xff]
        %v239 = vld [vmem:[%s187 + $0x30] sm:$0xff]
        %v240 = vld [vmem:[%s187 + $0x38] sm:$0xff]
        %v241 = vld [vmem:[%s187 + $0x40] sm:$0xff]
        %v242 = vld [vmem:[%s187 + $0x48] sm:$0xff]
        %v243 = vld [vmem:[%s187 + $0x50] sm:$0xff]
        %v244 = vld [vmem:[%s187 + $0x58] sm:$0xff]
        %v245 = vld [vmem:[%s187 + $0x60] sm:$0xff]
        %v246 = vld [vmem:[%s187 + $0x68] sm:$0xff]
        %v247 = vld [vmem:[%s187 + $0x70] sm:$0xff]
        %v248 = vld [vmem:[%s187 + $0x78] sm:$0xff]
        %v249 = vld [vmem:[%s187 + $0x80] sm:$0xff]
        %v250 = vld [vmem:[%s187 + $0x88] sm:$0xff]
        %v251 = vld [vmem:[%s187 + $0x90] sm:$0xff]
        %v252 = vld [vmem:[%s187 + $0x98] sm:$0xff]
        %v253 = vld [vmem:[%s187 + $0xa0] sm:$0xff]
        %v254 = vld [vmem:[%s187 + $0xa8] sm:$0xff]
        %v255 = vld [vmem:[%s187 + $0xb0] sm:$0xff]
        %v256 = vld [vmem:[%s187 + $0xb8] sm:$0xff]
        %v257 = vld [vmem:[%s187 + $0xc0] sm:$0xff]
        %v258 = vld [vmem:[%s187 + $0xc8] sm:$0xff]
        %v259 = vld [vmem:[%s187 + $0xd0] sm:$0xff]
        %v260 = vld [vmem:[%s187 + $0xd8] sm:$0xff]
        %v261 = vld [vmem:[%s187 + $0xe0] sm:$0xff]
        %v262 = vld [vmem:[%s187 + $0xe8] sm:$0xff]
        %v263 = vld [vmem:[%s187 + $0xf0] sm:$0xff]
        %v264 = vld [vmem:[%s187 + $0xf8] sm:$0xff]
        %v265 = vld [vmem:[%s187 + $0x100] sm:$0xff]
        %v266 = vld [vmem:[%s187 + $0x108] sm:$0xff]
        %v267 = vld [vmem:[%s187 + $0x110] sm:$0xff]
        %v268 = vld [vmem:[%s187 + $0x118] sm:$0xff]
        %v269 = vld [vmem:[%s187 + $0x120] sm:$0xff]
        %v270 = vld [vmem:[%s187 + $0x128] sm:$0xff]
        %v271 = vld [vmem:[%s187 + $0x130] sm:$0xff]
        %v272 = vld [vmem:[%s187 + $0x138] sm:$0xff]
        %v273 = vld [vmem:[%s187 + $0x140] sm:$0xff]
        %v274 = vld [vmem:[%s187 + $0x148] sm:$0xff]
        %v275 = vld [vmem:[%s187 + $0x150] sm:$0xff]
        %v276 = vld [vmem:[%s187 + $0x158] sm:$0xff]
        %v277 = vld [vmem:[%s187 + $0x160] sm:$0xff]
        %v278 = vld [vmem:[%s187 + $0x168] sm:$0xff]
        %v279 = vld [vmem:[%s187 + $0x170] sm:$0xff]
        %v280 = vld [vmem:[%s187 + $0x178] sm:$0xff]
        %v281 = vld [vmem:[%s187 + $0x180] sm:$0xff]
        %v282 = vld [vmem:[%s187 + $0x188] sm:$0xff]
        %v283 = vld [vmem:[%s187 + $0x190] sm:$0xff]
        %v284 = vld [vmem:[%s187 + $0x198] sm:$0xff]
        %v285 = vld [vmem:[%s187 + $0x1a0] sm:$0xff]
        %v286 = vld [vmem:[%s187 + $0x1a8] sm:$0xff]
        %v287 = vld [vmem:[%s187 + $0x1b0] sm:$0xff]
        %v288 = vld [vmem:[%s187 + $0x1b8] sm:$0xff]
        %v289 = vld [vmem:[%s187 + $0x1c0] sm:$0xff]
        %v290 = vld [vmem:[%s187 + $0x1c8] sm:$0xff]
        %v291 = vld [vmem:[%s187 + $0x1d0] sm:$0xff]
        %v292 = vld [vmem:[%s187 + $0x1d8] sm:$0xff]
        %v293 = vld [vmem:[%s187 + $0x1e0] sm:$0xff]
        %v294 = vld [vmem:[%s187 + $0x1e8] sm:$0xff]
        %v295 = vld [vmem:[%s187 + $0x1f0] sm:$0xff]
        %v296 = vld [vmem:[%s187 + $0x1f8] sm:$0xff]
        %v297 = vld [vmem:[%s187 + $0x200] sm:$0xff]
        %v298 = vld [vmem:[%s187 + $0x208] sm:$0xff]
        %v299 = vld [vmem:[%s187 + $0x210] sm:$0xff]
        %v300 = vld [vmem:[%s187 + $0x218] sm:$0xff]
        %v301 = vld [vmem:[%s187 + $0x220] sm:$0xff]
        %v302 = vld [vmem:[%s187 + $0x228] sm:$0xff]
        %v303 = vld [vmem:[%s187 + $0x230] sm:$0xff]
        %v304 = vld [vmem:[%s187 + $0x238] sm:$0xff]
        %v305 = vld [vmem:[%s187 + $0x240] sm:$0xff]
        %v306 = vld [vmem:[%s187 + $0x248] sm:$0xff]
        %v307 = vld [vmem:[%s187 + $0x250] sm:$0xff]
        %v308 = vld [vmem:[%s187 + $0x258] sm:$0xff]
        %v309 = vld [vmem:[%s187 + $0x260] sm:$0xff]
        %v310 = vld [vmem:[%s187 + $0x268] sm:$0xff]
        %v311 = vld [vmem:[%s187 + $0x270] sm:$0xff]
        %v312 = vld [vmem:[%s187 + $0x278] sm:$0xff]
        %v313 = vld [vmem:[%s187 + $0x280] sm:$0xff]
        %v314 = vld [vmem:[%s187 + $0x288] sm:$0xff]
        %v315 = vld [vmem:[%s187 + $0x290] sm:$0xff]
        %v316 = vld [vmem:[%s187 + $0x298] sm:$0xff]
        %v317 = vld [vmem:[%s187 + $0x2a0] sm:$0xff]
        %v318 = vld [vmem:[%s187 + $0x2a8] sm:$0xff]
        %v319 = vld [vmem:[%s187 + $0x2b0] sm:$0xff]
        %v320 = vld [vmem:[%s187 + $0x2b8] sm:$0xff]
        %v321 = vld [vmem:[%s187 + $0x2c0] sm:$0xff]
        %v322 = vld [vmem:[%s187 + $0x2c8] sm:$0xff]
        %v323 = vld [vmem:[%s187 + $0x2d0] sm:$0xff]
        %v324 = vld [vmem:[%s187 + $0x2d8] sm:$0xff]
        %v325 = vld [vmem:[%s187 + $0x2e0] sm:$0xff]
        %v326 = vld [vmem:[%s187 + $0x2e8] sm:$0xff]
        %v327 = vld [vmem:[%s187 + $0x2f0] sm:$0xff]
        %v328 = vld [vmem:[%s187 + $0x2f8] sm:$0xff]
        %v425 = vunpack.c.l.b16 %v233
        %v426 = vunpack.c.h.b16 %v233
        %v427 = vunpack.c.l.b16 %v234
        %v428 = vunpack.c.h.b16 %v234
        %v429 = vunpack.c.l.b16 %v235
        %v430 = vunpack.c.h.b16 %v235
        %v431 = vunpack.c.l.b16 %v236
        %v432 = vunpack.c.h.b16 %v236
        %v433 = vunpack.c.l.b16 %v237
        %v434 = vunpack.c.h.b16 %v237
        %v435 = vunpack.c.l.b16 %v238
        %v436 = vunpack.c.h.b16 %v238
        %v437 = vunpack.c.l.b16 %v239
        %v438 = vunpack.c.h.b16 %v239
        %v439 = vunpack.c.l.b16 %v240
        %v440 = vunpack.c.h.b16 %v240
        %v441 = vunpack.c.l.b16 %v241
        %v442 = vunpack.c.h.b16 %v241
        %v443 = vunpack.c.l.b16 %v242
        %v444 = vunpack.c.h.b16 %v242
        %v445 = vunpack.c.l.b16 %v243
        %v446 = vunpack.c.h.b16 %v243
        %v447 = vunpack.c.l.b16 %v244
        %v448 = vunpack.c.h.b16 %v244
        %v449 = vunpack.c.l.b16 %v245
        %v450 = vunpack.c.h.b16 %v245
        %v451 = vunpack.c.l.b16 %v246
        %v452 = vunpack.c.h.b16 %v246
        %v453 = vunpack.c.l.b16 %v247
        %v454 = vunpack.c.h.b16 %v247
        %v455 = vunpack.c.l.b16 %v248
        %v456 = vunpack.c.h.b16 %v248
        %v457 = vunpack.c.l.b16 %v249
        %v458 = vunpack.c.h.b16 %v249
        %v459 = vunpack.c.l.b16 %v250
        %v460 = vunpack.c.h.b16 %v250
        %v461 = vunpack.c.l.b16 %v251
        %v462 = vunpack.c.h.b16 %v251
        %v463 = vunpack.c.l.b16 %v252
        %v464 = vunpack.c.h.b16 %v252
        %v465 = vunpack.c.l.b16 %v253
        %v466 = vunpack.c.h.b16 %v253
        %v467 = vunpack.c.l.b16 %v254
        %v468 = vunpack.c.h.b16 %v254
        %v469 = vunpack.c.l.b16 %v255
        %v470 = vunpack.c.h.b16 %v255
        %v471 = vunpack.c.l.b16 %v256
        %v472 = vunpack.c.h.b16 %v256
        %v473 = vunpack.c.l.b16 %v257
        %v474 = vunpack.c.h.b16 %v257
        %v475 = vunpack.c.l.b16 %v258
        %v476 = vunpack.c.h.b16 %v258
        %v477 = vunpack.c.l.b16 %v259
        %v478 = vunpack.c.h.b16 %v259
        %v479 = vunpack.c.l.b16 %v260
        %v480 = vunpack.c.h.b16 %v260
        %v481 = vunpack.c.l.b16 %v261
        %v482 = vunpack.c.h.b16 %v261
        %v483 = vunpack.c.l.b16 %v262
        %v484 = vunpack.c.h.b16 %v262
        %v485 = vunpack.c.l.b16 %v263
        %v486 = vunpack.c.h.b16 %v263
        %v487 = vunpack.c.l.b16 %v264
        %v488 = vunpack.c.h.b16 %v264
        %v489 = vunpack.c.l.b16 %v265
        %v490 = vunpack.c.h.b16 %v265
        %v491 = vunpack.c.l.b16 %v266
        %v492 = vunpack.c.h.b16 %v266
        %v493 = vunpack.c.l.b16 %v267
        %v494 = vunpack.c.h.b16 %v267
        %v495 = vunpack.c.l.b16 %v268
        %v496 = vunpack.c.h.b16 %v268
        %v497 = vunpack.c.l.b16 %v269
        %v498 = vunpack.c.h.b16 %v269
        %v499 = vunpack.c.l.b16 %v270
        %v500 = vunpack.c.h.b16 %v270
        %v501 = vunpack.c.l.b16 %v271
        %v502 = vunpack.c.h.b16 %v271
        %v503 = vunpack.c.l.b16 %v272
        %v504 = vunpack.c.h.b16 %v272
        %v505 = vunpack.c.l.b16 %v273
        %v506 = vunpack.c.h.b16 %v273
        %v507 = vunpack.c.l.b16 %v274
        %v508 = vunpack.c.h.b16 %v274
        %v509 = vunpack.c.l.b16 %v275
        %v510 = vunpack.c.h.b16 %v275
        %v511 = vunpack.c.l.b16 %v276
        %v512 = vunpack.c.h.b16 %v276
        %v513 = vunpack.c.l.b16 %v277
        %v514 = vunpack.c.h.b16 %v277
        %v515 = vunpack.c.l.b16 %v278
        %v516 = vunpack.c.h.b16 %v278
        %v517 = vunpack.c.l.b16 %v279
        %v518 = vunpack.c.h.b16 %v279
        %v519 = vunpack.c.l.b16 %v280
        %v520 = vunpack.c.h.b16 %v280
        %v521 = vunpack.c.l.b16 %v281
        %v522 = vunpack.c.h.b16 %v281
        %v523 = vunpack.c.l.b16 %v282
        %v524 = vunpack.c.h.b16 %v282
        %v525 = vunpack.c.l.b16 %v283
        %v526 = vunpack.c.h.b16 %v283
        %v527 = vunpack.c.l.b16 %v284
        %v528 = vunpack.c.h.b16 %v284
        %v529 = vunpack.c.l.b16 %v285
        %v530 = vunpack.c.h.b16 %v285
        %v531 = vunpack.c.l.b16 %v286
        %v532 = vunpack.c.h.b16 %v286
        %v533 = vunpack.c.l.b16 %v287
        %v534 = vunpack.c.h.b16 %v287
        %v535 = vunpack.c.l.b16 %v288
        %v536 = vunpack.c.h.b16 %v288
        %v537 = vunpack.c.l.b16 %v289
        %v538 = vunpack.c.h.b16 %v289
        %v539 = vunpack.c.l.b16 %v290
        %v540 = vunpack.c.h.b16 %v290
        %v541 = vunpack.c.l.b16 %v291
        %v542 = vunpack.c.h.b16 %v291
        %v543 = vunpack.c.l.b16 %v292
        %v544 = vunpack.c.h.b16 %v292
        %v545 = vunpack.c.l.b16 %v293
        %v546 = vunpack.c.h.b16 %v293
        %v547 = vunpack.c.l.b16 %v294
        %v548 = vunpack.c.h.b16 %v294
        %v549 = vunpack.c.l.b16 %v295
        %v550 = vunpack.c.h.b16 %v295
        %v551 = vunpack.c.l.b16 %v296
        %v552 = vunpack.c.h.b16 %v296
        %v553 = vunpack.c.l.b16 %v297
        %v554 = vunpack.c.h.b16 %v297
        %v555 = vunpack.c.l.b16 %v298
        %v556 = vunpack.c.h.b16 %v298
        %v557 = vunpack.c.l.b16 %v299
        %v558 = vunpack.c.h.b16 %v299
        %v559 = vunpack.c.l.b16 %v300
        %v560 = vunpack.c.h.b16 %v300
        %v561 = vunpack.c.l.b16 %v301
        %v562 = vunpack.c.h.b16 %v301
        %v563 = vunpack.c.l.b16 %v302
        %v564 = vunpack.c.h.b16 %v302
        %v565 = vunpack.c.l.b16 %v303
        %v566 = vunpack.c.h.b16 %v303
        %v567 = vunpack.c.l.b16 %v304
        %v568 = vunpack.c.h.b16 %v304
        %v569 = vunpack.c.l.b16 %v305
        %v570 = vunpack.c.h.b16 %v305
        %v571 = vunpack.c.l.b16 %v306
        %v572 = vunpack.c.h.b16 %v306
        %v573 = vunpack.c.l.b16 %v307
        %v574 = vunpack.c.h.b16 %v307
        %v575 = vunpack.c.l.b16 %v308
        %v576 = vunpack.c.h.b16 %v308
        %v577 = vunpack.c.l.b16 %v309
        %v578 = vunpack.c.h.b16 %v309
        %v579 = vunpack.c.l.b16 %v310
        %v580 = vunpack.c.h.b16 %v310
        %v581 = vunpack.c.l.b16 %v311
        %v582 = vunpack.c.h.b16 %v311
        %v583 = vunpack.c.l.b16 %v312
        %v584 = vunpack.c.h.b16 %v312
        %v585 = vunpack.c.l.b16 %v313
        %v586 = vunpack.c.h.b16 %v313
        %v587 = vunpack.c.l.b16 %v314
        %v588 = vunpack.c.h.b16 %v314
        %v589 = vunpack.c.l.b16 %v315
        %v590 = vunpack.c.h.b16 %v315
        %v591 = vunpack.c.l.b16 %v316
        %v592 = vunpack.c.h.b16 %v316
        %v593 = vunpack.c.l.b16 %v317
        %v594 = vunpack.c.h.b16 %v317
        %v595 = vunpack.c.l.b16 %v318
        %v596 = vunpack.c.h.b16 %v318
        %v597 = vunpack.c.l.b16 %v319
        %v598 = vunpack.c.h.b16 %v319
        %v599 = vunpack.c.l.b16 %v320
        %v600 = vunpack.c.h.b16 %v320
        %v601 = vunpack.c.l.b16 %v321
        %v602 = vunpack.c.h.b16 %v321
        %v603 = vunpack.c.l.b16 %v322
        %v604 = vunpack.c.h.b16 %v322
        %v605 = vunpack.c.l.b16 %v323
        %v606 = vunpack.c.h.b16 %v323
        %v607 = vunpack.c.l.b16 %v324
        %v608 = vunpack.c.h.b16 %v324
        %v609 = vunpack.c.l.b16 %v325
        %v610 = vunpack.c.h.b16 %v325
        %v611 = vunpack.c.l.b16 %v326
        %v612 = vunpack.c.h.b16 %v326
        %v613 = vunpack.c.l.b16 %v327
        %v614 = vunpack.c.h.b16 %v327
        %v615 = vunpack.c.l.b16 %v328
        %v616 = vunpack.c.h.b16 %v328
        %v617 = vpack.c.b16 %v457, %v425
        %v618 = vpack.c.b16 %v458, %v426
        %v619 = vpack.c.b16 %v459, %v427
        %v620 = vpack.c.b16 %v460, %v428
        %v621 = vpack.c.b16 %v461, %v429
        %v622 = vpack.c.b16 %v462, %v430
        %v623 = vpack.c.b16 %v463, %v431
        %v624 = vpack.c.b16 %v464, %v432
        %v625 = vpack.c.b16 %v465, %v433
        %v626 = vpack.c.b16 %v466, %v434
        %v627 = vpack.c.b16 %v467, %v435
        %v628 = vpack.c.b16 %v468, %v436
        %v629 = vpack.c.b16 %v469, %v437
        %v630 = vpack.c.b16 %v470, %v438
        %v631 = vpack.c.b16 %v471, %v439
        %v632 = vpack.c.b16 %v472, %v440
        %v633 = vpack.c.b16 %v473, %v441
        %v634 = vpack.c.b16 %v474, %v442
        %v635 = vpack.c.b16 %v475, %v443
        %v636 = vpack.c.b16 %v476, %v444
        %v637 = vpack.c.b16 %v477, %v445
        %v638 = vpack.c.b16 %v478, %v446
        %v639 = vpack.c.b16 %v479, %v447
        %v640 = vpack.c.b16 %v480, %v448
        %v641 = vpack.c.b16 %v481, %v449
        %v642 = vpack.c.b16 %v482, %v450
        %v643 = vpack.c.b16 %v483, %v451
        %v644 = vpack.c.b16 %v484, %v452
        %v645 = vpack.c.b16 %v485, %v453
        %v646 = vpack.c.b16 %v486, %v454
        %v647 = vpack.c.b16 %v487, %v455
        %v648 = vpack.c.b16 %v488, %v456
        %v649 = vpack.c.b16 %v521, %v489
        %v650 = vpack.c.b16 %v522, %v490
        %v651 = vpack.c.b16 %v523, %v491
        %v652 = vpack.c.b16 %v524, %v492
        %v653 = vpack.c.b16 %v525, %v493
        %v654 = vpack.c.b16 %v526, %v494
        %v655 = vpack.c.b16 %v527, %v495
        %v656 = vpack.c.b16 %v528, %v496
        %v657 = vpack.c.b16 %v529, %v497
        %v658 = vpack.c.b16 %v530, %v498
        %v659 = vpack.c.b16 %v531, %v499
        %v660 = vpack.c.b16 %v532, %v500
        %v661 = vpack.c.b16 %v533, %v501
        %v662 = vpack.c.b16 %v534, %v502
        %v663 = vpack.c.b16 %v535, %v503
        %v664 = vpack.c.b16 %v536, %v504
        %v665 = vpack.c.b16 %v537, %v505
        %v666 = vpack.c.b16 %v538, %v506
        %v667 = vpack.c.b16 %v539, %v507
        %v668 = vpack.c.b16 %v540, %v508
        %v669 = vpack.c.b16 %v541, %v509
        %v670 = vpack.c.b16 %v542, %v510
        %v671 = vpack.c.b16 %v543, %v511
        %v672 = vpack.c.b16 %v544, %v512
        %v673 = vpack.c.b16 %v545, %v513
        %v674 = vpack.c.b16 %v546, %v514
        %v675 = vpack.c.b16 %v547, %v515
        %v676 = vpack.c.b16 %v548, %v516
        %v677 = vpack.c.b16 %v549, %v517
        %v678 = vpack.c.b16 %v550, %v518
        %v679 = vpack.c.b16 %v551, %v519
        %v680 = vpack.c.b16 %v552, %v520
        %v681 = vpack.c.b16 %v585, %v553
        %v682 = vpack.c.b16 %v586, %v554
        %v683 = vpack.c.b16 %v587, %v555
        %v684 = vpack.c.b16 %v588, %v556
        %v685 = vpack.c.b16 %v589, %v557
        %v686 = vpack.c.b16 %v590, %v558
        %v687 = vpack.c.b16 %v591, %v559
        %v688 = vpack.c.b16 %v592, %v560
        %v689 = vpack.c.b16 %v593, %v561
        %v690 = vpack.c.b16 %v594, %v562
        %v691 = vpack.c.b16 %v595, %v563
        %v692 = vpack.c.b16 %v596, %v564
        %v693 = vpack.c.b16 %v597, %v565
        %v694 = vpack.c.b16 %v598, %v566
        %v695 = vpack.c.b16 %v599, %v567
        %v696 = vpack.c.b16 %v600, %v568
        %v697 = vpack.c.b16 %v601, %v569
        %v698 = vpack.c.b16 %v602, %v570
        %v699 = vpack.c.b16 %v603, %v571
        %v700 = vpack.c.b16 %v604, %v572
        %v701 = vpack.c.b16 %v605, %v573
        %v702 = vpack.c.b16 %v606, %v574
        %v703 = vpack.c.b16 %v607, %v575
        %v704 = vpack.c.b16 %v608, %v576
        %v705 = vpack.c.b16 %v609, %v577
        %v706 = vpack.c.b16 %v610, %v578
        %v707 = vpack.c.b16 %v611, %v579
        %v708 = vpack.c.b16 %v612, %v580
        %v709 = vpack.c.b16 %v613, %v581
        %v710 = vpack.c.b16 %v614, %v582
        %v711 = vpack.c.b16 %v615, %v583
        %v712 = vpack.c.b16 %v616, %v584
        %vm809 = vcmask 392192
        %v811 = vsel %vm809, %v228, 0
        %813 = vmatprep.subr.bf16.mxu0 0
        %814 = vmatpush1.bf16.msra.mxu0 0
        %815 = vmatprep.subr.bf16.mxu0 0
        %816 = vmatpush1.bf16.msra.mxu0 0
        %817 = vmatprep.subr.bf16.mxu0 0
        %818 = vmatpush1.bf16.msra.mxu0 0
        %819 = vmatprep.subr.bf16.mxu0 0
        %820 = vmatpush1.bf16.msra.mxu0 0
        %821 = vmatprep.subr.bf16.mxu0 0
        %822 = vmatpush1.bf16.msra.mxu0 0
        %823 = vmatprep.subr.bf16.mxu0 %v682
        %824 = vmatpush1.bf16.msra.mxu0 %v681
        %825 = vmatprep.subr.bf16.mxu0 %v650
        %826 = vmatpush1.bf16.msra.mxu0 %v649
        %827 = vmatprep.subr.bf16.mxu0 %v618
        %828 = vmatpush1.bf16.msra.mxu0 %v617
        %829 = vmatprep.subr.bf16.mxu0 0
        %830 = vmatpush2.bf16.msra.mxu0 0
        %831 = vmatprep.subr.bf16.mxu0 0
        %832 = vmatpush2.bf16.msra.mxu0 0
        %833 = vmatprep.subr.bf16.mxu0 0
        %834 = vmatpush2.bf16.msra.mxu0 0
        %835 = vmatprep.subr.bf16.mxu0 0
        %836 = vmatpush2.bf16.msra.mxu0 0
        %837 = vmatprep.subr.bf16.mxu0 0
        %838 = vmatpush2.bf16.msra.mxu0 0
        %839 = vmatprep.subr.bf16.mxu0 0
        %840 = vmatpush2.bf16.msra.mxu0 0
        %841 = vmatprep.subr.bf16.mxu0 0
        %842 = vmatpush2.bf16.msra.mxu0 0
        %843 = vmatprep.subr.bf16.mxu0 0
        %844 = vmatpush2.bf16.msra.mxu0 0
        %845 = vmatprep.mubr.bf16.mxu0 0
        %846 = vmatmul.mubr.bf16.gmra.mxu0 %v811
        %v847 = vpop.f32.mrf.mxu0
        %v848 = vadd.f32 0.0, %v847
        %v849 = vpop.f32.mrf.mxu0
        %v850 = vadd.f32 0.0, %v849
        %v851 = vpop.f32.mrf.mxu0
        %v852 = vpop.f32.mrf.mxu0
        %853 = vdwg.mxu0
        %854 = vmatprep.subr.bf16.mxu0 0
        %855 = vmatpush1.bf16.msra.mxu0 0
        %856 = vmatprep.subr.bf16.mxu0 0
        %857 = vmatpush1.bf16.msra.mxu0 0
        %858 = vmatprep.subr.bf16.mxu0 0
        %859 = vmatpush1.bf16.msra.mxu0 0
        %860 = vmatprep.subr.bf16.mxu0 0
        %861 = vmatpush1.bf16.msra.mxu0 0
        %862 = vmatprep.subr.bf16.mxu0 0
        %863 = vmatpush1.bf16.msra.mxu0 0
        %864 = vmatprep.subr.bf16.mxu0 %v684
        %865 = vmatpush1.bf16.msra.mxu0 %v683
        %866 = vmatprep.subr.bf16.mxu0 %v652
        %867 = vmatpush1.bf16.msra.mxu0 %v651
        %868 = vmatprep.subr.bf16.mxu0 %v620
        %869 = vmatpush1.bf16.msra.mxu0 %v619
        %870 = vmatprep.subr.bf16.mxu0 0
        %871 = vmatpush2.bf16.msra.mxu0 0
        %872 = vmatprep.subr.bf16.mxu0 0
        %873 = vmatpush2.bf16.msra.mxu0 0
        %874 = vmatprep.subr.bf16.mxu0 0
        %875 = vmatpush2.bf16.msra.mxu0 0
        %876 = vmatprep.subr.bf16.mxu0 0
        %877 = vmatpush2.bf16.msra.mxu0 0
        %878 = vmatprep.subr.bf16.mxu0 0
        %879 = vmatpush2.bf16.msra.mxu0 0
        %880 = vmatprep.subr.bf16.mxu0 0
        %881 = vmatpush2.bf16.msra.mxu0 0
        %882 = vmatprep.subr.bf16.mxu0 0
        %883 = vmatpush2.bf16.msra.mxu0 0
        %884 = vmatprep.subr.bf16.mxu0 0
        %885 = vmatpush2.bf16.msra.mxu0 0
        %886 = vmatprep.mubr.bf16.mxu0 0
        %887 = vmatmul.mubr.bf16.gmra.mxu0 %v811
        %v888 = vpop.f32.mrf.mxu0
        %v889 = vadd.f32 0.0, %v888
        %v890 = vpop.f32.mrf.mxu0
        %v891 = vadd.f32 0.0, %v890
        %v892 = vpop.f32.mrf.mxu0
        %v893 = vpop.f32.mrf.mxu0
        %894 = vdwg.mxu0
        %895 = vmatprep.subr.bf16.mxu0 0
        %896 = vmatpush1.bf16.msra.mxu0 0
        %897 = vmatprep.subr.bf16.mxu0 0
        %898 = vmatpush1.bf16.msra.mxu0 0
        %899 = vmatprep.subr.bf16.mxu0 0
        %900 = vmatpush1.bf16.msra.mxu0 0
        %901 = vmatprep.subr.bf16.mxu0 0
        %902 = vmatpush1.bf16.msra.mxu0 0
        %903 = vmatprep.subr.bf16.mxu0 0
        %904 = vmatpush1.bf16.msra.mxu0 0
        %905 = vmatprep.subr.bf16.mxu0 %v686
        %906 = vmatpush1.bf16.msra.mxu0 %v685
        %907 = vmatprep.subr.bf16.mxu0 %v654
        %908 = vmatpush1.bf16.msra.mxu0 %v653
        %909 = vmatprep.subr.bf16.mxu0 %v622
        %910 = vmatpush1.bf16.msra.mxu0 %v621
        %911 = vmatprep.subr.bf16.mxu0 0
        %912 = vmatpush2.bf16.msra.mxu0 0
        %913 = vmatprep.subr.bf16.mxu0 0
        %914 = vmatpush2.bf16.msra.mxu0 0
        %915 = vmatprep.subr.bf16.mxu0 0
        %916 = vmatpush2.bf16.msra.mxu0 0
        %917 = vmatprep.subr.bf16.mxu0 0
        %918 = vmatpush2.bf16.msra.mxu0 0
        %919 = vmatprep.subr.bf16.mxu0 0
        %920 = vmatpush2.bf16.msra.mxu0 0
        %921 = vmatprep.subr.bf16.mxu0 0
        %922 = vmatpush2.bf16.msra.mxu0 0
        %923 = vmatprep.subr.bf16.mxu0 0
        %924 = vmatpush2.bf16.msra.mxu0 0
        %925 = vmatprep.subr.bf16.mxu0 0
        %926 = vmatpush2.bf16.msra.mxu0 0
        %927 = vmatprep.mubr.bf16.mxu0 0
        %928 = vmatmul.mubr.bf16.gmra.mxu0 %v811
        %v929 = vpop.f32.mrf.mxu0
        %v930 = vadd.f32 0.0, %v929
        %v931 = vpop.f32.mrf.mxu0
        %v932 = vadd.f32 0.0, %v931
        %v933 = vpop.f32.mrf.mxu0
        %v934 = vpop.f32.mrf.mxu0
        %935 = vdwg.mxu0
        %936 = vmatprep.subr.bf16.mxu0 0
        %937 = vmatpush1.bf16.msra.mxu0 0
        %938 = vmatprep.subr.bf16.mxu0 0
        %939 = vmatpush1.bf16.msra.mxu0 0
        %940 = vmatprep.subr.bf16.mxu0 0
        %941 = vmatpush1.bf16.msra.mxu0 0
        %942 = vmatprep.subr.bf16.mxu0 0
        %943 = vmatpush1.bf16.msra.mxu0 0
        %944 = vmatprep.subr.bf16.mxu0 0
        %945 = vmatpush1.bf16.msra.mxu0 0
        %946 = vmatprep.subr.bf16.mxu0 %v688
        %947 = vmatpush1.bf16.msra.mxu0 %v687
        %948 = vmatprep.subr.bf16.mxu0 %v656
        %949 = vmatpush1.bf16.msra.mxu0 %v655
        %950 = vmatprep.subr.bf16.mxu0 %v624
        %951 = vmatpush1.bf16.msra.mxu0 %v623
        %952 = vmatprep.subr.bf16.mxu0 0
        %953 = vmatpush2.bf16.msra.mxu0 0
        %954 = vmatprep.subr.bf16.mxu0 0
        %955 = vmatpush2.bf16.msra.mxu0 0
        %956 = vmatprep.subr.bf16.mxu0 0
        %957 = vmatpush2.bf16.msra.mxu0 0
        %958 = vmatprep.subr.bf16.mxu0 0
        %959 = vmatpush2.bf16.msra.mxu0 0
        %960 = vmatprep.subr.bf16.mxu0 0
        %961 = vmatpush2.bf16.msra.mxu0 0
        %962 = vmatprep.subr.bf16.mxu0 0
        %963 = vmatpush2.bf16.msra.mxu0 0
        %964 = vmatprep.subr.bf16.mxu0 0
        %965 = vmatpush2.bf16.msra.mxu0 0
        %966 = vmatprep.subr.bf16.mxu0 0
        %967 = vmatpush2.bf16.msra.mxu0 0
        %968 = vmatprep.mubr.bf16.mxu0 0
        %969 = vmatmul.mubr.bf16.gmra.mxu0 %v811
        %v970 = vpop.f32.mrf.mxu0
        %v971 = vadd.f32 0.0, %v970
        %v972 = vpop.f32.mrf.mxu0
        %v973 = vadd.f32 0.0, %v972
        %v974 = vpop.f32.mrf.mxu0
        %v975 = vpop.f32.mrf.mxu0
        %976 = vdwg.mxu0
        %977 = vmatprep.subr.bf16.mxu0 0
        %978 = vmatpush1.bf16.msra.mxu0 0
        %979 = vmatprep.subr.bf16.mxu0 0
        %980 = vmatpush1.bf16.msra.mxu0 0
        %981 = vmatprep.subr.bf16.mxu0 0
        %982 = vmatpush1.bf16.msra.mxu0 0
        %983 = vmatprep.subr.bf16.mxu0 0
        %984 = vmatpush1.bf16.msra.mxu0 0
        %985 = vmatprep.subr.bf16.mxu0 0
        %986 = vmatpush1.bf16.msra.mxu0 0
        %987 = vmatprep.subr.bf16.mxu0 %v690
        %988 = vmatpush1.bf16.msra.mxu0 %v689
        %989 = vmatprep.subr.bf16.mxu0 %v658
        %990 = vmatpush1.bf16.msra.mxu0 %v657
        %991 = vmatprep.subr.bf16.mxu0 %v626
        %992 = vmatpush1.bf16.msra.mxu0 %v625
        %993 = vmatprep.subr.bf16.mxu0 0
        %994 = vmatpush2.bf16.msra.mxu0 0
        %995 = vmatprep.subr.bf16.mxu0 0
        %996 = vmatpush2.bf16.msra.mxu0 0
        %997 = vmatprep.subr.bf16.mxu0 0
        %998 = vmatpush2.bf16.msra.mxu0 0
        %999 = vmatprep.subr.bf16.mxu0 0
        %1000 = vmatpush2.bf16.msra.mxu0 0
        %1001 = vmatprep.subr.bf16.mxu0 0
        %1002 = vmatpush2.bf16.msra.mxu0 0
        %1003 = vmatprep.subr.bf16.mxu0 0
        %1004 = vmatpush2.bf16.msra.mxu0 0
        %1005 = vmatprep.subr.bf16.mxu0 0
        %1006 = vmatpush2.bf16.msra.mxu0 0
        %1007 = vmatprep.subr.bf16.mxu0 0
        %1008 = vmatpush2.bf16.msra.mxu0 0
        %1009 = vmatprep.mubr.bf16.mxu0 0
        %1010 = vmatmul.mubr.bf16.gmra.mxu0 %v811
        %v1011 = vpop.f32.mrf.mxu0
        %v1012 = vadd.f32 0.0, %v1011
        %v1013 = vpop.f32.mrf.mxu0
        %v1014 = vadd.f32 0.0, %v1013
        %v1015 = vpop.f32.mrf.mxu0
        %v1016 = vpop.f32.mrf.mxu0
        %1017 = vdwg.mxu0
        %1018 = vmatprep.subr.bf16.mxu0 0
        %1019 = vmatpush1.bf16.msra.mxu0 0
        %1020 = vmatprep.subr.bf16.mxu0 0
        %1021 = vmatpush1.bf16.msra.mxu0 0
        %1022 = vmatprep.subr.bf16.mxu0 0
        %1023 = vmatpush1.bf16.msra.mxu0 0
        %1024 = vmatprep.subr.bf16.mxu0 0
        %1025 = vmatpush1.bf16.msra.mxu0 0
        %1026 = vmatprep.subr.bf16.mxu0 0
        %1027 = vmatpush1.bf16.msra.mxu0 0
        %1028 = vmatprep.subr.bf16.mxu0 %v692
        %1029 = vmatpush1.bf16.msra.mxu0 %v691
        %1030 = vmatprep.subr.bf16.mxu0 %v660
        %1031 = vmatpush1.bf16.msra.mxu0 %v659
        %1032 = vmatprep.subr.bf16.mxu0 %v628
        %1033 = vmatpush1.bf16.msra.mxu0 %v627
        %1034 = vmatprep.subr.bf16.mxu0 0
        %1035 = vmatpush2.bf16.msra.mxu0 0
        %1036 = vmatprep.subr.bf16.mxu0 0
        %1037 = vmatpush2.bf16.msra.mxu0 0
        %1038 = vmatprep.subr.bf16.mxu0 0
        %1039 = vmatpush2.bf16.msra.mxu0 0
        %1040 = vmatprep.subr.bf16.mxu0 0
        %1041 = vmatpush2.bf16.msra.mxu0 0
        %1042 = vmatprep.subr.bf16.mxu0 0
        %1043 = vmatpush2.bf16.msra.mxu0 0
        %1044 = vmatprep.subr.bf16.mxu0 0
        %1045 = vmatpush2.bf16.msra.mxu0 0
        %1046 = vmatprep.subr.bf16.mxu0 0
        %1047 = vmatpush2.bf16.msra.mxu0 0
        %1048 = vmatprep.subr.bf16.mxu0 0
        %1049 = vmatpush2.bf16.msra.mxu0 0
        %1050 = vmatprep.mubr.bf16.mxu0 0
        %1051 = vmatmul.mubr.bf16.gmra.mxu0 %v811
        %v1052 = vpop.f32.mrf.mxu0
        %v1053 = vadd.f32 0.0, %v1052
        %v1054 = vpop.f32.mrf.mxu0
        %v1055 = vadd.f32 0.0, %v1054
        %v1056 = vpop.f32.mrf.mxu0
        %v1057 = vpop.f32.mrf.mxu0
        %1058 = vdwg.mxu0
        %1059 = vmatprep.subr.bf16.mxu0 0
        %1060 = vmatpush1.bf16.msra.mxu0 0
        %1061 = vmatprep.subr.bf16.mxu0 0
        %1062 = vmatpush1.bf16.msra.mxu0 0
        %1063 = vmatprep.subr.bf16.mxu0 0
        %1064 = vmatpush1.bf16.msra.mxu0 0
        %1065 = vmatprep.subr.bf16.mxu0 0
        %1066 = vmatpush1.bf16.msra.mxu0 0
        %1067 = vmatprep.subr.bf16.mxu0 0
        %1068 = vmatpush1.bf16.msra.mxu0 0
        %1069 = vmatprep.subr.bf16.mxu0 %v694
        %1070 = vmatpush1.bf16.msra.mxu0 %v693
        %1071 = vmatprep.subr.bf16.mxu0 %v662
        %1072 = vmatpush1.bf16.msra.mxu0 %v661
        %1073 = vmatprep.subr.bf16.mxu0 %v630
        %1074 = vmatpush1.bf16.msra.mxu0 %v629
        %1075 = vmatprep.subr.bf16.mxu0 0
        %1076 = vmatpush2.bf16.msra.mxu0 0
        %1077 = vmatprep.subr.bf16.mxu0 0
        %1078 = vmatpush2.bf16.msra.mxu0 0
        %1079 = vmatprep.subr.bf16.mxu0 0
        %1080 = vmatpush2.bf16.msra.mxu0 0
        %1081 = vmatprep.subr.bf16.mxu0 0
        %1082 = vmatpush2.bf16.msra.mxu0 0
        %1083 = vmatprep.subr.bf16.mxu0 0
        %1084 = vmatpush2.bf16.msra.mxu0 0
        %1085 = vmatprep.subr.bf16.mxu0 0
        %1086 = vmatpush2.bf16.msra.mxu0 0
        %1087 = vmatprep.subr.bf16.mxu0 0
        %1088 = vmatpush2.bf16.msra.mxu0 0
        %1089 = vmatprep.subr.bf16.mxu0 0
        %1090 = vmatpush2.bf16.msra.mxu0 0
        %1091 = vmatprep.mubr.bf16.mxu0 0
        %1092 = vmatmul.mubr.bf16.gmra.mxu0 %v811
        %v1093 = vpop.f32.mrf.mxu0
        %v1094 = vadd.f32 0.0, %v1093
        %v1095 = vpop.f32.mrf.mxu0
        %v1096 = vadd.f32 0.0, %v1095
        %v1097 = vpop.f32.mrf.mxu0
        %v1098 = vpop.f32.mrf.mxu0
        %1099 = vdwg.mxu0
        %1100 = vmatprep.subr.bf16.mxu0 0
        %1101 = vmatpush1.bf16.msra.mxu0 0
        %1102 = vmatprep.subr.bf16.mxu0 0
        %1103 = vmatpush1.bf16.msra.mxu0 0
        %1104 = vmatprep.subr.bf16.mxu0 0
        %1105 = vmatpush1.bf16.msra.mxu0 0
        %1106 = vmatprep.subr.bf16.mxu0 0
        %1107 = vmatpush1.bf16.msra.mxu0 0
        %1108 = vmatprep.subr.bf16.mxu0 0
        %1109 = vmatpush1.bf16.msra.mxu0 0
        %1110 = vmatprep.subr.bf16.mxu0 %v696
        %1111 = vmatpush1.bf16.msra.mxu0 %v695
        %1112 = vmatprep.subr.bf16.mxu0 %v664
        %1113 = vmatpush1.bf16.msra.mxu0 %v663
        %1114 = vmatprep.subr.bf16.mxu0 %v632
        %1115 = vmatpush1.bf16.msra.mxu0 %v631
        %1116 = vmatprep.subr.bf16.mxu0 0
        %1117 = vmatpush2.bf16.msra.mxu0 0
        %1118 = vmatprep.subr.bf16.mxu0 0
        %1119 = vmatpush2.bf16.msra.mxu0 0
        %1120 = vmatprep.subr.bf16.mxu0 0
        %1121 = vmatpush2.bf16.msra.mxu0 0
        %1122 = vmatprep.subr.bf16.mxu0 0
        %1123 = vmatpush2.bf16.msra.mxu0 0
        %1124 = vmatprep.subr.bf16.mxu0 0
        %1125 = vmatpush2.bf16.msra.mxu0 0
        %1126 = vmatprep.subr.bf16.mxu0 0
        %1127 = vmatpush2.bf16.msra.mxu0 0
        %1128 = vmatprep.subr.bf16.mxu0 0
        %1129 = vmatpush2.bf16.msra.mxu0 0
        %1130 = vmatprep.subr.bf16.mxu0 0
        %1131 = vmatpush2.bf16.msra.mxu0 0
        %1132 = vmatprep.mubr.bf16.mxu0 0
        %1133 = vmatmul.mubr.bf16.gmra.mxu0 %v811
        %v1134 = vpop.f32.mrf.mxu0
        %v1135 = vadd.f32 0.0, %v1134
        %v1136 = vpop.f32.mrf.mxu0
        %v1137 = vadd.f32 0.0, %v1136
        %v1138 = vpop.f32.mrf.mxu0
        %v1139 = vpop.f32.mrf.mxu0
        %1140 = vdwg.mxu0
        %1141 = vmatprep.subr.bf16.mxu0 0
        %1142 = vmatpush1.bf16.msra.mxu0 0
        %1143 = vmatprep.subr.bf16.mxu0 0
        %1144 = vmatpush1.bf16.msra.mxu0 0
        %1145 = vmatprep.subr.bf16.mxu0 0
        %1146 = vmatpush1.bf16.msra.mxu0 0
        %1147 = vmatprep.subr.bf16.mxu0 0
        %1148 = vmatpush1.bf16.msra.mxu0 0
        %1149 = vmatprep.subr.bf16.mxu0 0
        %1150 = vmatpush1.bf16.msra.mxu0 0
        %1151 = vmatprep.subr.bf16.mxu0 %v698
        %1152 = vmatpush1.bf16.msra.mxu0 %v697
        %1153 = vmatprep.subr.bf16.mxu0 %v666
        %1154 = vmatpush1.bf16.msra.mxu0 %v665
        %1155 = vmatprep.subr.bf16.mxu0 %v634
        %1156 = vmatpush1.bf16.msra.mxu0 %v633
        %1157 = vmatprep.subr.bf16.mxu0 0
        %1158 = vmatpush2.bf16.msra.mxu0 0
        %1159 = vmatprep.subr.bf16.mxu0 0
        %1160 = vmatpush2.bf16.msra.mxu0 0
        %1161 = vmatprep.subr.bf16.mxu0 0
        %1162 = vmatpush2.bf16.msra.mxu0 0
        %1163 = vmatprep.subr.bf16.mxu0 0
        %1164 = vmatpush2.bf16.msra.mxu0 0
        %1165 = vmatprep.subr.bf16.mxu0 0
        %1166 = vmatpush2.bf16.msra.mxu0 0
        %1167 = vmatprep.subr.bf16.mxu0 0
        %1168 = vmatpush2.bf16.msra.mxu0 0
        %1169 = vmatprep.subr.bf16.mxu0 0
        %1170 = vmatpush2.bf16.msra.mxu0 0
        %1171 = vmatprep.subr.bf16.mxu0 0
        %1172 = vmatpush2.bf16.msra.mxu0 0
        %1173 = vmatprep.mubr.bf16.mxu0 0
        %1174 = vmatmul.mubr.bf16.gmra.mxu0 %v811
        %v1175 = vpop.f32.mrf.mxu0
        %v1176 = vadd.f32 0.0, %v1175
        %v1177 = vpop.f32.mrf.mxu0
        %v1178 = vadd.f32 0.0, %v1177
        %v1179 = vpop.f32.mrf.mxu0
        %v1180 = vpop.f32.mrf.mxu0
        %1181 = vdwg.mxu0
        %1182 = vmatprep.subr.bf16.mxu0 0
        %1183 = vmatpush1.bf16.msra.mxu0 0
        %1184 = vmatprep.subr.bf16.mxu0 0
        %1185 = vmatpush1.bf16.msra.mxu0 0
        %1186 = vmatprep.subr.bf16.mxu0 0
        %1187 = vmatpush1.bf16.msra.mxu0 0
        %1188 = vmatprep.subr.bf16.mxu0 0
        %1189 = vmatpush1.bf16.msra.mxu0 0
        %1190 = vmatprep.subr.bf16.mxu0 0
        %1191 = vmatpush1.bf16.msra.mxu0 0
        %1192 = vmatprep.subr.bf16.mxu0 %v700
        %1193 = vmatpush1.bf16.msra.mxu0 %v699
        %1194 = vmatprep.subr.bf16.mxu0 %v668
        %1195 = vmatpush1.bf16.msra.mxu0 %v667
        %1196 = vmatprep.subr.bf16.mxu0 %v636
        %1197 = vmatpush1.bf16.msra.mxu0 %v635
        %1198 = vmatprep.subr.bf16.mxu0 0
        %1199 = vmatpush2.bf16.msra.mxu0 0
        %1200 = vmatprep.subr.bf16.mxu0 0
        %1201 = vmatpush2.bf16.msra.mxu0 0
        %1202 = vmatprep.subr.bf16.mxu0 0
        %1203 = vmatpush2.bf16.msra.mxu0 0
        %1204 = vmatprep.subr.bf16.mxu0 0
        %1205 = vmatpush2.bf16.msra.mxu0 0
        %1206 = vmatprep.subr.bf16.mxu0 0
        %1207 = vmatpush2.bf16.msra.mxu0 0
        %1208 = vmatprep.subr.bf16.mxu0 0
        %1209 = vmatpush2.bf16.msra.mxu0 0
        %1210 = vmatprep.subr.bf16.mxu0 0
        %1211 = vmatpush2.bf16.msra.mxu0 0
        %1212 = vmatprep.subr.bf16.mxu0 0
        %1213 = vmatpush2.bf16.msra.mxu0 0
        %1214 = vmatprep.mubr.bf16.mxu0 0
        %1215 = vmatmul.mubr.bf16.gmra.mxu0 %v811
        %v1216 = vpop.f32.mrf.mxu0
        %v1217 = vadd.f32 0.0, %v1216
        %v1218 = vpop.f32.mrf.mxu0
        %v1219 = vadd.f32 0.0, %v1218
        %v1220 = vpop.f32.mrf.mxu0
        %v1221 = vpop.f32.mrf.mxu0
        %1222 = vdwg.mxu0
        %1223 = vmatprep.subr.bf16.mxu0 0
        %1224 = vmatpush1.bf16.msra.mxu0 0
        %1225 = vmatprep.subr.bf16.mxu0 0
        %1226 = vmatpush1.bf16.msra.mxu0 0
        %1227 = vmatprep.subr.bf16.mxu0 0
        %1228 = vmatpush1.bf16.msra.mxu0 0
        %1229 = vmatprep.subr.bf16.mxu0 0
        %1230 = vmatpush1.bf16.msra.mxu0 0
        %1231 = vmatprep.subr.bf16.mxu0 0
        %1232 = vmatpush1.bf16.msra.mxu0 0
        %1233 = vmatprep.subr.bf16.mxu0 %v702
        %1234 = vmatpush1.bf16.msra.mxu0 %v701
        %1235 = vmatprep.subr.bf16.mxu0 %v670
        %1236 = vmatpush1.bf16.msra.mxu0 %v669
        %1237 = vmatprep.subr.bf16.mxu0 %v638
        %1238 = vmatpush1.bf16.msra.mxu0 %v637
        %1239 = vmatprep.subr.bf16.mxu0 0
        %1240 = vmatpush2.bf16.msra.mxu0 0
        %1241 = vmatprep.subr.bf16.mxu0 0
        %1242 = vmatpush2.bf16.msra.mxu0 0
        %1243 = vmatprep.subr.bf16.mxu0 0
        %1244 = vmatpush2.bf16.msra.mxu0 0
        %1245 = vmatprep.subr.bf16.mxu0 0
        %1246 = vmatpush2.bf16.msra.mxu0 0
        %1247 = vmatprep.subr.bf16.mxu0 0
        %1248 = vmatpush2.bf16.msra.mxu0 0
        %1249 = vmatprep.subr.bf16.mxu0 0
        %1250 = vmatpush2.bf16.msra.mxu0 0
        %1251 = vmatprep.subr.bf16.mxu0 0
        %1252 = vmatpush2.bf16.msra.mxu0 0
        %1253 = vmatprep.subr.bf16.mxu0 0
        %1254 = vmatpush2.bf16.msra.mxu0 0
        %1255 = vmatprep.mubr.bf16.mxu0 0
        %1256 = vmatmul.mubr.bf16.gmra.mxu0 %v811
        %v1257 = vpop.f32.mrf.mxu0
        %v1258 = vadd.f32 0.0, %v1257
        %v1259 = vpop.f32.mrf.mxu0
        %v1260 = vadd.f32 0.0, %v1259
        %v1261 = vpop.f32.mrf.mxu0
        %v1262 = vpop.f32.mrf.mxu0
        %1263 = vdwg.mxu0
        %1264 = vmatprep.subr.bf16.mxu0 0
        %1265 = vmatpush1.bf16.msra.mxu0 0
        %1266 = vmatprep.subr.bf16.mxu0 0
        %1267 = vmatpush1.bf16.msra.mxu0 0
        %1268 = vmatprep.subr.bf16.mxu0 0
        %1269 = vmatpush1.bf16.msra.mxu0 0
        %1270 = vmatprep.subr.bf16.mxu0 0
        %1271 = vmatpush1.bf16.msra.mxu0 0
        %1272 = vmatprep.subr.bf16.mxu0 0
        %1273 = vmatpush1.bf16.msra.mxu0 0
        %1274 = vmatprep.subr.bf16.mxu0 %v704
        %1275 = vmatpush1.bf16.msra.mxu0 %v703
        %1276 = vmatprep.subr.bf16.mxu0 %v672
        %1277 = vmatpush1.bf16.msra.mxu0 %v671
        %1278 = vmatprep.subr.bf16.mxu0 %v640
        %1279 = vmatpush1.bf16.msra.mxu0 %v639
        %1280 = vmatprep.subr.bf16.mxu0 0
        %1281 = vmatpush2.bf16.msra.mxu0 0
        %1282 = vmatprep.subr.bf16.mxu0 0
        %1283 = vmatpush2.bf16.msra.mxu0 0
        %1284 = vmatprep.subr.bf16.mxu0 0
        %1285 = vmatpush2.bf16.msra.mxu0 0
        %1286 = vmatprep.subr.bf16.mxu0 0
        %1287 = vmatpush2.bf16.msra.mxu0 0
        %1288 = vmatprep.subr.bf16.mxu0 0
        %1289 = vmatpush2.bf16.msra.mxu0 0
        %1290 = vmatprep.subr.bf16.mxu0 0
        %1291 = vmatpush2.bf16.msra.mxu0 0
        %1292 = vmatprep.subr.bf16.mxu0 0
        %1293 = vmatpush2.bf16.msra.mxu0 0
        %1294 = vmatprep.subr.bf16.mxu0 0
        %1295 = vmatpush2.bf16.msra.mxu0 0
        %1296 = vmatprep.mubr.bf16.mxu0 0
        %1297 = vmatmul.mubr.bf16.gmra.mxu0 %v811
        %v1298 = vpop.f32.mrf.mxu0
        %v1299 = vadd.f32 0.0, %v1298
        %v1300 = vpop.f32.mrf.mxu0
        %v1301 = vadd.f32 0.0, %v1300
        %v1302 = vpop.f32.mrf.mxu0
        %v1303 = vpop.f32.mrf.mxu0
        %1304 = vdwg.mxu0
        %1305 = vmatprep.subr.bf16.mxu0 0
        %1306 = vmatpush1.bf16.msra.mxu0 0
        %1307 = vmatprep.subr.bf16.mxu0 0
        %1308 = vmatpush1.bf16.msra.mxu0 0
        %1309 = vmatprep.subr.bf16.mxu0 0
        %1310 = vmatpush1.bf16.msra.mxu0 0
        %1311 = vmatprep.subr.bf16.mxu0 0
        %1312 = vmatpush1.bf16.msra.mxu0 0
        %1313 = vmatprep.subr.bf16.mxu0 0
        %1314 = vmatpush1.bf16.msra.mxu0 0
        %1315 = vmatprep.subr.bf16.mxu0 %v706
        %1316 = vmatpush1.bf16.msra.mxu0 %v705
        %1317 = vmatprep.subr.bf16.mxu0 %v674
        %1318 = vmatpush1.bf16.msra.mxu0 %v673
        %1319 = vmatprep.subr.bf16.mxu0 %v642
        %1320 = vmatpush1.bf16.msra.mxu0 %v641
        %1321 = vmatprep.subr.bf16.mxu0 0
        %1322 = vmatpush2.bf16.msra.mxu0 0
        %1323 = vmatprep.subr.bf16.mxu0 0
        %1324 = vmatpush2.bf16.msra.mxu0 0
        %1325 = vmatprep.subr.bf16.mxu0 0
        %1326 = vmatpush2.bf16.msra.mxu0 0
        %1327 = vmatprep.subr.bf16.mxu0 0
        %1328 = vmatpush2.bf16.msra.mxu0 0
        %1329 = vmatprep.subr.bf16.mxu0 0
        %1330 = vmatpush2.bf16.msra.mxu0 0
        %1331 = vmatprep.subr.bf16.mxu0 0
        %1332 = vmatpush2.bf16.msra.mxu0 0
        %1333 = vmatprep.subr.bf16.mxu0 0
        %1334 = vmatpush2.bf16.msra.mxu0 0
        %1335 = vmatprep.subr.bf16.mxu0 0
        %1336 = vmatpush2.bf16.msra.mxu0 0
        %1337 = vmatprep.mubr.bf16.mxu0 0
        %1338 = vmatmul.mubr.bf16.gmra.mxu0 %v811
        %v1339 = vpop.f32.mrf.mxu0
        %v1340 = vadd.f32 0.0, %v1339
        %v1341 = vpop.f32.mrf.mxu0
        %v1342 = vadd.f32 0.0, %v1341
        %v1343 = vpop.f32.mrf.mxu0
        %v1344 = vpop.f32.mrf.mxu0
        %1345 = vdwg.mxu0
        %1346 = vmatprep.subr.bf16.mxu0 0
        %1347 = vmatpush1.bf16.msra.mxu0 0
        %1348 = vmatprep.subr.bf16.mxu0 0
        %1349 = vmatpush1.bf16.msra.mxu0 0
        %1350 = vmatprep.subr.bf16.mxu0 0
        %1351 = vmatpush1.bf16.msra.mxu0 0
        %1352 = vmatprep.subr.bf16.mxu0 0
        %1353 = vmatpush1.bf16.msra.mxu0 0
        %1354 = vmatprep.subr.bf16.mxu0 0
        %1355 = vmatpush1.bf16.msra.mxu0 0
        %1356 = vmatprep.subr.bf16.mxu0 %v708
        %1357 = vmatpush1.bf16.msra.mxu0 %v707
        %1358 = vmatprep.subr.bf16.mxu0 %v676
        %1359 = vmatpush1.bf16.msra.mxu0 %v675
        %1360 = vmatprep.subr.bf16.mxu0 %v644
        %1361 = vmatpush1.bf16.msra.mxu0 %v643
        %1362 = vmatprep.subr.bf16.mxu0 0
        %1363 = vmatpush2.bf16.msra.mxu0 0
        %1364 = vmatprep.subr.bf16.mxu0 0
        %1365 = vmatpush2.bf16.msra.mxu0 0
        %1366 = vmatprep.subr.bf16.mxu0 0
        %1367 = vmatpush2.bf16.msra.mxu0 0
        %1368 = vmatprep.subr.bf16.mxu0 0
        %1369 = vmatpush2.bf16.msra.mxu0 0
        %1370 = vmatprep.subr.bf16.mxu0 0
        %1371 = vmatpush2.bf16.msra.mxu0 0
        %1372 = vmatprep.subr.bf16.mxu0 0
        %1373 = vmatpush2.bf16.msra.mxu0 0
        %1374 = vmatprep.subr.bf16.mxu0 0
        %1375 = vmatpush2.bf16.msra.mxu0 0
        %1376 = vmatprep.subr.bf16.mxu0 0
        %1377 = vmatpush2.bf16.msra.mxu0 0
        %1378 = vmatprep.mubr.bf16.mxu0 0
        %1379 = vmatmul.mubr.bf16.gmra.mxu0 %v811
        %v1380 = vpop.f32.mrf.mxu0
        %v1381 = vadd.f32 0.0, %v1380
        %v1382 = vpop.f32.mrf.mxu0
        %v1383 = vadd.f32 0.0, %v1382
        %v1384 = vpop.f32.mrf.mxu0
        %v1385 = vpop.f32.mrf.mxu0
        %1386 = vdwg.mxu0
        %1387 = vmatprep.subr.bf16.mxu0 0
        %1388 = vmatpush1.bf16.msra.mxu0 0
        %1389 = vmatprep.subr.bf16.mxu0 0
        %1390 = vmatpush1.bf16.msra.mxu0 0
        %1391 = vmatprep.subr.bf16.mxu0 0
        %1392 = vmatpush1.bf16.msra.mxu0 0
        %1393 = vmatprep.subr.bf16.mxu0 0
        %1394 = vmatpush1.bf16.msra.mxu0 0
        %1395 = vmatprep.subr.bf16.mxu0 0
        %1396 = vmatpush1.bf16.msra.mxu0 0
        %1397 = vmatprep.subr.bf16.mxu0 %v710
        %1398 = vmatpush1.bf16.msra.mxu0 %v709
        %1399 = vmatprep.subr.bf16.mxu0 %v678
        %1400 = vmatpush1.bf16.msra.mxu0 %v677
        %1401 = vmatprep.subr.bf16.mxu0 %v646
        %1402 = vmatpush1.bf16.msra.mxu0 %v645
        %1403 = vmatprep.subr.bf16.mxu0 0
        %1404 = vmatpush2.bf16.msra.mxu0 0
        %1405 = vmatprep.subr.bf16.mxu0 0
        %1406 = vmatpush2.bf16.msra.mxu0 0
        %1407 = vmatprep.subr.bf16.mxu0 0
        %1408 = vmatpush2.bf16.msra.mxu0 0
        %1409 = vmatprep.subr.bf16.mxu0 0
        %1410 = vmatpush2.bf16.msra.mxu0 0
        %1411 = vmatprep.subr.bf16.mxu0 0
        %1412 = vmatpush2.bf16.msra.mxu0 0
        %1413 = vmatprep.subr.bf16.mxu0 0
        %1414 = vmatpush2.bf16.msra.mxu0 0
        %1415 = vmatprep.subr.bf16.mxu0 0
        %1416 = vmatpush2.bf16.msra.mxu0 0
        %1417 = vmatprep.subr.bf16.mxu0 0
        %1418 = vmatpush2.bf16.msra.mxu0 0
        %1419 = vmatprep.mubr.bf16.mxu0 0
        %1420 = vmatmul.mubr.bf16.gmra.mxu0 %v811
        %v1421 = vpop.f32.mrf.mxu0
        %v1422 = vadd.f32 0.0, %v1421
        %v1423 = vpop.f32.mrf.mxu0
        %v1424 = vadd.f32 0.0, %v1423
        %v1425 = vpop.f32.mrf.mxu0
        %v1426 = vpop.f32.mrf.mxu0
        %1427 = vdwg.mxu0
        %1428 = vmatprep.subr.bf16.mxu0 0
        %1429 = vmatpush1.bf16.msra.mxu0 0
        %1430 = vmatprep.subr.bf16.mxu0 0
        %1431 = vmatpush1.bf16.msra.mxu0 0
        %1432 = vmatprep.subr.bf16.mxu0 0
        %1433 = vmatpush1.bf16.msra.mxu0 0
        %1434 = vmatprep.subr.bf16.mxu0 0
        %1435 = vmatpush1.bf16.msra.mxu0 0
        %1436 = vmatprep.subr.bf16.mxu0 0
        %1437 = vmatpush1.bf16.msra.mxu0 0
        %1438 = vmatprep.subr.bf16.mxu0 %v712
        %1439 = vmatpush1.bf16.msra.mxu0 %v711
        %1440 = vmatprep.subr.bf16.mxu0 %v680
        %1441 = vmatpush1.bf16.msra.mxu0 %v679
        %1442 = vmatprep.subr.bf16.mxu0 %v648
        %1443 = vmatpush1.bf16.msra.mxu0 %v647
        %1444 = vmatprep.subr.bf16.mxu0 0
        %1445 = vmatpush2.bf16.msra.mxu0 0
        %1446 = vmatprep.subr.bf16.mxu0 0
        %1447 = vmatpush2.bf16.msra.mxu0 0
        %1448 = vmatprep.subr.bf16.mxu0 0
        %1449 = vmatpush2.bf16.msra.mxu0 0
        %1450 = vmatprep.subr.bf16.mxu0 0
        %1451 = vmatpush2.bf16.msra.mxu0 0
        %1452 = vmatprep.subr.bf16.mxu0 0
        %1453 = vmatpush2.bf16.msra.mxu0 0
        %1454 = vmatprep.subr.bf16.mxu0 0
        %1455 = vmatpush2.bf16.msra.mxu0 0
        %1456 = vmatprep.subr.bf16.mxu0 0
        %1457 = vmatpush2.bf16.msra.mxu0 0
        %1458 = vmatprep.subr.bf16.mxu0 0
        %1459 = vmatpush2.bf16.msra.mxu0 0
        %1460 = vmatprep.mubr.bf16.mxu0 0
        %1461 = vmatmul.mubr.bf16.gmra.mxu0 %v811
        %v1462 = vpop.f32.mrf.mxu0
        %v1463 = vadd.f32 0.0, %v1462
        %v1464 = vpop.f32.mrf.mxu0
        %v1465 = vadd.f32 0.0, %v1464
        %v1466 = vpop.f32.mrf.mxu0
        %v1467 = vpop.f32.mrf.mxu0
        %1468 = vdwg.mxu0
        %s1469 = scalar_lea.vmem %s187, 768 [#allocation2]
        %v1470 = vld [vmem:[%s1469] sm:$0xff]
        %v1471 = vld [vmem:[%s1469 + $0x8] sm:$0xff]
        %v1472 = vld [vmem:[%s1469 + $0x10] sm:$0xff]
        %v1473 = vld [vmem:[%s1469 + $0x18] sm:$0xff]
        %v1474 = vld [vmem:[%s1469 + $0x20] sm:$0xff]
        %v1475 = vld [vmem:[%s1469 + $0x28] sm:$0xff]
        %v1476 = vld [vmem:[%s1469 + $0x30] sm:$0xff]
        %v1477 = vld [vmem:[%s1469 + $0x38] sm:$0xff]
        %v1478 = vld [vmem:[%s1469 + $0x40] sm:$0xff]
        %v1479 = vld [vmem:[%s1469 + $0x48] sm:$0xff]
        %v1480 = vld [vmem:[%s1469 + $0x50] sm:$0xff]
        %v1481 = vld [vmem:[%s1469 + $0x58] sm:$0xff]
        %v1482 = vld [vmem:[%s1469 + $0x60] sm:$0xff]
        %v1483 = vld [vmem:[%s1469 + $0x68] sm:$0xff]
        %v1484 = vld [vmem:[%s1469 + $0x70] sm:$0xff]
        %v1485 = vld [vmem:[%s1469 + $0x78] sm:$0xff]
        %v1486 = vld [vmem:[%s1469 + $0x80] sm:$0xff]
        %v1487 = vld [vmem:[%s1469 + $0x88] sm:$0xff]
        %v1488 = vld [vmem:[%s1469 + $0x90] sm:$0xff]
        %v1489 = vld [vmem:[%s1469 + $0x98] sm:$0xff]
        %v1490 = vld [vmem:[%s1469 + $0xa0] sm:$0xff]
        %v1491 = vld [vmem:[%s1469 + $0xa8] sm:$0xff]
        %v1492 = vld [vmem:[%s1469 + $0xb0] sm:$0xff]
        %v1493 = vld [vmem:[%s1469 + $0xb8] sm:$0xff]
        %v1494 = vld [vmem:[%s1469 + $0xc0] sm:$0xff]
        %v1495 = vld [vmem:[%s1469 + $0xc8] sm:$0xff]
        %v1496 = vld [vmem:[%s1469 + $0xd0] sm:$0xff]
        %v1497 = vld [vmem:[%s1469 + $0xd8] sm:$0xff]
        %v1498 = vld [vmem:[%s1469 + $0xe0] sm:$0xff]
        %v1499 = vld [vmem:[%s1469 + $0xe8] sm:$0xff]
        %v1500 = vld [vmem:[%s1469 + $0xf0] sm:$0xff]
        %v1501 = vld [vmem:[%s1469 + $0xf8] sm:$0xff]
        %v1502 = vld [vmem:[%s1469 + $0x100] sm:$0xff]
        %v1503 = vld [vmem:[%s1469 + $0x108] sm:$0xff]
        %v1504 = vld [vmem:[%s1469 + $0x110] sm:$0xff]
        %v1505 = vld [vmem:[%s1469 + $0x118] sm:$0xff]
        %v1506 = vld [vmem:[%s1469 + $0x120] sm:$0xff]
        %v1507 = vld [vmem:[%s1469 + $0x128] sm:$0xff]
        %v1508 = vld [vmem:[%s1469 + $0x130] sm:$0xff]
        %v1509 = vld [vmem:[%s1469 + $0x138] sm:$0xff]
        %v1510 = vld [vmem:[%s1469 + $0x140] sm:$0xff]
        %v1511 = vld [vmem:[%s1469 + $0x148] sm:$0xff]
        %v1512 = vld [vmem:[%s1469 + $0x150] sm:$0xff]
        %v1513 = vld [vmem:[%s1469 + $0x158] sm:$0xff]
        %v1514 = vld [vmem:[%s1469 + $0x160] sm:$0xff]
        %v1515 = vld [vmem:[%s1469 + $0x168] sm:$0xff]
        %v1516 = vld [vmem:[%s1469 + $0x170] sm:$0xff]
        %v1517 = vld [vmem:[%s1469 + $0x178] sm:$0xff]
        %v1518 = vld [vmem:[%s1469 + $0x180] sm:$0xff]
        %v1519 = vld [vmem:[%s1469 + $0x188] sm:$0xff]
        %v1520 = vld [vmem:[%s1469 + $0x190] sm:$0xff]
        %v1521 = vld [vmem:[%s1469 + $0x198] sm:$0xff]
        %v1522 = vld [vmem:[%s1469 + $0x1a0] sm:$0xff]
        %v1523 = vld [vmem:[%s1469 + $0x1a8] sm:$0xff]
        %v1524 = vld [vmem:[%s1469 + $0x1b0] sm:$0xff]
        %v1525 = vld [vmem:[%s1469 + $0x1b8] sm:$0xff]
        %v1526 = vld [vmem:[%s1469 + $0x1c0] sm:$0xff]
        %v1527 = vld [vmem:[%s1469 + $0x1c8] sm:$0xff]
        %v1528 = vld [vmem:[%s1469 + $0x1d0] sm:$0xff]
        %v1529 = vld [vmem:[%s1469 + $0x1d8] sm:$0xff]
        %v1530 = vld [vmem:[%s1469 + $0x1e0] sm:$0xff]
        %v1531 = vld [vmem:[%s1469 + $0x1e8] sm:$0xff]
        %v1532 = vld [vmem:[%s1469 + $0x1f0] sm:$0xff]
        %v1533 = vld [vmem:[%s1469 + $0x1f8] sm:$0xff]
        %v1534 = vld [vmem:[%s1469 + $0x200] sm:$0xff]
        %v1535 = vld [vmem:[%s1469 + $0x208] sm:$0xff]
        %v1536 = vld [vmem:[%s1469 + $0x210] sm:$0xff]
        %v1537 = vld [vmem:[%s1469 + $0x218] sm:$0xff]
        %v1538 = vld [vmem:[%s1469 + $0x220] sm:$0xff]
        %v1539 = vld [vmem:[%s1469 + $0x228] sm:$0xff]
        %v1540 = vld [vmem:[%s1469 + $0x230] sm:$0xff]
        %v1541 = vld [vmem:[%s1469 + $0x238] sm:$0xff]
        %v1542 = vld [vmem:[%s1469 + $0x240] sm:$0xff]
        %v1543 = vld [vmem:[%s1469 + $0x248] sm:$0xff]
        %v1544 = vld [vmem:[%s1469 + $0x250] sm:$0xff]
        %v1545 = vld [vmem:[%s1469 + $0x258] sm:$0xff]
        %v1546 = vld [vmem:[%s1469 + $0x260] sm:$0xff]
        %v1547 = vld [vmem:[%s1469 + $0x268] sm:$0xff]
        %v1548 = vld [vmem:[%s1469 + $0x270] sm:$0xff]
        %v1549 = vld [vmem:[%s1469 + $0x278] sm:$0xff]
        %v1550 = vld [vmem:[%s1469 + $0x280] sm:$0xff]
        %v1551 = vld [vmem:[%s1469 + $0x288] sm:$0xff]
        %v1552 = vld [vmem:[%s1469 + $0x290] sm:$0xff]
        %v1553 = vld [vmem:[%s1469 + $0x298] sm:$0xff]
        %v1554 = vld [vmem:[%s1469 + $0x2a0] sm:$0xff]
        %v1555 = vld [vmem:[%s1469 + $0x2a8] sm:$0xff]
        %v1556 = vld [vmem:[%s1469 + $0x2b0] sm:$0xff]
        %v1557 = vld [vmem:[%s1469 + $0x2b8] sm:$0xff]
        %v1558 = vld [vmem:[%s1469 + $0x2c0] sm:$0xff]
        %v1559 = vld [vmem:[%s1469 + $0x2c8] sm:$0xff]
        %v1560 = vld [vmem:[%s1469 + $0x2d0] sm:$0xff]
        %v1561 = vld [vmem:[%s1469 + $0x2d8] sm:$0xff]
        %v1562 = vld [vmem:[%s1469 + $0x2e0] sm:$0xff]
        %v1563 = vld [vmem:[%s1469 + $0x2e8] sm:$0xff]
        %v1564 = vld [vmem:[%s1469 + $0x2f0] sm:$0xff]
        %v1565 = vld [vmem:[%s1469 + $0x2f8] sm:$0xff]
        %v1662 = vunpack.c.l.b16 %v1470
        %v1663 = vunpack.c.h.b16 %v1470
        %v1664 = vunpack.c.l.b16 %v1471
        %v1665 = vunpack.c.h.b16 %v1471
        %v1666 = vunpack.c.l.b16 %v1472
        %v1667 = vunpack.c.h.b16 %v1472
        %v1668 = vunpack.c.l.b16 %v1473
        %v1669 = vunpack.c.h.b16 %v1473
        %v1670 = vunpack.c.l.b16 %v1474
        %v1671 = vunpack.c.h.b16 %v1474
        %v1672 = vunpack.c.l.b16 %v1475
        %v1673 = vunpack.c.h.b16 %v1475
        %v1674 = vunpack.c.l.b16 %v1476
        %v1675 = vunpack.c.h.b16 %v1476
        %v1676 = vunpack.c.l.b16 %v1477
        %v1677 = vunpack.c.h.b16 %v1477
        %v1678 = vunpack.c.l.b16 %v1478
        %v1679 = vunpack.c.h.b16 %v1478
        %v1680 = vunpack.c.l.b16 %v1479
        %v1681 = vunpack.c.h.b16 %v1479
        %v1682 = vunpack.c.l.b16 %v1480
        %v1683 = vunpack.c.h.b16 %v1480
        %v1684 = vunpack.c.l.b16 %v1481
        %v1685 = vunpack.c.h.b16 %v1481
        %v1686 = vunpack.c.l.b16 %v1482
        %v1687 = vunpack.c.h.b16 %v1482
        %v1688 = vunpack.c.l.b16 %v1483
        %v1689 = vunpack.c.h.b16 %v1483
        %v1690 = vunpack.c.l.b16 %v1484
        %v1691 = vunpack.c.h.b16 %v1484
        %v1692 = vunpack.c.l.b16 %v1485
        %v1693 = vunpack.c.h.b16 %v1485
        %v1694 = vunpack.c.l.b16 %v1486
        %v1695 = vunpack.c.h.b16 %v1486
        %v1696 = vunpack.c.l.b16 %v1487
        %v1697 = vunpack.c.h.b16 %v1487
        %v1698 = vunpack.c.l.b16 %v1488
        %v1699 = vunpack.c.h.b16 %v1488
        %v1700 = vunpack.c.l.b16 %v1489
        %v1701 = vunpack.c.h.b16 %v1489
        %v1702 = vunpack.c.l.b16 %v1490
        %v1703 = vunpack.c.h.b16 %v1490
        %v1704 = vunpack.c.l.b16 %v1491
        %v1705 = vunpack.c.h.b16 %v1491
        %v1706 = vunpack.c.l.b16 %v1492
        %v1707 = vunpack.c.h.b16 %v1492
        %v1708 = vunpack.c.l.b16 %v1493
        %v1709 = vunpack.c.h.b16 %v1493
        %v1710 = vunpack.c.l.b16 %v1494
        %v1711 = vunpack.c.h.b16 %v1494
        %v1712 = vunpack.c.l.b16 %v1495
        %v1713 = vunpack.c.h.b16 %v1495
        %v1714 = vunpack.c.l.b16 %v1496
        %v1715 = vunpack.c.h.b16 %v1496
        %v1716 = vunpack.c.l.b16 %v1497
        %v1717 = vunpack.c.h.b16 %v1497
        %v1718 = vunpack.c.l.b16 %v1498
        %v1719 = vunpack.c.h.b16 %v1498
        %v1720 = vunpack.c.l.b16 %v1499
        %v1721 = vunpack.c.h.b16 %v1499
        %v1722 = vunpack.c.l.b16 %v1500
        %v1723 = vunpack.c.h.b16 %v1500
        %v1724 = vunpack.c.l.b16 %v1501
        %v1725 = vunpack.c.h.b16 %v1501
        %v1726 = vunpack.c.l.b16 %v1502
        %v1727 = vunpack.c.h.b16 %v1502
        %v1728 = vunpack.c.l.b16 %v1503
        %v1729 = vunpack.c.h.b16 %v1503
        %v1730 = vunpack.c.l.b16 %v1504
        %v1731 = vunpack.c.h.b16 %v1504
        %v1732 = vunpack.c.l.b16 %v1505
        %v1733 = vunpack.c.h.b16 %v1505
        %v1734 = vunpack.c.l.b16 %v1506
        %v1735 = vunpack.c.h.b16 %v1506
        %v1736 = vunpack.c.l.b16 %v1507
        %v1737 = vunpack.c.h.b16 %v1507
        %v1738 = vunpack.c.l.b16 %v1508
        %v1739 = vunpack.c.h.b16 %v1508
        %v1740 = vunpack.c.l.b16 %v1509
        %v1741 = vunpack.c.h.b16 %v1509
        %v1742 = vunpack.c.l.b16 %v1510
        %v1743 = vunpack.c.h.b16 %v1510
        %v1744 = vunpack.c.l.b16 %v1511
        %v1745 = vunpack.c.h.b16 %v1511
        %v1746 = vunpack.c.l.b16 %v1512
        %v1747 = vunpack.c.h.b16 %v1512
        %v1748 = vunpack.c.l.b16 %v1513
        %v1749 = vunpack.c.h.b16 %v1513
        %v1750 = vunpack.c.l.b16 %v1514
        %v1751 = vunpack.c.h.b16 %v1514
        %v1752 = vunpack.c.l.b16 %v1515
        %v1753 = vunpack.c.h.b16 %v1515
        %v1754 = vunpack.c.l.b16 %v1516
        %v1755 = vunpack.c.h.b16 %v1516
        %v1756 = vunpack.c.l.b16 %v1517
        %v1757 = vunpack.c.h.b16 %v1517
        %v1758 = vunpack.c.l.b16 %v1518
        %v1759 = vunpack.c.h.b16 %v1518
        %v1760 = vunpack.c.l.b16 %v1519
        %v1761 = vunpack.c.h.b16 %v1519
        %v1762 = vunpack.c.l.b16 %v1520
        %v1763 = vunpack.c.h.b16 %v1520
        %v1764 = vunpack.c.l.b16 %v1521
        %v1765 = vunpack.c.h.b16 %v1521
        %v1766 = vunpack.c.l.b16 %v1522
        %v1767 = vunpack.c.h.b16 %v1522
        %v1768 = vunpack.c.l.b16 %v1523
        %v1769 = vunpack.c.h.b16 %v1523
        %v1770 = vunpack.c.l.b16 %v1524
        %v1771 = vunpack.c.h.b16 %v1524
        %v1772 = vunpack.c.l.b16 %v1525
        %v1773 = vunpack.c.h.b16 %v1525
        %v1774 = vunpack.c.l.b16 %v1526
        %v1775 = vunpack.c.h.b16 %v1526
        %v1776 = vunpack.c.l.b16 %v1527
        %v1777 = vunpack.c.h.b16 %v1527
        %v1778 = vunpack.c.l.b16 %v1528
        %v1779 = vunpack.c.h.b16 %v1528
        %v1780 = vunpack.c.l.b16 %v1529
        %v1781 = vunpack.c.h.b16 %v1529
        %v1782 = vunpack.c.l.b16 %v1530
        %v1783 = vunpack.c.h.b16 %v1530
        %v1784 = vunpack.c.l.b16 %v1531
        %v1785 = vunpack.c.h.b16 %v1531
        %v1786 = vunpack.c.l.b16 %v1532
        %v1787 = vunpack.c.h.b16 %v1532
        %v1788 = vunpack.c.l.b16 %v1533
        %v1789 = vunpack.c.h.b16 %v1533
        %v1790 = vunpack.c.l.b16 %v1534
        %v1791 = vunpack.c.h.b16 %v1534
        %v1792 = vunpack.c.l.b16 %v1535
        %v1793 = vunpack.c.h.b16 %v1535
        %v1794 = vunpack.c.l.b16 %v1536
        %v1795 = vunpack.c.h.b16 %v1536
        %v1796 = vunpack.c.l.b16 %v1537
        %v1797 = vunpack.c.h.b16 %v1537
        %v1798 = vunpack.c.l.b16 %v1538
        %v1799 = vunpack.c.h.b16 %v1538
        %v1800 = vunpack.c.l.b16 %v1539
        %v1801 = vunpack.c.h.b16 %v1539
        %v1802 = vunpack.c.l.b16 %v1540
        %v1803 = vunpack.c.h.b16 %v1540
        %v1804 = vunpack.c.l.b16 %v1541
        %v1805 = vunpack.c.h.b16 %v1541
        %v1806 = vunpack.c.l.b16 %v1542
        %v1807 = vunpack.c.h.b16 %v1542
        %v1808 = vunpack.c.l.b16 %v1543
        %v1809 = vunpack.c.h.b16 %v1543
        %v1810 = vunpack.c.l.b16 %v1544
        %v1811 = vunpack.c.h.b16 %v1544
        %v1812 = vunpack.c.l.b16 %v1545
        %v1813 = vunpack.c.h.b16 %v1545
        %v1814 = vunpack.c.l.b16 %v1546
        %v1815 = vunpack.c.h.b16 %v1546
        %v1816 = vunpack.c.l.b16 %v1547
        %v1817 = vunpack.c.h.b16 %v1547
        %v1818 = vunpack.c.l.b16 %v1548
        %v1819 = vunpack.c.h.b16 %v1548
        %v1820 = vunpack.c.l.b16 %v1549
        %v1821 = vunpack.c.h.b16 %v1549
        %v1822 = vunpack.c.l.b16 %v1550
        %v1823 = vunpack.c.h.b16 %v1550
        %v1824 = vunpack.c.l.b16 %v1551
        %v1825 = vunpack.c.h.b16 %v1551
        %v1826 = vunpack.c.l.b16 %v1552
        %v1827 = vunpack.c.h.b16 %v1552
        %v1828 = vunpack.c.l.b16 %v1553
        %v1829 = vunpack.c.h.b16 %v1553
        %v1830 = vunpack.c.l.b16 %v1554
        %v1831 = vunpack.c.h.b16 %v1554
        %v1832 = vunpack.c.l.b16 %v1555
        %v1833 = vunpack.c.h.b16 %v1555
        %v1834 = vunpack.c.l.b16 %v1556
        %v1835 = vunpack.c.h.b16 %v1556
        %v1836 = vunpack.c.l.b16 %v1557
        %v1837 = vunpack.c.h.b16 %v1557
        %v1838 = vunpack.c.l.b16 %v1558
        %v1839 = vunpack.c.h.b16 %v1558
        %v1840 = vunpack.c.l.b16 %v1559
        %v1841 = vunpack.c.h.b16 %v1559
        %v1842 = vunpack.c.l.b16 %v1560
        %v1843 = vunpack.c.h.b16 %v1560
        %v1844 = vunpack.c.l.b16 %v1561
        %v1845 = vunpack.c.h.b16 %v1561
        %v1846 = vunpack.c.l.b16 %v1562
        %v1847 = vunpack.c.h.b16 %v1562
        %v1848 = vunpack.c.l.b16 %v1563
        %v1849 = vunpack.c.h.b16 %v1563
        %v1850 = vunpack.c.l.b16 %v1564
        %v1851 = vunpack.c.h.b16 %v1564
        %v1852 = vunpack.c.l.b16 %v1565
        %v1853 = vunpack.c.h.b16 %v1565
        %v1854 = vpack.c.b16 %v1694, %v1662
        %v1855 = vpack.c.b16 %v1695, %v1663
        %v1856 = vpack.c.b16 %v1696, %v1664
        %v1857 = vpack.c.b16 %v1697, %v1665
        %v1858 = vpack.c.b16 %v1698, %v1666
        %v1859 = vpack.c.b16 %v1699, %v1667
        %v1860 = vpack.c.b16 %v1700, %v1668
        %v1861 = vpack.c.b16 %v1701, %v1669
        %v1862 = vpack.c.b16 %v1702, %v1670
        %v1863 = vpack.c.b16 %v1703, %v1671
        %v1864 = vpack.c.b16 %v1704, %v1672
        %v1865 = vpack.c.b16 %v1705, %v1673
        %v1866 = vpack.c.b16 %v1706, %v1674
        %v1867 = vpack.c.b16 %v1707, %v1675
        %v1868 = vpack.c.b16 %v1708, %v1676
        %v1869 = vpack.c.b16 %v1709, %v1677
        %v1870 = vpack.c.b16 %v1710, %v1678
        %v1871 = vpack.c.b16 %v1711, %v1679
        %v1872 = vpack.c.b16 %v1712, %v1680
        %v1873 = vpack.c.b16 %v1713, %v1681
        %v1874 = vpack.c.b16 %v1714, %v1682
        %v1875 = vpack.c.b16 %v1715, %v1683
        %v1876 = vpack.c.b16 %v1716, %v1684
        %v1877 = vpack.c.b16 %v1717, %v1685
        %v1878 = vpack.c.b16 %v1718, %v1686
        %v1879 = vpack.c.b16 %v1719, %v1687
        %v1880 = vpack.c.b16 %v1720, %v1688
        %v1881 = vpack.c.b16 %v1721, %v1689
        %v1882 = vpack.c.b16 %v1722, %v1690
        %v1883 = vpack.c.b16 %v1723, %v1691
        %v1884 = vpack.c.b16 %v1724, %v1692
        %v1885 = vpack.c.b16 %v1725, %v1693
        %v1886 = vpack.c.b16 %v1758, %v1726
        %v1887 = vpack.c.b16 %v1759, %v1727
        %v1888 = vpack.c.b16 %v1760, %v1728
        %v1889 = vpack.c.b16 %v1761, %v1729
        %v1890 = vpack.c.b16 %v1762, %v1730
        %v1891 = vpack.c.b16 %v1763, %v1731
        %v1892 = vpack.c.b16 %v1764, %v1732
        %v1893 = vpack.c.b16 %v1765, %v1733
        %v1894 = vpack.c.b16 %v1766, %v1734
        %v1895 = vpack.c.b16 %v1767, %v1735
        %v1896 = vpack.c.b16 %v1768, %v1736
        %v1897 = vpack.c.b16 %v1769, %v1737
        %v1898 = vpack.c.b16 %v1770, %v1738
        %v1899 = vpack.c.b16 %v1771, %v1739
        %v1900 = vpack.c.b16 %v1772, %v1740
        %v1901 = vpack.c.b16 %v1773, %v1741
        %v1902 = vpack.c.b16 %v1774, %v1742
        %v1903 = vpack.c.b16 %v1775, %v1743
        %v1904 = vpack.c.b16 %v1776, %v1744
        %v1905 = vpack.c.b16 %v1777, %v1745
        %v1906 = vpack.c.b16 %v1778, %v1746
        %v1907 = vpack.c.b16 %v1779, %v1747
        %v1908 = vpack.c.b16 %v1780, %v1748
        %v1909 = vpack.c.b16 %v1781, %v1749
        %v1910 = vpack.c.b16 %v1782, %v1750
        %v1911 = vpack.c.b16 %v1783, %v1751
        %v1912 = vpack.c.b16 %v1784, %v1752
        %v1913 = vpack.c.b16 %v1785, %v1753
        %v1914 = vpack.c.b16 %v1786, %v1754
        %v1915 = vpack.c.b16 %v1787, %v1755
        %v1916 = vpack.c.b16 %v1788, %v1756
        %v1917 = vpack.c.b16 %v1789, %v1757
        %v1918 = vpack.c.b16 %v1822, %v1790
        %v1919 = vpack.c.b16 %v1823, %v1791
        %v1920 = vpack.c.b16 %v1824, %v1792
        %v1921 = vpack.c.b16 %v1825, %v1793
        %v1922 = vpack.c.b16 %v1826, %v1794
        %v1923 = vpack.c.b16 %v1827, %v1795
        %v1924 = vpack.c.b16 %v1828, %v1796
        %v1925 = vpack.c.b16 %v1829, %v1797
        %v1926 = vpack.c.b16 %v1830, %v1798
        %v1927 = vpack.c.b16 %v1831, %v1799
        %v1928 = vpack.c.b16 %v1832, %v1800
        %v1929 = vpack.c.b16 %v1833, %v1801
        %v1930 = vpack.c.b16 %v1834, %v1802
        %v1931 = vpack.c.b16 %v1835, %v1803
        %v1932 = vpack.c.b16 %v1836, %v1804
        %v1933 = vpack.c.b16 %v1837, %v1805
        %v1934 = vpack.c.b16 %v1838, %v1806
        %v1935 = vpack.c.b16 %v1839, %v1807
        %v1936 = vpack.c.b16 %v1840, %v1808
        %v1937 = vpack.c.b16 %v1841, %v1809
        %v1938 = vpack.c.b16 %v1842, %v1810
        %v1939 = vpack.c.b16 %v1843, %v1811
        %v1940 = vpack.c.b16 %v1844, %v1812
        %v1941 = vpack.c.b16 %v1845, %v1813
        %v1942 = vpack.c.b16 %v1846, %v1814
        %v1943 = vpack.c.b16 %v1847, %v1815
        %v1944 = vpack.c.b16 %v1848, %v1816
        %v1945 = vpack.c.b16 %v1849, %v1817
        %v1946 = vpack.c.b16 %v1850, %v1818
        %v1947 = vpack.c.b16 %v1851, %v1819
        %v1948 = vpack.c.b16 %v1852, %v1820
        %v1949 = vpack.c.b16 %v1853, %v1821
        %2046 = vmatprep.subr.bf16.mxu0 0
        %2047 = vmatpush1.bf16.msra.mxu0 0
        %2048 = vmatprep.subr.bf16.mxu0 0
        %2049 = vmatpush1.bf16.msra.mxu0 0
        %2050 = vmatprep.subr.bf16.mxu0 0
        %2051 = vmatpush1.bf16.msra.mxu0 0
        %2052 = vmatprep.subr.bf16.mxu0 0
        %2053 = vmatpush1.bf16.msra.mxu0 0
        %2054 = vmatprep.subr.bf16.mxu0 0
        %2055 = vmatpush1.bf16.msra.mxu0 0
        %2056 = vmatprep.subr.bf16.mxu0 %v1919
        %2057 = vmatpush1.bf16.msra.mxu0 %v1918
        %2058 = vmatprep.subr.bf16.mxu0 %v1887
        %2059 = vmatpush1.bf16.msra.mxu0 %v1886
        %2060 = vmatprep.subr.bf16.mxu0 %v1855
        %2061 = vmatpush1.bf16.msra.mxu0 %v1854
        %2062 = vmatprep.subr.bf16.mxu0 0
        %2063 = vmatpush2.bf16.msra.mxu0 0
        %2064 = vmatprep.subr.bf16.mxu0 0
        %2065 = vmatpush2.bf16.msra.mxu0 0
        %2066 = vmatprep.subr.bf16.mxu0 0
        %2067 = vmatpush2.bf16.msra.mxu0 0
        %2068 = vmatprep.subr.bf16.mxu0 0
        %2069 = vmatpush2.bf16.msra.mxu0 0
        %2070 = vmatprep.subr.bf16.mxu0 0
        %2071 = vmatpush2.bf16.msra.mxu0 0
        %2072 = vmatprep.subr.bf16.mxu0 0
        %2073 = vmatpush2.bf16.msra.mxu0 0
        %2074 = vmatprep.subr.bf16.mxu0 0
        %2075 = vmatpush2.bf16.msra.mxu0 0
        %2076 = vmatprep.subr.bf16.mxu0 0
        %2077 = vmatpush2.bf16.msra.mxu0 0
        %2078 = vmatprep.mubr.bf16.mxu0 0
        %2079 = vmatmul.mubr.bf16.gmra.mxu0 %v811
        %v2080 = vpop.f32.mrf.mxu0
        %v2081 = vadd.f32 0.0, %v2080
        %v2082 = vpop.f32.mrf.mxu0
        %v2083 = vadd.f32 0.0, %v2082
        %v2084 = vpop.f32.mrf.mxu0
        %v2085 = vpop.f32.mrf.mxu0
        %2086 = vdwg.mxu0
        %2087 = vmatprep.subr.bf16.mxu0 0
        %2088 = vmatpush1.bf16.msra.mxu0 0
        %2089 = vmatprep.subr.bf16.mxu0 0
        %2090 = vmatpush1.bf16.msra.mxu0 0
        %2091 = vmatprep.subr.bf16.mxu0 0
        %2092 = vmatpush1.bf16.msra.mxu0 0
        %2093 = vmatprep.subr.bf16.mxu0 0
        %2094 = vmatpush1.bf16.msra.mxu0 0
        %2095 = vmatprep.subr.bf16.mxu0 0
        %2096 = vmatpush1.bf16.msra.mxu0 0
        %2097 = vmatprep.subr.bf16.mxu0 %v1921
        %2098 = vmatpush1.bf16.msra.mxu0 %v1920
        %2099 = vmatprep.subr.bf16.mxu0 %v1889
        %2100 = vmatpush1.bf16.msra.mxu0 %v1888
        %2101 = vmatprep.subr.bf16.mxu0 %v1857
        %2102 = vmatpush1.bf16.msra.mxu0 %v1856
        %2103 = vmatprep.subr.bf16.mxu0 0
        %2104 = vmatpush2.bf16.msra.mxu0 0
        %2105 = vmatprep.subr.bf16.mxu0 0
        %2106 = vmatpush2.bf16.msra.mxu0 0
        %2107 = vmatprep.subr.bf16.mxu0 0
        %2108 = vmatpush2.bf16.msra.mxu0 0
        %2109 = vmatprep.subr.bf16.mxu0 0
        %2110 = vmatpush2.bf16.msra.mxu0 0
        %2111 = vmatprep.subr.bf16.mxu0 0
        %2112 = vmatpush2.bf16.msra.mxu0 0
        %2113 = vmatprep.subr.bf16.mxu0 0
        %2114 = vmatpush2.bf16.msra.mxu0 0
        %2115 = vmatprep.subr.bf16.mxu0 0
        %2116 = vmatpush2.bf16.msra.mxu0 0
        %2117 = vmatprep.subr.bf16.mxu0 0
        %2118 = vmatpush2.bf16.msra.mxu0 0
        %2119 = vmatprep.mubr.bf16.mxu0 0
        %2120 = vmatmul.mubr.bf16.gmra.mxu0 %v811
        %v2121 = vpop.f32.mrf.mxu0
        %v2122 = vadd.f32 0.0, %v2121
        %v2123 = vpop.f32.mrf.mxu0
        %v2124 = vadd.f32 0.0, %v2123
        %v2125 = vpop.f32.mrf.mxu0
        %v2126 = vpop.f32.mrf.mxu0
        %2127 = vdwg.mxu0
        %2128 = vmatprep.subr.bf16.mxu0 0
        %2129 = vmatpush1.bf16.msra.mxu0 0
        %2130 = vmatprep.subr.bf16.mxu0 0
        %2131 = vmatpush1.bf16.msra.mxu0 0
        %2132 = vmatprep.subr.bf16.mxu0 0
        %2133 = vmatpush1.bf16.msra.mxu0 0
        %2134 = vmatprep.subr.bf16.mxu0 0
        %2135 = vmatpush1.bf16.msra.mxu0 0
        %2136 = vmatprep.subr.bf16.mxu0 0
        %2137 = vmatpush1.bf16.msra.mxu0 0
        %2138 = vmatprep.subr.bf16.mxu0 %v1923
        %2139 = vmatpush1.bf16.msra.mxu0 %v1922
        %2140 = vmatprep.subr.bf16.mxu0 %v1891
        %2141 = vmatpush1.bf16.msra.mxu0 %v1890
        %2142 = vmatprep.subr.bf16.mxu0 %v1859
        %2143 = vmatpush1.bf16.msra.mxu0 %v1858
        %2144 = vmatprep.subr.bf16.mxu0 0
        %2145 = vmatpush2.bf16.msra.mxu0 0
        %2146 = vmatprep.subr.bf16.mxu0 0
        %2147 = vmatpush2.bf16.msra.mxu0 0
        %2148 = vmatprep.subr.bf16.mxu0 0
        %2149 = vmatpush2.bf16.msra.mxu0 0
        %2150 = vmatprep.subr.bf16.mxu0 0
        %2151 = vmatpush2.bf16.msra.mxu0 0
        %2152 = vmatprep.subr.bf16.mxu0 0
        %2153 = vmatpush2.bf16.msra.mxu0 0
        %2154 = vmatprep.subr.bf16.mxu0 0
        %2155 = vmatpush2.bf16.msra.mxu0 0
        %2156 = vmatprep.subr.bf16.mxu0 0
        %2157 = vmatpush2.bf16.msra.mxu0 0
        %2158 = vmatprep.subr.bf16.mxu0 0
        %2159 = vmatpush2.bf16.msra.mxu0 0
        %2160 = vmatprep.mubr.bf16.mxu0 0
        %2161 = vmatmul.mubr.bf16.gmra.mxu0 %v811
        %v2162 = vpop.f32.mrf.mxu0
        %v2163 = vadd.f32 0.0, %v2162
        %v2164 = vpop.f32.mrf.mxu0
        %v2165 = vadd.f32 0.0, %v2164
        %v2166 = vpop.f32.mrf.mxu0
        %v2167 = vpop.f32.mrf.mxu0
        %2168 = vdwg.mxu0
        %2169 = vmatprep.subr.bf16.mxu0 0
        %2170 = vmatpush1.bf16.msra.mxu0 0
        %2171 = vmatprep.subr.bf16.mxu0 0
        %2172 = vmatpush1.bf16.msra.mxu0 0
        %2173 = vmatprep.subr.bf16.mxu0 0
        %2174 = vmatpush1.bf16.msra.mxu0 0
        %2175 = vmatprep.subr.bf16.mxu0 0
        %2176 = vmatpush1.bf16.msra.mxu0 0
        %2177 = vmatprep.subr.bf16.mxu0 0
        %2178 = vmatpush1.bf16.msra.mxu0 0
        %2179 = vmatprep.subr.bf16.mxu0 %v1925
        %2180 = vmatpush1.bf16.msra.mxu0 %v1924
        %2181 = vmatprep.subr.bf16.mxu0 %v1893
        %2182 = vmatpush1.bf16.msra.mxu0 %v1892
        %2183 = vmatprep.subr.bf16.mxu0 %v1861
        %2184 = vmatpush1.bf16.msra.mxu0 %v1860
        %2185 = vmatprep.subr.bf16.mxu0 0
        %2186 = vmatpush2.bf16.msra.mxu0 0
        %2187 = vmatprep.subr.bf16.mxu0 0
        %2188 = vmatpush2.bf16.msra.mxu0 0
        %2189 = vmatprep.subr.bf16.mxu0 0
        %2190 = vmatpush2.bf16.msra.mxu0 0
        %2191 = vmatprep.subr.bf16.mxu0 0
        %2192 = vmatpush2.bf16.msra.mxu0 0
        %2193 = vmatprep.subr.bf16.mxu0 0
        %2194 = vmatpush2.bf16.msra.mxu0 0
        %2195 = vmatprep.subr.bf16.mxu0 0
        %2196 = vmatpush2.bf16.msra.mxu0 0
        %2197 = vmatprep.subr.bf16.mxu0 0
        %2198 = vmatpush2.bf16.msra.mxu0 0
        %2199 = vmatprep.subr.bf16.mxu0 0
        %2200 = vmatpush2.bf16.msra.mxu0 0
        %2201 = vmatprep.mubr.bf16.mxu0 0
        %2202 = vmatmul.mubr.bf16.gmra.mxu0 %v811
        %v2203 = vpop.f32.mrf.mxu0
        %v2204 = vadd.f32 0.0, %v2203
        %v2205 = vpop.f32.mrf.mxu0
        %v2206 = vadd.f32 0.0, %v2205
        %v2207 = vpop.f32.mrf.mxu0
        %v2208 = vpop.f32.mrf.mxu0
        %2209 = vdwg.mxu0
        %2210 = vmatprep.subr.bf16.mxu0 0
        %2211 = vmatpush1.bf16.msra.mxu0 0
        %2212 = vmatprep.subr.bf16.mxu0 0
        %2213 = vmatpush1.bf16.msra.mxu0 0
        %2214 = vmatprep.subr.bf16.mxu0 0
        %2215 = vmatpush1.bf16.msra.mxu0 0
        %2216 = vmatprep.subr.bf16.mxu0 0
        %2217 = vmatpush1.bf16.msra.mxu0 0
        %2218 = vmatprep.subr.bf16.mxu0 0
        %2219 = vmatpush1.bf16.msra.mxu0 0
        %2220 = vmatprep.subr.bf16.mxu0 %v1927
        %2221 = vmatpush1.bf16.msra.mxu0 %v1926
        %2222 = vmatprep.subr.bf16.mxu0 %v1895
        %2223 = vmatpush1.bf16.msra.mxu0 %v1894
        %2224 = vmatprep.subr.bf16.mxu0 %v1863
        %2225 = vmatpush1.bf16.msra.mxu0 %v1862
        %2226 = vmatprep.subr.bf16.mxu0 0
        %2227 = vmatpush2.bf16.msra.mxu0 0
        %2228 = vmatprep.subr.bf16.mxu0 0
        %2229 = vmatpush2.bf16.msra.mxu0 0
        %2230 = vmatprep.subr.bf16.mxu0 0
        %2231 = vmatpush2.bf16.msra.mxu0 0
        %2232 = vmatprep.subr.bf16.mxu0 0
        %2233 = vmatpush2.bf16.msra.mxu0 0
        %2234 = vmatprep.subr.bf16.mxu0 0
        %2235 = vmatpush2.bf16.msra.mxu0 0
        %2236 = vmatprep.subr.bf16.mxu0 0
        %2237 = vmatpush2.bf16.msra.mxu0 0
        %2238 = vmatprep.subr.bf16.mxu0 0
        %2239 = vmatpush2.bf16.msra.mxu0 0
        %2240 = vmatprep.subr.bf16.mxu0 0
        %2241 = vmatpush2.bf16.msra.mxu0 0
        %2242 = vmatprep.mubr.bf16.mxu0 0
        %2243 = vmatmul.mubr.bf16.gmra.mxu0 %v811
        %v2244 = vpop.f32.mrf.mxu0
        %v2245 = vadd.f32 0.0, %v2244
        %v2246 = vpop.f32.mrf.mxu0
        %v2247 = vadd.f32 0.0, %v2246
        %v2248 = vpop.f32.mrf.mxu0
        %v2249 = vpop.f32.mrf.mxu0
        %2250 = vdwg.mxu0
        %2251 = vmatprep.subr.bf16.mxu0 0
        %2252 = vmatpush1.bf16.msra.mxu0 0
        %2253 = vmatprep.subr.bf16.mxu0 0
        %2254 = vmatpush1.bf16.msra.mxu0 0
        %2255 = vmatprep.subr.bf16.mxu0 0
        %2256 = vmatpush1.bf16.msra.mxu0 0
        %2257 = vmatprep.subr.bf16.mxu0 0
        %2258 = vmatpush1.bf16.msra.mxu0 0
        %2259 = vmatprep.subr.bf16.mxu0 0
        %2260 = vmatpush1.bf16.msra.mxu0 0
        %2261 = vmatprep.subr.bf16.mxu0 %v1929
        %2262 = vmatpush1.bf16.msra.mxu0 %v1928
        %2263 = vmatprep.subr.bf16.mxu0 %v1897
        %2264 = vmatpush1.bf16.msra.mxu0 %v1896
        %2265 = vmatprep.subr.bf16.mxu0 %v1865
        %2266 = vmatpush1.bf16.msra.mxu0 %v1864
        %2267 = vmatprep.subr.bf16.mxu0 0
        %2268 = vmatpush2.bf16.msra.mxu0 0
        %2269 = vmatprep.subr.bf16.mxu0 0
        %2270 = vmatpush2.bf16.msra.mxu0 0
        %2271 = vmatprep.subr.bf16.mxu0 0
        %2272 = vmatpush2.bf16.msra.mxu0 0
        %2273 = vmatprep.subr.bf16.mxu0 0
        %2274 = vmatpush2.bf16.msra.mxu0 0
        %2275 = vmatprep.subr.bf16.mxu0 0
        %2276 = vmatpush2.bf16.msra.mxu0 0
        %2277 = vmatprep.subr.bf16.mxu0 0
        %2278 = vmatpush2.bf16.msra.mxu0 0
        %2279 = vmatprep.subr.bf16.mxu0 0
        %2280 = vmatpush2.bf16.msra.mxu0 0
        %2281 = vmatprep.subr.bf16.mxu0 0
        %2282 = vmatpush2.bf16.msra.mxu0 0
        %2283 = vmatprep.mubr.bf16.mxu0 0
        %2284 = vmatmul.mubr.bf16.gmra.mxu0 %v811
        %v2285 = vpop.f32.mrf.mxu0
        %v2286 = vadd.f32 0.0, %v2285
        %v2287 = vpop.f32.mrf.mxu0
        %v2288 = vadd.f32 0.0, %v2287
        %v2289 = vpop.f32.mrf.mxu0
        %v2290 = vpop.f32.mrf.mxu0
        %2291 = vdwg.mxu0
        %2292 = vmatprep.subr.bf16.mxu0 0
        %2293 = vmatpush1.bf16.msra.mxu0 0
        %2294 = vmatprep.subr.bf16.mxu0 0
        %2295 = vmatpush1.bf16.msra.mxu0 0
        %2296 = vmatprep.subr.bf16.mxu0 0
        %2297 = vmatpush1.bf16.msra.mxu0 0
        %2298 = vmatprep.subr.bf16.mxu0 0
        %2299 = vmatpush1.bf16.msra.mxu0 0
        %2300 = vmatprep.subr.bf16.mxu0 0
        %2301 = vmatpush1.bf16.msra.mxu0 0
        %2302 = vmatprep.subr.bf16.mxu0 %v1931
        %2303 = vmatpush1.bf16.msra.mxu0 %v1930
        %2304 = vmatprep.subr.bf16.mxu0 %v1899
        %2305 = vmatpush1.bf16.msra.mxu0 %v1898
        %2306 = vmatprep.subr.bf16.mxu0 %v1867
        %2307 = vmatpush1.bf16.msra.mxu0 %v1866
        %2308 = vmatprep.subr.bf16.mxu0 0
        %2309 = vmatpush2.bf16.msra.mxu0 0
        %2310 = vmatprep.subr.bf16.mxu0 0
        %2311 = vmatpush2.bf16.msra.mxu0 0
        %2312 = vmatprep.subr.bf16.mxu0 0
        %2313 = vmatpush2.bf16.msra.mxu0 0
        %2314 = vmatprep.subr.bf16.mxu0 0
        %2315 = vmatpush2.bf16.msra.mxu0 0
        %2316 = vmatprep.subr.bf16.mxu0 0
        %2317 = vmatpush2.bf16.msra.mxu0 0
        %2318 = vmatprep.subr.bf16.mxu0 0
        %2319 = vmatpush2.bf16.msra.mxu0 0
        %2320 = vmatprep.subr.bf16.mxu0 0
        %2321 = vmatpush2.bf16.msra.mxu0 0
        %2322 = vmatprep.subr.bf16.mxu0 0
        %2323 = vmatpush2.bf16.msra.mxu0 0
        %2324 = vmatprep.mubr.bf16.mxu0 0
        %2325 = vmatmul.mubr.bf16.gmra.mxu0 %v811
        %v2326 = vpop.f32.mrf.mxu0
        %v2327 = vadd.f32 0.0, %v2326
        %v2328 = vpop.f32.mrf.mxu0
        %v2329 = vadd.f32 0.0, %v2328
        %v2330 = vpop.f32.mrf.mxu0
        %v2331 = vpop.f32.mrf.mxu0
        %2332 = vdwg.mxu0
        %2333 = vmatprep.subr.bf16.mxu0 0
        %2334 = vmatpush1.bf16.msra.mxu0 0
        %2335 = vmatprep.subr.bf16.mxu0 0
        %2336 = vmatpush1.bf16.msra.mxu0 0
        %2337 = vmatprep.subr.bf16.mxu0 0
        %2338 = vmatpush1.bf16.msra.mxu0 0
        %2339 = vmatprep.subr.bf16.mxu0 0
        %2340 = vmatpush1.bf16.msra.mxu0 0
        %2341 = vmatprep.subr.bf16.mxu0 0
        %2342 = vmatpush1.bf16.msra.mxu0 0
        %2343 = vmatprep.subr.bf16.mxu0 %v1933
        %2344 = vmatpush1.bf16.msra.mxu0 %v1932
        %2345 = vmatprep.subr.bf16.mxu0 %v1901
        %2346 = vmatpush1.bf16.msra.mxu0 %v1900
        %2347 = vmatprep.subr.bf16.mxu0 %v1869
        %2348 = vmatpush1.bf16.msra.mxu0 %v1868
        %2349 = vmatprep.subr.bf16.mxu0 0
        %2350 = vmatpush2.bf16.msra.mxu0 0
        %2351 = vmatprep.subr.bf16.mxu0 0
        %2352 = vmatpush2.bf16.msra.mxu0 0
        %2353 = vmatprep.subr.bf16.mxu0 0
        %2354 = vmatpush2.bf16.msra.mxu0 0
        %2355 = vmatprep.subr.bf16.mxu0 0
        %2356 = vmatpush2.bf16.msra.mxu0 0
        %2357 = vmatprep.subr.bf16.mxu0 0
        %2358 = vmatpush2.bf16.msra.mxu0 0
        %2359 = vmatprep.subr.bf16.mxu0 0
        %2360 = vmatpush2.bf16.msra.mxu0 0
        %2361 = vmatprep.subr.bf16.mxu0 0
        %2362 = vmatpush2.bf16.msra.mxu0 0
        %2363 = vmatprep.subr.bf16.mxu0 0
        %2364 = vmatpush2.bf16.msra.mxu0 0
        %2365 = vmatprep.mubr.bf16.mxu0 0
        %2366 = vmatmul.mubr.bf16.gmra.mxu0 %v811
        %v2367 = vpop.f32.mrf.mxu0
        %v2368 = vadd.f32 0.0, %v2367
        %v2369 = vpop.f32.mrf.mxu0
        %v2370 = vadd.f32 0.0, %v2369
        %v2371 = vpop.f32.mrf.mxu0
        %v2372 = vpop.f32.mrf.mxu0
        %2373 = vdwg.mxu0
        %2374 = vmatprep.subr.bf16.mxu0 0
        %2375 = vmatpush1.bf16.msra.mxu0 0
        %2376 = vmatprep.subr.bf16.mxu0 0
        %2377 = vmatpush1.bf16.msra.mxu0 0
        %2378 = vmatprep.subr.bf16.mxu0 0
        %2379 = vmatpush1.bf16.msra.mxu0 0
        %2380 = vmatprep.subr.bf16.mxu0 0
        %2381 = vmatpush1.bf16.msra.mxu0 0
        %2382 = vmatprep.subr.bf16.mxu0 0
        %2383 = vmatpush1.bf16.msra.mxu0 0
        %2384 = vmatprep.subr.bf16.mxu0 %v1935
        %2385 = vmatpush1.bf16.msra.mxu0 %v1934
        %2386 = vmatprep.subr.bf16.mxu0 %v1903
        %2387 = vmatpush1.bf16.msra.mxu0 %v1902
        %2388 = vmatprep.subr.bf16.mxu0 %v1871
        %2389 = vmatpush1.bf16.msra.mxu0 %v1870
        %2390 = vmatprep.subr.bf16.mxu0 0
        %2391 = vmatpush2.bf16.msra.mxu0 0
        %2392 = vmatprep.subr.bf16.mxu0 0
        %2393 = vmatpush2.bf16.msra.mxu0 0
        %2394 = vmatprep.subr.bf16.mxu0 0
        %2395 = vmatpush2.bf16.msra.mxu0 0
        %2396 = vmatprep.subr.bf16.mxu0 0
        %2397 = vmatpush2.bf16.msra.mxu0 0
        %2398 = vmatprep.subr.bf16.mxu0 0
        %2399 = vmatpush2.bf16.msra.mxu0 0
        %2400 = vmatprep.subr.bf16.mxu0 0
        %2401 = vmatpush2.bf16.msra.mxu0 0
        %2402 = vmatprep.subr.bf16.mxu0 0
        %2403 = vmatpush2.bf16.msra.mxu0 0
        %2404 = vmatprep.subr.bf16.mxu0 0
        %2405 = vmatpush2.bf16.msra.mxu0 0
        %2406 = vmatprep.mubr.bf16.mxu0 0
        %2407 = vmatmul.mubr.bf16.gmra.mxu0 %v811
        %v2408 = vpop.f32.mrf.mxu0
        %v2409 = vadd.f32 0.0, %v2408
        %v2410 = vpop.f32.mrf.mxu0
        %v2411 = vadd.f32 0.0, %v2410
        %v2412 = vpop.f32.mrf.mxu0
        %v2413 = vpop.f32.mrf.mxu0
        %2414 = vdwg.mxu0
        %2415 = vmatprep.subr.bf16.mxu0 0
        %2416 = vmatpush1.bf16.msra.mxu0 0
        %2417 = vmatprep.subr.bf16.mxu0 0
        %2418 = vmatpush1.bf16.msra.mxu0 0
        %2419 = vmatprep.subr.bf16.mxu0 0
        %2420 = vmatpush1.bf16.msra.mxu0 0
        %2421 = vmatprep.subr.bf16.mxu0 0
        %2422 = vmatpush1.bf16.msra.mxu0 0
        %2423 = vmatprep.subr.bf16.mxu0 0
        %2424 = vmatpush1.bf16.msra.mxu0 0
        %2425 = vmatprep.subr.bf16.mxu0 %v1937
        %2426 = vmatpush1.bf16.msra.mxu0 %v1936
        %2427 = vmatprep.subr.bf16.mxu0 %v1905
        %2428 = vmatpush1.bf16.msra.mxu0 %v1904
        %2429 = vmatprep.subr.bf16.mxu0 %v1873
        %2430 = vmatpush1.bf16.msra.mxu0 %v1872
        %2431 = vmatprep.subr.bf16.mxu0 0
        %2432 = vmatpush2.bf16.msra.mxu0 0
        %2433 = vmatprep.subr.bf16.mxu0 0
        %2434 = vmatpush2.bf16.msra.mxu0 0
        %2435 = vmatprep.subr.bf16.mxu0 0
        %2436 = vmatpush2.bf16.msra.mxu0 0
        %2437 = vmatprep.subr.bf16.mxu0 0
        %2438 = vmatpush2.bf16.msra.mxu0 0
        %2439 = vmatprep.subr.bf16.mxu0 0
        %2440 = vmatpush2.bf16.msra.mxu0 0
        %2441 = vmatprep.subr.bf16.mxu0 0
        %2442 = vmatpush2.bf16.msra.mxu0 0
        %2443 = vmatprep.subr.bf16.mxu0 0
        %2444 = vmatpush2.bf16.msra.mxu0 0
        %2445 = vmatprep.subr.bf16.mxu0 0
        %2446 = vmatpush2.bf16.msra.mxu0 0
        %2447 = vmatprep.mubr.bf16.mxu0 0
        %2448 = vmatmul.mubr.bf16.gmra.mxu0 %v811
        %v2449 = vpop.f32.mrf.mxu0
        %v2450 = vadd.f32 0.0, %v2449
        %v2451 = vpop.f32.mrf.mxu0
        %v2452 = vadd.f32 0.0, %v2451
        %v2453 = vpop.f32.mrf.mxu0
        %v2454 = vpop.f32.mrf.mxu0
        %2455 = vdwg.mxu0
        %2456 = vmatprep.subr.bf16.mxu0 0
        %2457 = vmatpush1.bf16.msra.mxu0 0
        %2458 = vmatprep.subr.bf16.mxu0 0
        %2459 = vmatpush1.bf16.msra.mxu0 0
        %2460 = vmatprep.subr.bf16.mxu0 0
        %2461 = vmatpush1.bf16.msra.mxu0 0
        %2462 = vmatprep.subr.bf16.mxu0 0
        %2463 = vmatpush1.bf16.msra.mxu0 0
        %2464 = vmatprep.subr.bf16.mxu0 0
        %2465 = vmatpush1.bf16.msra.mxu0 0
        %2466 = vmatprep.subr.bf16.mxu0 %v1939
        %2467 = vmatpush1.bf16.msra.mxu0 %v1938
        %2468 = vmatprep.subr.bf16.mxu0 %v1907
        %2469 = vmatpush1.bf16.msra.mxu0 %v1906
        %2470 = vmatprep.subr.bf16.mxu0 %v1875
        %2471 = vmatpush1.bf16.msra.mxu0 %v1874
        %2472 = vmatprep.subr.bf16.mxu0 0
        %2473 = vmatpush2.bf16.msra.mxu0 0
        %2474 = vmatprep.subr.bf16.mxu0 0
        %2475 = vmatpush2.bf16.msra.mxu0 0
        %2476 = vmatprep.subr.bf16.mxu0 0
        %2477 = vmatpush2.bf16.msra.mxu0 0
        %2478 = vmatprep.subr.bf16.mxu0 0
        %2479 = vmatpush2.bf16.msra.mxu0 0
        %2480 = vmatprep.subr.bf16.mxu0 0
        %2481 = vmatpush2.bf16.msra.mxu0 0
        %2482 = vmatprep.subr.bf16.mxu0 0
        %2483 = vmatpush2.bf16.msra.mxu0 0
        %2484 = vmatprep.subr.bf16.mxu0 0
        %2485 = vmatpush2.bf16.msra.mxu0 0
        %2486 = vmatprep.subr.bf16.mxu0 0
        %2487 = vmatpush2.bf16.msra.mxu0 0
        %2488 = vmatprep.mubr.bf16.mxu0 0
        %2489 = vmatmul.mubr.bf16.gmra.mxu0 %v811
        %v2490 = vpop.f32.mrf.mxu0
        %v2491 = vadd.f32 0.0, %v2490
        %v2492 = vpop.f32.mrf.mxu0
        %v2493 = vadd.f32 0.0, %v2492
        %v2494 = vpop.f32.mrf.mxu0
        %v2495 = vpop.f32.mrf.mxu0
        %2496 = vdwg.mxu0
        %2497 = vmatprep.subr.bf16.mxu0 0
        %2498 = vmatpush1.bf16.msra.mxu0 0
        %2499 = vmatprep.subr.bf16.mxu0 0
        %2500 = vmatpush1.bf16.msra.mxu0 0
        %2501 = vmatprep.subr.bf16.mxu0 0
        %2502 = vmatpush1.bf16.msra.mxu0 0
        %2503 = vmatprep.subr.bf16.mxu0 0
        %2504 = vmatpush1.bf16.msra.mxu0 0
        %2505 = vmatprep.subr.bf16.mxu0 0
        %2506 = vmatpush1.bf16.msra.mxu0 0
        %2507 = vmatprep.subr.bf16.mxu0 %v1941
        %2508 = vmatpush1.bf16.msra.mxu0 %v1940
        %2509 = vmatprep.subr.bf16.mxu0 %v1909
        %2510 = vmatpush1.bf16.msra.mxu0 %v1908
        %2511 = vmatprep.subr.bf16.mxu0 %v1877
        %2512 = vmatpush1.bf16.msra.mxu0 %v1876
        %2513 = vmatprep.subr.bf16.mxu0 0
        %2514 = vmatpush2.bf16.msra.mxu0 0
        %2515 = vmatprep.subr.bf16.mxu0 0
        %2516 = vmatpush2.bf16.msra.mxu0 0
        %2517 = vmatprep.subr.bf16.mxu0 0
        %2518 = vmatpush2.bf16.msra.mxu0 0
        %2519 = vmatprep.subr.bf16.mxu0 0
        %2520 = vmatpush2.bf16.msra.mxu0 0
        %2521 = vmatprep.subr.bf16.mxu0 0
        %2522 = vmatpush2.bf16.msra.mxu0 0
        %2523 = vmatprep.subr.bf16.mxu0 0
        %2524 = vmatpush2.bf16.msra.mxu0 0
        %2525 = vmatprep.subr.bf16.mxu0 0
        %2526 = vmatpush2.bf16.msra.mxu0 0
        %2527 = vmatprep.subr.bf16.mxu0 0
        %2528 = vmatpush2.bf16.msra.mxu0 0
        %2529 = vmatprep.mubr.bf16.mxu0 0
        %2530 = vmatmul.mubr.bf16.gmra.mxu0 %v811
        %v2531 = vpop.f32.mrf.mxu0
        %v2532 = vadd.f32 0.0, %v2531
        %v2533 = vpop.f32.mrf.mxu0
        %v2534 = vadd.f32 0.0, %v2533
        %v2535 = vpop.f32.mrf.mxu0
        %v2536 = vpop.f32.mrf.mxu0
        %2537 = vdwg.mxu0
        %2538 = vmatprep.subr.bf16.mxu0 0
        %2539 = vmatpush1.bf16.msra.mxu0 0
        %2540 = vmatprep.subr.bf16.mxu0 0
        %2541 = vmatpush1.bf16.msra.mxu0 0
        %2542 = vmatprep.subr.bf16.mxu0 0
        %2543 = vmatpush1.bf16.msra.mxu0 0
        %2544 = vmatprep.subr.bf16.mxu0 0
        %2545 = vmatpush1.bf16.msra.mxu0 0
        %2546 = vmatprep.subr.bf16.mxu0 0
        %2547 = vmatpush1.bf16.msra.mxu0 0
        %2548 = vmatprep.subr.bf16.mxu0 %v1943
        %2549 = vmatpush1.bf16.msra.mxu0 %v1942
        %2550 = vmatprep.subr.bf16.mxu0 %v1911
        %2551 = vmatpush1.bf16.msra.mxu0 %v1910
        %2552 = vmatprep.subr.bf16.mxu0 %v1879
        %2553 = vmatpush1.bf16.msra.mxu0 %v1878
        %2554 = vmatprep.subr.bf16.mxu0 0
        %2555 = vmatpush2.bf16.msra.mxu0 0
        %2556 = vmatprep.subr.bf16.mxu0 0
        %2557 = vmatpush2.bf16.msra.mxu0 0
        %2558 = vmatprep.subr.bf16.mxu0 0
        %2559 = vmatpush2.bf16.msra.mxu0 0
        %2560 = vmatprep.subr.bf16.mxu0 0
        %2561 = vmatpush2.bf16.msra.mxu0 0
        %2562 = vmatprep.subr.bf16.mxu0 0
        %2563 = vmatpush2.bf16.msra.mxu0 0
        %2564 = vmatprep.subr.bf16.mxu0 0
        %2565 = vmatpush2.bf16.msra.mxu0 0
        %2566 = vmatprep.subr.bf16.mxu0 0
        %2567 = vmatpush2.bf16.msra.mxu0 0
        %2568 = vmatprep.subr.bf16.mxu0 0
        %2569 = vmatpush2.bf16.msra.mxu0 0
        %2570 = vmatprep.mubr.bf16.mxu0 0
        %2571 = vmatmul.mubr.bf16.gmra.mxu0 %v811
        %v2572 = vpop.f32.mrf.mxu0
        %v2573 = vadd.f32 0.0, %v2572
        %v2574 = vpop.f32.mrf.mxu0
        %v2575 = vadd.f32 0.0, %v2574
        %v2576 = vpop.f32.mrf.mxu0
        %v2577 = vpop.f32.mrf.mxu0
        %2578 = vdwg.mxu0
        %2579 = vmatprep.subr.bf16.mxu0 0
        %2580 = vmatpush1.bf16.msra.mxu0 0
        %2581 = vmatprep.subr.bf16.mxu0 0
        %2582 = vmatpush1.bf16.msra.mxu0 0
        %2583 = vmatprep.subr.bf16.mxu0 0
        %2584 = vmatpush1.bf16.msra.mxu0 0
        %2585 = vmatprep.subr.bf16.mxu0 0
        %2586 = vmatpush1.bf16.msra.mxu0 0
        %2587 = vmatprep.subr.bf16.mxu0 0
        %2588 = vmatpush1.bf16.msra.mxu0 0
        %2589 = vmatprep.subr.bf16.mxu0 %v1945
        %2590 = vmatpush1.bf16.msra.mxu0 %v1944
        %2591 = vmatprep.subr.bf16.mxu0 %v1913
        %2592 = vmatpush1.bf16.msra.mxu0 %v1912
        %2593 = vmatprep.subr.bf16.mxu0 %v1881
        %2594 = vmatpush1.bf16.msra.mxu0 %v1880
        %2595 = vmatprep.subr.bf16.mxu0 0
        %2596 = vmatpush2.bf16.msra.mxu0 0
        %2597 = vmatprep.subr.bf16.mxu0 0
        %2598 = vmatpush2.bf16.msra.mxu0 0
        %2599 = vmatprep.subr.bf16.mxu0 0
        %2600 = vmatpush2.bf16.msra.mxu0 0
        %2601 = vmatprep.subr.bf16.mxu0 0
        %2602 = vmatpush2.bf16.msra.mxu0 0
        %2603 = vmatprep.subr.bf16.mxu0 0
        %2604 = vmatpush2.bf16.msra.mxu0 0
        %2605 = vmatprep.subr.bf16.mxu0 0
        %2606 = vmatpush2.bf16.msra.mxu0 0
        %2607 = vmatprep.subr.bf16.mxu0 0
        %2608 = vmatpush2.bf16.msra.mxu0 0
        %2609 = vmatprep.subr.bf16.mxu0 0
        %2610 = vmatpush2.bf16.msra.mxu0 0
        %2611 = vmatprep.mubr.bf16.mxu0 0
        %2612 = vmatmul.mubr.bf16.gmra.mxu0 %v811
        %v2613 = vpop.f32.mrf.mxu0
        %v2614 = vadd.f32 0.0, %v2613
        %v2615 = vpop.f32.mrf.mxu0
        %v2616 = vadd.f32 0.0, %v2615
        %v2617 = vpop.f32.mrf.mxu0
        %v2618 = vpop.f32.mrf.mxu0
        %2619 = vdwg.mxu0
        %2620 = vmatprep.subr.bf16.mxu0 0
        %2621 = vmatpush1.bf16.msra.mxu0 0
        %2622 = vmatprep.subr.bf16.mxu0 0
        %2623 = vmatpush1.bf16.msra.mxu0 0
        %2624 = vmatprep.subr.bf16.mxu0 0
        %2625 = vmatpush1.bf16.msra.mxu0 0
        %2626 = vmatprep.subr.bf16.mxu0 0
        %2627 = vmatpush1.bf16.msra.mxu0 0
        %2628 = vmatprep.subr.bf16.mxu0 0
        %2629 = vmatpush1.bf16.msra.mxu0 0
        %2630 = vmatprep.subr.bf16.mxu0 %v1947
        %2631 = vmatpush1.bf16.msra.mxu0 %v1946
        %2632 = vmatprep.subr.bf16.mxu0 %v1915
        %2633 = vmatpush1.bf16.msra.mxu0 %v1914
        %2634 = vmatprep.subr.bf16.mxu0 %v1883
        %2635 = vmatpush1.bf16.msra.mxu0 %v1882
        %2636 = vmatprep.subr.bf16.mxu0 0
        %2637 = vmatpush2.bf16.msra.mxu0 0
        %2638 = vmatprep.subr.bf16.mxu0 0
        %2639 = vmatpush2.bf16.msra.mxu0 0
        %2640 = vmatprep.subr.bf16.mxu0 0
        %2641 = vmatpush2.bf16.msra.mxu0 0
        %2642 = vmatprep.subr.bf16.mxu0 0
        %2643 = vmatpush2.bf16.msra.mxu0 0
        %2644 = vmatprep.subr.bf16.mxu0 0
        %2645 = vmatpush2.bf16.msra.mxu0 0
        %2646 = vmatprep.subr.bf16.mxu0 0
        %2647 = vmatpush2.bf16.msra.mxu0 0
        %2648 = vmatprep.subr.bf16.mxu0 0
        %2649 = vmatpush2.bf16.msra.mxu0 0
        %2650 = vmatprep.subr.bf16.mxu0 0
        %2651 = vmatpush2.bf16.msra.mxu0 0
        %2652 = vmatprep.mubr.bf16.mxu0 0
        %2653 = vmatmul.mubr.bf16.gmra.mxu0 %v811
        %v2654 = vpop.f32.mrf.mxu0
        %v2655 = vadd.f32 0.0, %v2654
        %v2656 = vpop.f32.mrf.mxu0
        %v2657 = vadd.f32 0.0, %v2656
        %v2658 = vpop.f32.mrf.mxu0
        %v2659 = vpop.f32.mrf.mxu0
        %2660 = vdwg.mxu0
        %2661 = vmatprep.subr.bf16.mxu0 0
        %2662 = vmatpush1.bf16.msra.mxu0 0
        %2663 = vmatprep.subr.bf16.mxu0 0
        %2664 = vmatpush1.bf16.msra.mxu0 0
        %2665 = vmatprep.subr.bf16.mxu0 0
        %2666 = vmatpush1.bf16.msra.mxu0 0
        %2667 = vmatprep.subr.bf16.mxu0 0
        %2668 = vmatpush1.bf16.msra.mxu0 0
        %2669 = vmatprep.subr.bf16.mxu0 0
        %2670 = vmatpush1.bf16.msra.mxu0 0
        %2671 = vmatprep.subr.bf16.mxu0 %v1949
        %2672 = vmatpush1.bf16.msra.mxu0 %v1948
        %2673 = vmatprep.subr.bf16.mxu0 %v1917
        %2674 = vmatpush1.bf16.msra.mxu0 %v1916
        %2675 = vmatprep.subr.bf16.mxu0 %v1885
        %2676 = vmatpush1.bf16.msra.mxu0 %v1884
        %2677 = vmatprep.subr.bf16.mxu0 0
        %2678 = vmatpush2.bf16.msra.mxu0 0
        %2679 = vmatprep.subr.bf16.mxu0 0
        %2680 = vmatpush2.bf16.msra.mxu0 0
        %2681 = vmatprep.subr.bf16.mxu0 0
        %2682 = vmatpush2.bf16.msra.mxu0 0
        %2683 = vmatprep.subr.bf16.mxu0 0
        %2684 = vmatpush2.bf16.msra.mxu0 0
        %2685 = vmatprep.subr.bf16.mxu0 0
        %2686 = vmatpush2.bf16.msra.mxu0 0
        %2687 = vmatprep.subr.bf16.mxu0 0
        %2688 = vmatpush2.bf16.msra.mxu0 0
        %2689 = vmatprep.subr.bf16.mxu0 0
        %2690 = vmatpush2.bf16.msra.mxu0 0
        %2691 = vmatprep.subr.bf16.mxu0 0
        %2692 = vmatpush2.bf16.msra.mxu0 0
        %2693 = vmatprep.mubr.bf16.mxu0 0
        %2694 = vmatmul.mubr.bf16.gmra.mxu0 %v811
        %v2695 = vpop.f32.mrf.mxu0
        %v2696 = vadd.f32 0.0, %v2695
        %v2697 = vpop.f32.mrf.mxu0
        %v2698 = vadd.f32 0.0, %v2697
        %v2699 = vpop.f32.mrf.mxu0
        %v2700 = vpop.f32.mrf.mxu0
        %2701 = vdwg.mxu0
        %s2702 = scalar_lea.vmem %s187, 1536 [#allocation2]
        %v2703 = vld [vmem:[%s2702] sm:$0xff]
        %v2704 = vld [vmem:[%s2702 + $0x8] sm:$0xff]
        %v2705 = vld [vmem:[%s2702 + $0x10] sm:$0xff]
        %v2706 = vld [vmem:[%s2702 + $0x18] sm:$0xff]
        %v2707 = vld [vmem:[%s2702 + $0x20] sm:$0xff]
        %v2708 = vld [vmem:[%s2702 + $0x28] sm:$0xff]
        %v2709 = vld [vmem:[%s2702 + $0x30] sm:$0xff]
        %v2710 = vld [vmem:[%s2702 + $0x38] sm:$0xff]
        %v2711 = vld [vmem:[%s2702 + $0x40] sm:$0xff]
        %v2712 = vld [vmem:[%s2702 + $0x48] sm:$0xff]
        %v2713 = vld [vmem:[%s2702 + $0x50] sm:$0xff]
        %v2714 = vld [vmem:[%s2702 + $0x58] sm:$0xff]
        %v2715 = vld [vmem:[%s2702 + $0x60] sm:$0xff]
        %v2716 = vld [vmem:[%s2702 + $0x68] sm:$0xff]
        %v2717 = vld [vmem:[%s2702 + $0x70] sm:$0xff]
        %v2718 = vld [vmem:[%s2702 + $0x78] sm:$0xff]
        %v2719 = vld [vmem:[%s2702 + $0x80] sm:$0xff]
        %v2720 = vld [vmem:[%s2702 + $0x88] sm:$0xff]
        %v2721 = vld [vmem:[%s2702 + $0x90] sm:$0xff]
        %v2722 = vld [vmem:[%s2702 + $0x98] sm:$0xff]
        %v2723 = vld [vmem:[%s2702 + $0xa0] sm:$0xff]
        %v2724 = vld [vmem:[%s2702 + $0xa8] sm:$0xff]
        %v2725 = vld [vmem:[%s2702 + $0xb0] sm:$0xff]
        %v2726 = vld [vmem:[%s2702 + $0xb8] sm:$0xff]
        %v2727 = vld [vmem:[%s2702 + $0xc0] sm:$0xff]
        %v2728 = vld [vmem:[%s2702 + $0xc8] sm:$0xff]
        %v2729 = vld [vmem:[%s2702 + $0xd0] sm:$0xff]
        %v2730 = vld [vmem:[%s2702 + $0xd8] sm:$0xff]
        %v2731 = vld [vmem:[%s2702 + $0xe0] sm:$0xff]
        %v2732 = vld [vmem:[%s2702 + $0xe8] sm:$0xff]
        %v2733 = vld [vmem:[%s2702 + $0xf0] sm:$0xff]
        %v2734 = vld [vmem:[%s2702 + $0xf8] sm:$0xff]
        %v2735 = vld [vmem:[%s2702 + $0x100] sm:$0xff]
        %v2736 = vld [vmem:[%s2702 + $0x108] sm:$0xff]
        %v2737 = vld [vmem:[%s2702 + $0x110] sm:$0xff]
        %v2738 = vld [vmem:[%s2702 + $0x118] sm:$0xff]
        %v2739 = vld [vmem:[%s2702 + $0x120] sm:$0xff]
        %v2740 = vld [vmem:[%s2702 + $0x128] sm:$0xff]
        %v2741 = vld [vmem:[%s2702 + $0x130] sm:$0xff]
        %v2742 = vld [vmem:[%s2702 + $0x138] sm:$0xff]
        %v2743 = vld [vmem:[%s2702 + $0x140] sm:$0xff]
        %v2744 = vld [vmem:[%s2702 + $0x148] sm:$0xff]
        %v2745 = vld [vmem:[%s2702 + $0x150] sm:$0xff]
        %v2746 = vld [vmem:[%s2702 + $0x158] sm:$0xff]
        %v2747 = vld [vmem:[%s2702 + $0x160] sm:$0xff]
        %v2748 = vld [vmem:[%s2702 + $0x168] sm:$0xff]
        %v2749 = vld [vmem:[%s2702 + $0x170] sm:$0xff]
        %v2750 = vld [vmem:[%s2702 + $0x178] sm:$0xff]
        %v2751 = vld [vmem:[%s2702 + $0x180] sm:$0xff]
        %v2752 = vld [vmem:[%s2702 + $0x188] sm:$0xff]
        %v2753 = vld [vmem:[%s2702 + $0x190] sm:$0xff]
        %v2754 = vld [vmem:[%s2702 + $0x198] sm:$0xff]
        %v2755 = vld [vmem:[%s2702 + $0x1a0] sm:$0xff]
        %v2756 = vld [vmem:[%s2702 + $0x1a8] sm:$0xff]
        %v2757 = vld [vmem:[%s2702 + $0x1b0] sm:$0xff]
        %v2758 = vld [vmem:[%s2702 + $0x1b8] sm:$0xff]
        %v2759 = vld [vmem:[%s2702 + $0x1c0] sm:$0xff]
        %v2760 = vld [vmem:[%s2702 + $0x1c8] sm:$0xff]
        %v2761 = vld [vmem:[%s2702 + $0x1d0] sm:$0xff]
        %v2762 = vld [vmem:[%s2702 + $0x1d8] sm:$0xff]
        %v2763 = vld [vmem:[%s2702 + $0x1e0] sm:$0xff]
        %v2764 = vld [vmem:[%s2702 + $0x1e8] sm:$0xff]
        %v2765 = vld [vmem:[%s2702 + $0x1f0] sm:$0xff]
        %v2766 = vld [vmem:[%s2702 + $0x1f8] sm:$0xff]
        %v2767 = vld [vmem:[%s2702 + $0x200] sm:$0xff]
        %v2768 = vld [vmem:[%s2702 + $0x208] sm:$0xff]
        %v2769 = vld [vmem:[%s2702 + $0x210] sm:$0xff]
        %v2770 = vld [vmem:[%s2702 + $0x218] sm:$0xff]
        %v2771 = vld [vmem:[%s2702 + $0x220] sm:$0xff]
        %v2772 = vld [vmem:[%s2702 + $0x228] sm:$0xff]
        %v2773 = vld [vmem:[%s2702 + $0x230] sm:$0xff]
        %v2774 = vld [vmem:[%s2702 + $0x238] sm:$0xff]
        %v2775 = vld [vmem:[%s2702 + $0x240] sm:$0xff]
        %v2776 = vld [vmem:[%s2702 + $0x248] sm:$0xff]
        %v2777 = vld [vmem:[%s2702 + $0x250] sm:$0xff]
        %v2778 = vld [vmem:[%s2702 + $0x258] sm:$0xff]
        %v2779 = vld [vmem:[%s2702 + $0x260] sm:$0xff]
        %v2780 = vld [vmem:[%s2702 + $0x268] sm:$0xff]
        %v2781 = vld [vmem:[%s2702 + $0x270] sm:$0xff]
        %v2782 = vld [vmem:[%s2702 + $0x278] sm:$0xff]
        %v2783 = vld [vmem:[%s2702 + $0x280] sm:$0xff]
        %v2784 = vld [vmem:[%s2702 + $0x288] sm:$0xff]
        %v2785 = vld [vmem:[%s2702 + $0x290] sm:$0xff]
        %v2786 = vld [vmem:[%s2702 + $0x298] sm:$0xff]
        %v2787 = vld [vmem:[%s2702 + $0x2a0] sm:$0xff]
        %v2788 = vld [vmem:[%s2702 + $0x2a8] sm:$0xff]
        %v2789 = vld [vmem:[%s2702 + $0x2b0] sm:$0xff]
        %v2790 = vld [vmem:[%s2702 + $0x2b8] sm:$0xff]
        %v2791 = vld [vmem:[%s2702 + $0x2c0] sm:$0xff]
        %v2792 = vld [vmem:[%s2702 + $0x2c8] sm:$0xff]
        %v2793 = vld [vmem:[%s2702 + $0x2d0] sm:$0xff]
        %v2794 = vld [vmem:[%s2702 + $0x2d8] sm:$0xff]
        %v2795 = vld [vmem:[%s2702 + $0x2e0] sm:$0xff]
        %v2796 = vld [vmem:[%s2702 + $0x2e8] sm:$0xff]
        %v2797 = vld [vmem:[%s2702 + $0x2f0] sm:$0xff]
        %v2798 = vld [vmem:[%s2702 + $0x2f8] sm:$0xff]
        %v2895 = vunpack.c.l.b16 %v2703
        %v2896 = vunpack.c.h.b16 %v2703
        %v2897 = vunpack.c.l.b16 %v2704
        %v2898 = vunpack.c.h.b16 %v2704
        %v2899 = vunpack.c.l.b16 %v2705
        %v2900 = vunpack.c.h.b16 %v2705
        %v2901 = vunpack.c.l.b16 %v2706
        %v2902 = vunpack.c.h.b16 %v2706
        %v2903 = vunpack.c.l.b16 %v2707
        %v2904 = vunpack.c.h.b16 %v2707
        %v2905 = vunpack.c.l.b16 %v2708
        %v2906 = vunpack.c.h.b16 %v2708
        %v2907 = vunpack.c.l.b16 %v2709
        %v2908 = vunpack.c.h.b16 %v2709
        %v2909 = vunpack.c.l.b16 %v2710
        %v2910 = vunpack.c.h.b16 %v2710
        %v2911 = vunpack.c.l.b16 %v2711
        %v2912 = vunpack.c.h.b16 %v2711
        %v2913 = vunpack.c.l.b16 %v2712
        %v2914 = vunpack.c.h.b16 %v2712
        %v2915 = vunpack.c.l.b16 %v2713
        %v2916 = vunpack.c.h.b16 %v2713
        %v2917 = vunpack.c.l.b16 %v2714
        %v2918 = vunpack.c.h.b16 %v2714
        %v2919 = vunpack.c.l.b16 %v2715
        %v2920 = vunpack.c.h.b16 %v2715
        %v2921 = vunpack.c.l.b16 %v2716
        %v2922 = vunpack.c.h.b16 %v2716
        %v2923 = vunpack.c.l.b16 %v2717
        %v2924 = vunpack.c.h.b16 %v2717
        %v2925 = vunpack.c.l.b16 %v2718
        %v2926 = vunpack.c.h.b16 %v2718
        %v2927 = vunpack.c.l.b16 %v2719
        %v2928 = vunpack.c.h.b16 %v2719
        %v2929 = vunpack.c.l.b16 %v2720
        %v2930 = vunpack.c.h.b16 %v2720
        %v2931 = vunpack.c.l.b16 %v2721
        %v2932 = vunpack.c.h.b16 %v2721
        %v2933 = vunpack.c.l.b16 %v2722
        %v2934 = vunpack.c.h.b16 %v2722
        %v2935 = vunpack.c.l.b16 %v2723
        %v2936 = vunpack.c.h.b16 %v2723
        %v2937 = vunpack.c.l.b16 %v2724
        %v2938 = vunpack.c.h.b16 %v2724
        %v2939 = vunpack.c.l.b16 %v2725
        %v2940 = vunpack.c.h.b16 %v2725
        %v2941 = vunpack.c.l.b16 %v2726
        %v2942 = vunpack.c.h.b16 %v2726
        %v2943 = vunpack.c.l.b16 %v2727
        %v2944 = vunpack.c.h.b16 %v2727
        %v2945 = vunpack.c.l.b16 %v2728
        %v2946 = vunpack.c.h.b16 %v2728
        %v2947 = vunpack.c.l.b16 %v2729
        %v2948 = vunpack.c.h.b16 %v2729
        %v2949 = vunpack.c.l.b16 %v2730
        %v2950 = vunpack.c.h.b16 %v2730
        %v2951 = vunpack.c.l.b16 %v2731
        %v2952 = vunpack.c.h.b16 %v2731
        %v2953 = vunpack.c.l.b16 %v2732
        %v2954 = vunpack.c.h.b16 %v2732
        %v2955 = vunpack.c.l.b16 %v2733
        %v2956 = vunpack.c.h.b16 %v2733
        %v2957 = vunpack.c.l.b16 %v2734
        %v2958 = vunpack.c.h.b16 %v2734
        %v2959 = vunpack.c.l.b16 %v2735
        %v2960 = vunpack.c.h.b16 %v2735
        %v2961 = vunpack.c.l.b16 %v2736
        %v2962 = vunpack.c.h.b16 %v2736
        %v2963 = vunpack.c.l.b16 %v2737
        %v2964 = vunpack.c.h.b16 %v2737
        %v2965 = vunpack.c.l.b16 %v2738
        %v2966 = vunpack.c.h.b16 %v2738
        %v2967 = vunpack.c.l.b16 %v2739
        %v2968 = vunpack.c.h.b16 %v2739
        %v2969 = vunpack.c.l.b16 %v2740
        %v2970 = vunpack.c.h.b16 %v2740
        %v2971 = vunpack.c.l.b16 %v2741
        %v2972 = vunpack.c.h.b16 %v2741
        %v2973 = vunpack.c.l.b16 %v2742
        %v2974 = vunpack.c.h.b16 %v2742
        %v2975 = vunpack.c.l.b16 %v2743
        %v2976 = vunpack.c.h.b16 %v2743
        %v2977 = vunpack.c.l.b16 %v2744
        %v2978 = vunpack.c.h.b16 %v2744
        %v2979 = vunpack.c.l.b16 %v2745
        %v2980 = vunpack.c.h.b16 %v2745
        %v2981 = vunpack.c.l.b16 %v2746
        %v2982 = vunpack.c.h.b16 %v2746
        %v2983 = vunpack.c.l.b16 %v2747
        %v2984 = vunpack.c.h.b16 %v2747
        %v2985 = vunpack.c.l.b16 %v2748
        %v2986 = vunpack.c.h.b16 %v2748
        %v2987 = vunpack.c.l.b16 %v2749
        %v2988 = vunpack.c.h.b16 %v2749
        %v2989 = vunpack.c.l.b16 %v2750
        %v2990 = vunpack.c.h.b16 %v2750
        %v2991 = vunpack.c.l.b16 %v2751
        %v2992 = vunpack.c.h.b16 %v2751
        %v2993 = vunpack.c.l.b16 %v2752
        %v2994 = vunpack.c.h.b16 %v2752
        %v2995 = vunpack.c.l.b16 %v2753
        %v2996 = vunpack.c.h.b16 %v2753
        %v2997 = vunpack.c.l.b16 %v2754
        %v2998 = vunpack.c.h.b16 %v2754
        %v2999 = vunpack.c.l.b16 %v2755
        %v3000 = vunpack.c.h.b16 %v2755
        %v3001 = vunpack.c.l.b16 %v2756
        %v3002 = vunpack.c.h.b16 %v2756
        %v3003 = vunpack.c.l.b16 %v2757
        %v3004 = vunpack.c.h.b16 %v2757
        %v3005 = vunpack.c.l.b16 %v2758
        %v3006 = vunpack.c.h.b16 %v2758
        %v3007 = vunpack.c.l.b16 %v2759
        %v3008 = vunpack.c.h.b16 %v2759
        %v3009 = vunpack.c.l.b16 %v2760
        %v3010 = vunpack.c.h.b16 %v2760
        %v3011 = vunpack.c.l.b16 %v2761
        %v3012 = vunpack.c.h.b16 %v2761
        %v3013 = vunpack.c.l.b16 %v2762
        %v3014 = vunpack.c.h.b16 %v2762
        %v3015 = vunpack.c.l.b16 %v2763
        %v3016 = vunpack.c.h.b16 %v2763
        %v3017 = vunpack.c.l.b16 %v2764
        %v3018 = vunpack.c.h.b16 %v2764
        %v3019 = vunpack.c.l.b16 %v2765
        %v3020 = vunpack.c.h.b16 %v2765
        %v3021 = vunpack.c.l.b16 %v2766
        %v3022 = vunpack.c.h.b16 %v2766
        %v3023 = vunpack.c.l.b16 %v2767
        %v3024 = vunpack.c.h.b16 %v2767
        %v3025 = vunpack.c.l.b16 %v2768
        %v3026 = vunpack.c.h.b16 %v2768
        %v3027 = vunpack.c.l.b16 %v2769
        %v3028 = vunpack.c.h.b16 %v2769
        %v3029 = vunpack.c.l.b16 %v2770
        %v3030 = vunpack.c.h.b16 %v2770
        %v3031 = vunpack.c.l.b16 %v2771
        %v3032 = vunpack.c.h.b16 %v2771
        %v3033 = vunpack.c.l.b16 %v2772
        %v3034 = vunpack.c.h.b16 %v2772
        %v3035 = vunpack.c.l.b16 %v2773
        %v3036 = vunpack.c.h.b16 %v2773
        %v3037 = vunpack.c.l.b16 %v2774
        %v3038 = vunpack.c.h.b16 %v2774
        %v3039 = vunpack.c.l.b16 %v2775
        %v3040 = vunpack.c.h.b16 %v2775
        %v3041 = vunpack.c.l.b16 %v2776
        %v3042 = vunpack.c.h.b16 %v2776
        %v3043 = vunpack.c.l.b16 %v2777
        %v3044 = vunpack.c.h.b16 %v2777
        %v3045 = vunpack.c.l.b16 %v2778
        %v3046 = vunpack.c.h.b16 %v2778
        %v3047 = vunpack.c.l.b16 %v2779
        %v3048 = vunpack.c.h.b16 %v2779
        %v3049 = vunpack.c.l.b16 %v2780
        %v3050 = vunpack.c.h.b16 %v2780
        %v3051 = vunpack.c.l.b16 %v2781
        %v3052 = vunpack.c.h.b16 %v2781
        %v3053 = vunpack.c.l.b16 %v2782
        %v3054 = vunpack.c.h.b16 %v2782
        %v3055 = vunpack.c.l.b16 %v2783
        %v3056 = vunpack.c.h.b16 %v2783
        %v3057 = vunpack.c.l.b16 %v2784
        %v3058 = vunpack.c.h.b16 %v2784
        %v3059 = vunpack.c.l.b16 %v2785
        %v3060 = vunpack.c.h.b16 %v2785
        %v3061 = vunpack.c.l.b16 %v2786
        %v3062 = vunpack.c.h.b16 %v2786
        %v3063 = vunpack.c.l.b16 %v2787
        %v3064 = vunpack.c.h.b16 %v2787
        %v3065 = vunpack.c.l.b16 %v2788
        %v3066 = vunpack.c.h.b16 %v2788
        %v3067 = vunpack.c.l.b16 %v2789
        %v3068 = vunpack.c.h.b16 %v2789
        %v3069 = vunpack.c.l.b16 %v2790
        %v3070 = vunpack.c.h.b16 %v2790
        %v3071 = vunpack.c.l.b16 %v2791
        %v3072 = vunpack.c.h.b16 %v2791
        %v3073 = vunpack.c.l.b16 %v2792
        %v3074 = vunpack.c.h.b16 %v2792
        %v3075 = vunpack.c.l.b16 %v2793
        %v3076 = vunpack.c.h.b16 %v2793
        %v3077 = vunpack.c.l.b16 %v2794
        %v3078 = vunpack.c.h.b16 %v2794
        %v3079 = vunpack.c.l.b16 %v2795
        %v3080 = vunpack.c.h.b16 %v2795
        %v3081 = vunpack.c.l.b16 %v2796
        %v3082 = vunpack.c.h.b16 %v2796
        %v3083 = vunpack.c.l.b16 %v2797
        %v3084 = vunpack.c.h.b16 %v2797
        %v3085 = vunpack.c.l.b16 %v2798
        %v3086 = vunpack.c.h.b16 %v2798
        %v3087 = vpack.c.b16 %v2927, %v2895
        %v3088 = vpack.c.b16 %v2928, %v2896
        %v3089 = vpack.c.b16 %v2929, %v2897
        %v3090 = vpack.c.b16 %v2930, %v2898
        %v3091 = vpack.c.b16 %v2931, %v2899
        %v3092 = vpack.c.b16 %v2932, %v2900
        %v3093 = vpack.c.b16 %v2933, %v2901
        %v3094 = vpack.c.b16 %v2934, %v2902
        %v3095 = vpack.c.b16 %v2935, %v2903
        %v3096 = vpack.c.b16 %v2936, %v2904
        %v3097 = vpack.c.b16 %v2937, %v2905
        %v3098 = vpack.c.b16 %v2938, %v2906
        %v3099 = vpack.c.b16 %v2939, %v2907
        %v3100 = vpack.c.b16 %v2940, %v2908
        %v3101 = vpack.c.b16 %v2941, %v2909
        %v3102 = vpack.c.b16 %v2942, %v2910
        %v3103 = vpack.c.b16 %v2943, %v2911
        %v3104 = vpack.c.b16 %v2944, %v2912
        %v3105 = vpack.c.b16 %v2945, %v2913
        %v3106 = vpack.c.b16 %v2946, %v2914
        %v3107 = vpack.c.b16 %v2947, %v2915
        %v3108 = vpack.c.b16 %v2948, %v2916
        %v3109 = vpack.c.b16 %v2949, %v2917
        %v3110 = vpack.c.b16 %v2950, %v2918
        %v3111 = vpack.c.b16 %v2951, %v2919
        %v3112 = vpack.c.b16 %v2952, %v2920
        %v3113 = vpack.c.b16 %v2953, %v2921
        %v3114 = vpack.c.b16 %v2954, %v2922
        %v3115 = vpack.c.b16 %v2955, %v2923
        %v3116 = vpack.c.b16 %v2956, %v2924
        %v3117 = vpack.c.b16 %v2957, %v2925
        %v3118 = vpack.c.b16 %v2958, %v2926
        %v3119 = vpack.c.b16 %v2991, %v2959
        %v3120 = vpack.c.b16 %v2992, %v2960
        %v3121 = vpack.c.b16 %v2993, %v2961
        %v3122 = vpack.c.b16 %v2994, %v2962
        %v3123 = vpack.c.b16 %v2995, %v2963
        %v3124 = vpack.c.b16 %v2996, %v2964
        %v3125 = vpack.c.b16 %v2997, %v2965
        %v3126 = vpack.c.b16 %v2998, %v2966
        %v3127 = vpack.c.b16 %v2999, %v2967
        %v3128 = vpack.c.b16 %v3000, %v2968
        %v3129 = vpack.c.b16 %v3001, %v2969
        %v3130 = vpack.c.b16 %v3002, %v2970
        %v3131 = vpack.c.b16 %v3003, %v2971
        %v3132 = vpack.c.b16 %v3004, %v2972
        %v3133 = vpack.c.b16 %v3005, %v2973
        %v3134 = vpack.c.b16 %v3006, %v2974
        %v3135 = vpack.c.b16 %v3007, %v2975
        %v3136 = vpack.c.b16 %v3008, %v2976
        %v3137 = vpack.c.b16 %v3009, %v2977
        %v3138 = vpack.c.b16 %v3010, %v2978
        %v3139 = vpack.c.b16 %v3011, %v2979
        %v3140 = vpack.c.b16 %v3012, %v2980
        %v3141 = vpack.c.b16 %v3013, %v2981
        %v3142 = vpack.c.b16 %v3014, %v2982
        %v3143 = vpack.c.b16 %v3015, %v2983
        %v3144 = vpack.c.b16 %v3016, %v2984
        %v3145 = vpack.c.b16 %v3017, %v2985
        %v3146 = vpack.c.b16 %v3018, %v2986
        %v3147 = vpack.c.b16 %v3019, %v2987
        %v3148 = vpack.c.b16 %v3020, %v2988
        %v3149 = vpack.c.b16 %v3021, %v2989
        %v3150 = vpack.c.b16 %v3022, %v2990
        %v3151 = vpack.c.b16 %v3055, %v3023
        %v3152 = vpack.c.b16 %v3056, %v3024
        %v3153 = vpack.c.b16 %v3057, %v3025
        %v3154 = vpack.c.b16 %v3058, %v3026
        %v3155 = vpack.c.b16 %v3059, %v3027
        %v3156 = vpack.c.b16 %v3060, %v3028
        %v3157 = vpack.c.b16 %v3061, %v3029
        %v3158 = vpack.c.b16 %v3062, %v3030
        %v3159 = vpack.c.b16 %v3063, %v3031
        %v3160 = vpack.c.b16 %v3064, %v3032
        %v3161 = vpack.c.b16 %v3065, %v3033
        %v3162 = vpack.c.b16 %v3066, %v3034
        %v3163 = vpack.c.b16 %v3067, %v3035
        %v3164 = vpack.c.b16 %v3068, %v3036
        %v3165 = vpack.c.b16 %v3069, %v3037
        %v3166 = vpack.c.b16 %v3070, %v3038
        %v3167 = vpack.c.b16 %v3071, %v3039
        %v3168 = vpack.c.b16 %v3072, %v3040
        %v3169 = vpack.c.b16 %v3073, %v3041
        %v3170 = vpack.c.b16 %v3074, %v3042
        %v3171 = vpack.c.b16 %v3075, %v3043
        %v3172 = vpack.c.b16 %v3076, %v3044
        %v3173 = vpack.c.b16 %v3077, %v3045
        %v3174 = vpack.c.b16 %v3078, %v3046
        %v3175 = vpack.c.b16 %v3079, %v3047
        %v3176 = vpack.c.b16 %v3080, %v3048
        %v3177 = vpack.c.b16 %v3081, %v3049
        %v3178 = vpack.c.b16 %v3082, %v3050
        %v3179 = vpack.c.b16 %v3083, %v3051
        %v3180 = vpack.c.b16 %v3084, %v3052
        %v3181 = vpack.c.b16 %v3085, %v3053
        %v3182 = vpack.c.b16 %v3086, %v3054
        %3279 = vmatprep.subr.bf16.mxu0 0
        %3280 = vmatpush1.bf16.msra.mxu0 0
        %3281 = vmatprep.subr.bf16.mxu0 0
        %3282 = vmatpush1.bf16.msra.mxu0 0
        %3283 = vmatprep.subr.bf16.mxu0 0
        %3284 = vmatpush1.bf16.msra.mxu0 0
        %3285 = vmatprep.subr.bf16.mxu0 0
        %3286 = vmatpush1.bf16.msra.mxu0 0
        %3287 = vmatprep.subr.bf16.mxu0 0
        %3288 = vmatpush1.bf16.msra.mxu0 0
        %3289 = vmatprep.subr.bf16.mxu0 %v3152
        %3290 = vmatpush1.bf16.msra.mxu0 %v3151
        %3291 = vmatprep.subr.bf16.mxu0 %v3120
        %3292 = vmatpush1.bf16.msra.mxu0 %v3119
        %3293 = vmatprep.subr.bf16.mxu0 %v3088
        %3294 = vmatpush1.bf16.msra.mxu0 %v3087
        %3295 = vmatprep.subr.bf16.mxu0 0
        %3296 = vmatpush2.bf16.msra.mxu0 0
        %3297 = vmatprep.subr.bf16.mxu0 0
        %3298 = vmatpush2.bf16.msra.mxu0 0
        %3299 = vmatprep.subr.bf16.mxu0 0
        %3300 = vmatpush2.bf16.msra.mxu0 0
        %3301 = vmatprep.subr.bf16.mxu0 0
        %3302 = vmatpush2.bf16.msra.mxu0 0
        %3303 = vmatprep.subr.bf16.mxu0 0
        %3304 = vmatpush2.bf16.msra.mxu0 0
        %3305 = vmatprep.subr.bf16.mxu0 0
        %3306 = vmatpush2.bf16.msra.mxu0 0
        %3307 = vmatprep.subr.bf16.mxu0 0
        %3308 = vmatpush2.bf16.msra.mxu0 0
        %3309 = vmatprep.subr.bf16.mxu0 0
        %3310 = vmatpush2.bf16.msra.mxu0 0
        %3311 = vmatprep.mubr.bf16.mxu0 0
        %3312 = vmatmul.mubr.bf16.gmra.mxu0 %v811
        %v3313 = vpop.f32.mrf.mxu0
        %v3314 = vadd.f32 0.0, %v3313
        %v3315 = vpop.f32.mrf.mxu0
        %v3316 = vadd.f32 0.0, %v3315
        %v3317 = vpop.f32.mrf.mxu0
        %v3318 = vpop.f32.mrf.mxu0
        %3319 = vdwg.mxu0
        %3320 = vmatprep.subr.bf16.mxu0 0
        %3321 = vmatpush1.bf16.msra.mxu0 0
        %3322 = vmatprep.subr.bf16.mxu0 0
        %3323 = vmatpush1.bf16.msra.mxu0 0
        %3324 = vmatprep.subr.bf16.mxu0 0
        %3325 = vmatpush1.bf16.msra.mxu0 0
        %3326 = vmatprep.subr.bf16.mxu0 0
        %3327 = vmatpush1.bf16.msra.mxu0 0
        %3328 = vmatprep.subr.bf16.mxu0 0
        %3329 = vmatpush1.bf16.msra.mxu0 0
        %3330 = vmatprep.subr.bf16.mxu0 %v3154
        %3331 = vmatpush1.bf16.msra.mxu0 %v3153
        %3332 = vmatprep.subr.bf16.mxu0 %v3122
        %3333 = vmatpush1.bf16.msra.mxu0 %v3121
        %3334 = vmatprep.subr.bf16.mxu0 %v3090
        %3335 = vmatpush1.bf16.msra.mxu0 %v3089
        %3336 = vmatprep.subr.bf16.mxu0 0
        %3337 = vmatpush2.bf16.msra.mxu0 0
        %3338 = vmatprep.subr.bf16.mxu0 0
        %3339 = vmatpush2.bf16.msra.mxu0 0
        %3340 = vmatprep.subr.bf16.mxu0 0
        %3341 = vmatpush2.bf16.msra.mxu0 0
        %3342 = vmatprep.subr.bf16.mxu0 0
        %3343 = vmatpush2.bf16.msra.mxu0 0
        %3344 = vmatprep.subr.bf16.mxu0 0
        %3345 = vmatpush2.bf16.msra.mxu0 0
        %3346 = vmatprep.subr.bf16.mxu0 0
        %3347 = vmatpush2.bf16.msra.mxu0 0
        %3348 = vmatprep.subr.bf16.mxu0 0
        %3349 = vmatpush2.bf16.msra.mxu0 0
        %3350 = vmatprep.subr.bf16.mxu0 0
        %3351 = vmatpush2.bf16.msra.mxu0 0
        %3352 = vmatprep.mubr.bf16.mxu0 0
        %3353 = vmatmul.mubr.bf16.gmra.mxu0 %v811
        %v3354 = vpop.f32.mrf.mxu0
        %v3355 = vadd.f32 0.0, %v3354
        %v3356 = vpop.f32.mrf.mxu0
        %v3357 = vadd.f32 0.0, %v3356
        %v3358 = vpop.f32.mrf.mxu0
        %v3359 = vpop.f32.mrf.mxu0
        %3360 = vdwg.mxu0
        %3361 = vmatprep.subr.bf16.mxu0 0
        %3362 = vmatpush1.bf16.msra.mxu0 0
        %3363 = vmatprep.subr.bf16.mxu0 0
        %3364 = vmatpush1.bf16.msra.mxu0 0
        %3365 = vmatprep.subr.bf16.mxu0 0
        %3366 = vmatpush1.bf16.msra.mxu0 0
        %3367 = vmatprep.subr.bf16.mxu0 0
        %3368 = vmatpush1.bf16.msra.mxu0 0
        %3369 = vmatprep.subr.bf16.mxu0 0
        %3370 = vmatpush1.bf16.msra.mxu0 0
        %3371 = vmatprep.subr.bf16.mxu0 %v3156
        %3372 = vmatpush1.bf16.msra.mxu0 %v3155
        %3373 = vmatprep.subr.bf16.mxu0 %v3124
        %3374 = vmatpush1.bf16.msra.mxu0 %v3123
        %3375 = vmatprep.subr.bf16.mxu0 %v3092
        %3376 = vmatpush1.bf16.msra.mxu0 %v3091
        %3377 = vmatprep.subr.bf16.mxu0 0
        %3378 = vmatpush2.bf16.msra.mxu0 0
        %3379 = vmatprep.subr.bf16.mxu0 0
        %3380 = vmatpush2.bf16.msra.mxu0 0
        %3381 = vmatprep.subr.bf16.mxu0 0
        %3382 = vmatpush2.bf16.msra.mxu0 0
        %3383 = vmatprep.subr.bf16.mxu0 0
        %3384 = vmatpush2.bf16.msra.mxu0 0
        %3385 = vmatprep.subr.bf16.mxu0 0
        %3386 = vmatpush2.bf16.msra.mxu0 0
        %3387 = vmatprep.subr.bf16.mxu0 0
        %3388 = vmatpush2.bf16.msra.mxu0 0
        %3389 = vmatprep.subr.bf16.mxu0 0
        %3390 = vmatpush2.bf16.msra.mxu0 0
        %3391 = vmatprep.subr.bf16.mxu0 0
        %3392 = vmatpush2.bf16.msra.mxu0 0
        %3393 = vmatprep.mubr.bf16.mxu0 0
        %3394 = vmatmul.mubr.bf16.gmra.mxu0 %v811
        %v3395 = vpop.f32.mrf.mxu0
        %v3396 = vadd.f32 0.0, %v3395
        %v3397 = vpop.f32.mrf.mxu0
        %v3398 = vadd.f32 0.0, %v3397
        %v3399 = vpop.f32.mrf.mxu0
        %v3400 = vpop.f32.mrf.mxu0
        %3401 = vdwg.mxu0
        %3402 = vmatprep.subr.bf16.mxu0 0
        %3403 = vmatpush1.bf16.msra.mxu0 0
        %3404 = vmatprep.subr.bf16.mxu0 0
        %3405 = vmatpush1.bf16.msra.mxu0 0
        %3406 = vmatprep.subr.bf16.mxu0 0
        %3407 = vmatpush1.bf16.msra.mxu0 0
        %3408 = vmatprep.subr.bf16.mxu0 0
        %3409 = vmatpush1.bf16.msra.mxu0 0
        %3410 = vmatprep.subr.bf16.mxu0 0
        %3411 = vmatpush1.bf16.msra.mxu0 0
        %3412 = vmatprep.subr.bf16.mxu0 %v3158
        %3413 = vmatpush1.bf16.msra.mxu0 %v3157
        %3414 = vmatprep.subr.bf16.mxu0 %v3126
        %3415 = vmatpush1.bf16.msra.mxu0 %v3125
        %3416 = vmatprep.subr.bf16.mxu0 %v3094
        %3417 = vmatpush1.bf16.msra.mxu0 %v3093
        %3418 = vmatprep.subr.bf16.mxu0 0
        %3419 = vmatpush2.bf16.msra.mxu0 0
        %3420 = vmatprep.subr.bf16.mxu0 0
        %3421 = vmatpush2.bf16.msra.mxu0 0
        %3422 = vmatprep.subr.bf16.mxu0 0
        %3423 = vmatpush2.bf16.msra.mxu0 0
        %3424 = vmatprep.subr.bf16.mxu0 0
        %3425 = vmatpush2.bf16.msra.mxu0 0
        %3426 = vmatprep.subr.bf16.mxu0 0
        %3427 = vmatpush2.bf16.msra.mxu0 0
        %3428 = vmatprep.subr.bf16.mxu0 0
        %3429 = vmatpush2.bf16.msra.mxu0 0
        %3430 = vmatprep.subr.bf16.mxu0 0
        %3431 = vmatpush2.bf16.msra.mxu0 0
        %3432 = vmatprep.subr.bf16.mxu0 0
        %3433 = vmatpush2.bf16.msra.mxu0 0
        %3434 = vmatprep.mubr.bf16.mxu0 0
        %3435 = vmatmul.mubr.bf16.gmra.mxu0 %v811
        %v3436 = vpop.f32.mrf.mxu0
        %v3437 = vadd.f32 0.0, %v3436
        %v3438 = vpop.f32.mrf.mxu0
        %v3439 = vadd.f32 0.0, %v3438
        %v3440 = vpop.f32.mrf.mxu0
        %v3441 = vpop.f32.mrf.mxu0
        %3442 = vdwg.mxu0
        %3443 = vmatprep.subr.bf16.mxu0 0
        %3444 = vmatpush1.bf16.msra.mxu0 0
        %3445 = vmatprep.subr.bf16.mxu0 0
        %3446 = vmatpush1.bf16.msra.mxu0 0
        %3447 = vmatprep.subr.bf16.mxu0 0
        %3448 = vmatpush1.bf16.msra.mxu0 0
        %3449 = vmatprep.subr.bf16.mxu0 0
        %3450 = vmatpush1.bf16.msra.mxu0 0
        %3451 = vmatprep.subr.bf16.mxu0 0
        %3452 = vmatpush1.bf16.msra.mxu0 0
        %3453 = vmatprep.subr.bf16.mxu0 %v3160
        %3454 = vmatpush1.bf16.msra.mxu0 %v3159
        %3455 = vmatprep.subr.bf16.mxu0 %v3128
        %3456 = vmatpush1.bf16.msra.mxu0 %v3127
        %3457 = vmatprep.subr.bf16.mxu0 %v3096
        %3458 = vmatpush1.bf16.msra.mxu0 %v3095
        %3459 = vmatprep.subr.bf16.mxu0 0
        %3460 = vmatpush2.bf16.msra.mxu0 0
        %3461 = vmatprep.subr.bf16.mxu0 0
        %3462 = vmatpush2.bf16.msra.mxu0 0
        %3463 = vmatprep.subr.bf16.mxu0 0
        %3464 = vmatpush2.bf16.msra.mxu0 0
        %3465 = vmatprep.subr.bf16.mxu0 0
        %3466 = vmatpush2.bf16.msra.mxu0 0
        %3467 = vmatprep.subr.bf16.mxu0 0
        %3468 = vmatpush2.bf16.msra.mxu0 0
        %3469 = vmatprep.subr.bf16.mxu0 0
        %3470 = vmatpush2.bf16.msra.mxu0 0
        %3471 = vmatprep.subr.bf16.mxu0 0
        %3472 = vmatpush2.bf16.msra.mxu0 0
        %3473 = vmatprep.subr.bf16.mxu0 0
        %3474 = vmatpush2.bf16.msra.mxu0 0
        %3475 = vmatprep.mubr.bf16.mxu0 0
        %3476 = vmatmul.mubr.bf16.gmra.mxu0 %v811
        %v3477 = vpop.f32.mrf.mxu0
        %v3478 = vadd.f32 0.0, %v3477
        %v3479 = vpop.f32.mrf.mxu0
        %v3480 = vadd.f32 0.0, %v3479
        %v3481 = vpop.f32.mrf.mxu0
        %v3482 = vpop.f32.mrf.mxu0
        %3483 = vdwg.mxu0
        %3484 = vmatprep.subr.bf16.mxu0 0
        %3485 = vmatpush1.bf16.msra.mxu0 0
        %3486 = vmatprep.subr.bf16.mxu0 0
        %3487 = vmatpush1.bf16.msra.mxu0 0
        %3488 = vmatprep.subr.bf16.mxu0 0
        %3489 = vmatpush1.bf16.msra.mxu0 0
        %3490 = vmatprep.subr.bf16.mxu0 0
        %3491 = vmatpush1.bf16.msra.mxu0 0
        %3492 = vmatprep.subr.bf16.mxu0 0
        %3493 = vmatpush1.bf16.msra.mxu0 0
        %3494 = vmatprep.subr.bf16.mxu0 %v3162
        %3495 = vmatpush1.bf16.msra.mxu0 %v3161
        %3496 = vmatprep.subr.bf16.mxu0 %v3130
        %3497 = vmatpush1.bf16.msra.mxu0 %v3129
        %3498 = vmatprep.subr.bf16.mxu0 %v3098
        %3499 = vmatpush1.bf16.msra.mxu0 %v3097
        %3500 = vmatprep.subr.bf16.mxu0 0
        %3501 = vmatpush2.bf16.msra.mxu0 0
        %3502 = vmatprep.subr.bf16.mxu0 0
        %3503 = vmatpush2.bf16.msra.mxu0 0
        %3504 = vmatprep.subr.bf16.mxu0 0
        %3505 = vmatpush2.bf16.msra.mxu0 0
        %3506 = vmatprep.subr.bf16.mxu0 0
        %3507 = vmatpush2.bf16.msra.mxu0 0
        %3508 = vmatprep.subr.bf16.mxu0 0
        %3509 = vmatpush2.bf16.msra.mxu0 0
        %3510 = vmatprep.subr.bf16.mxu0 0
        %3511 = vmatpush2.bf16.msra.mxu0 0
        %3512 = vmatprep.subr.bf16.mxu0 0
        %3513 = vmatpush2.bf16.msra.mxu0 0
        %3514 = vmatprep.subr.bf16.mxu0 0
        %3515 = vmatpush2.bf16.msra.mxu0 0
        %3516 = vmatprep.mubr.bf16.mxu0 0
        %3517 = vmatmul.mubr.bf16.gmra.mxu0 %v811
        %v3518 = vpop.f32.mrf.mxu0
        %v3519 = vadd.f32 0.0, %v3518
        %v3520 = vpop.f32.mrf.mxu0
        %v3521 = vadd.f32 0.0, %v3520
        %v3522 = vpop.f32.mrf.mxu0
        %v3523 = vpop.f32.mrf.mxu0
        %3524 = vdwg.mxu0
        %3525 = vmatprep.subr.bf16.mxu0 0
        %3526 = vmatpush1.bf16.msra.mxu0 0
        %3527 = vmatprep.subr.bf16.mxu0 0
        %3528 = vmatpush1.bf16.msra.mxu0 0
        %3529 = vmatprep.subr.bf16.mxu0 0
        %3530 = vmatpush1.bf16.msra.mxu0 0
        %3531 = vmatprep.subr.bf16.mxu0 0
        %3532 = vmatpush1.bf16.msra.mxu0 0
        %3533 = vmatprep.subr.bf16.mxu0 0
        %3534 = vmatpush1.bf16.msra.mxu0 0
        %3535 = vmatprep.subr.bf16.mxu0 %v3164
        %3536 = vmatpush1.bf16.msra.mxu0 %v3163
        %3537 = vmatprep.subr.bf16.mxu0 %v3132
        %3538 = vmatpush1.bf16.msra.mxu0 %v3131
        %3539 = vmatprep.subr.bf16.mxu0 %v3100
        %3540 = vmatpush1.bf16.msra.mxu0 %v3099
        %3541 = vmatprep.subr.bf16.mxu0 0
        %3542 = vmatpush2.bf16.msra.mxu0 0
        %3543 = vmatprep.subr.bf16.mxu0 0
        %3544 = vmatpush2.bf16.msra.mxu0 0
        %3545 = vmatprep.subr.bf16.mxu0 0
        %3546 = vmatpush2.bf16.msra.mxu0 0
        %3547 = vmatprep.subr.bf16.mxu0 0
        %3548 = vmatpush2.bf16.msra.mxu0 0
        %3549 = vmatprep.subr.bf16.mxu0 0
        %3550 = vmatpush2.bf16.msra.mxu0 0
        %3551 = vmatprep.subr.bf16.mxu0 0
        %3552 = vmatpush2.bf16.msra.mxu0 0
        %3553 = vmatprep.subr.bf16.mxu0 0
        %3554 = vmatpush2.bf16.msra.mxu0 0
        %3555 = vmatprep.subr.bf16.mxu0 0
        %3556 = vmatpush2.bf16.msra.mxu0 0
        %3557 = vmatprep.mubr.bf16.mxu0 0
        %3558 = vmatmul.mubr.bf16.gmra.mxu0 %v811
        %v3559 = vpop.f32.mrf.mxu0
        %v3560 = vadd.f32 0.0, %v3559
        %v3561 = vpop.f32.mrf.mxu0
        %v3562 = vadd.f32 0.0, %v3561
        %v3563 = vpop.f32.mrf.mxu0
        %v3564 = vpop.f32.mrf.mxu0
        %3565 = vdwg.mxu0
        %3566 = vmatprep.subr.bf16.mxu0 0
        %3567 = vmatpush1.bf16.msra.mxu0 0
        %3568 = vmatprep.subr.bf16.mxu0 0
        %3569 = vmatpush1.bf16.msra.mxu0 0
        %3570 = vmatprep.subr.bf16.mxu0 0
        %3571 = vmatpush1.bf16.msra.mxu0 0
        %3572 = vmatprep.subr.bf16.mxu0 0
        %3573 = vmatpush1.bf16.msra.mxu0 0
        %3574 = vmatprep.subr.bf16.mxu0 0
        %3575 = vmatpush1.bf16.msra.mxu0 0
        %3576 = vmatprep.subr.bf16.mxu0 %v3166
        %3577 = vmatpush1.bf16.msra.mxu0 %v3165
        %3578 = vmatprep.subr.bf16.mxu0 %v3134
        %3579 = vmatpush1.bf16.msra.mxu0 %v3133
        %3580 = vmatprep.subr.bf16.mxu0 %v3102
        %3581 = vmatpush1.bf16.msra.mxu0 %v3101
        %3582 = vmatprep.subr.bf16.mxu0 0
        %3583 = vmatpush2.bf16.msra.mxu0 0
        %3584 = vmatprep.subr.bf16.mxu0 0
        %3585 = vmatpush2.bf16.msra.mxu0 0
        %3586 = vmatprep.subr.bf16.mxu0 0
        %3587 = vmatpush2.bf16.msra.mxu0 0
        %3588 = vmatprep.subr.bf16.mxu0 0
        %3589 = vmatpush2.bf16.msra.mxu0 0
        %3590 = vmatprep.subr.bf16.mxu0 0
        %3591 = vmatpush2.bf16.msra.mxu0 0
        %3592 = vmatprep.subr.bf16.mxu0 0
        %3593 = vmatpush2.bf16.msra.mxu0 0
        %3594 = vmatprep.subr.bf16.mxu0 0
        %3595 = vmatpush2.bf16.msra.mxu0 0
        %3596 = vmatprep.subr.bf16.mxu0 0
        %3597 = vmatpush2.bf16.msra.mxu0 0
        %3598 = vmatprep.mubr.bf16.mxu0 0
        %3599 = vmatmul.mubr.bf16.gmra.mxu0 %v811
        %v3600 = vpop.f32.mrf.mxu0
        %v3601 = vadd.f32 0.0, %v3600
        %v3602 = vpop.f32.mrf.mxu0
        %v3603 = vadd.f32 0.0, %v3602
        %v3604 = vpop.f32.mrf.mxu0
        %v3605 = vpop.f32.mrf.mxu0
        %3606 = vdwg.mxu0
        %3607 = vmatprep.subr.bf16.mxu0 0
        %3608 = vmatpush1.bf16.msra.mxu0 0
        %3609 = vmatprep.subr.bf16.mxu0 0
        %3610 = vmatpush1.bf16.msra.mxu0 0
        %3611 = vmatprep.subr.bf16.mxu0 0
        %3612 = vmatpush1.bf16.msra.mxu0 0
        %3613 = vmatprep.subr.bf16.mxu0 0
        %3614 = vmatpush1.bf16.msra.mxu0 0
        %3615 = vmatprep.subr.bf16.mxu0 0
        %3616 = vmatpush1.bf16.msra.mxu0 0
        %3617 = vmatprep.subr.bf16.mxu0 %v3168
        %3618 = vmatpush1.bf16.msra.mxu0 %v3167
        %3619 = vmatprep.subr.bf16.mxu0 %v3136
        %3620 = vmatpush1.bf16.msra.mxu0 %v3135
        %3621 = vmatprep.subr.bf16.mxu0 %v3104
        %3622 = vmatpush1.bf16.msra.mxu0 %v3103
        %3623 = vmatprep.subr.bf16.mxu0 0
        %3624 = vmatpush2.bf16.msra.mxu0 0
        %3625 = vmatprep.subr.bf16.mxu0 0
        %3626 = vmatpush2.bf16.msra.mxu0 0
        %3627 = vmatprep.subr.bf16.mxu0 0
        %3628 = vmatpush2.bf16.msra.mxu0 0
        %3629 = vmatprep.subr.bf16.mxu0 0
        %3630 = vmatpush2.bf16.msra.mxu0 0
        %3631 = vmatprep.subr.bf16.mxu0 0
        %3632 = vmatpush2.bf16.msra.mxu0 0
        %3633 = vmatprep.subr.bf16.mxu0 0
        %3634 = vmatpush2.bf16.msra.mxu0 0
        %3635 = vmatprep.subr.bf16.mxu0 0
        %3636 = vmatpush2.bf16.msra.mxu0 0
        %3637 = vmatprep.subr.bf16.mxu0 0
        %3638 = vmatpush2.bf16.msra.mxu0 0
        %3639 = vmatprep.mubr.bf16.mxu0 0
        %3640 = vmatmul.mubr.bf16.gmra.mxu0 %v811
        %v3641 = vpop.f32.mrf.mxu0
        %v3642 = vadd.f32 0.0, %v3641
        %v3643 = vpop.f32.mrf.mxu0
        %v3644 = vadd.f32 0.0, %v3643
        %v3645 = vpop.f32.mrf.mxu0
        %v3646 = vpop.f32.mrf.mxu0
        %3647 = vdwg.mxu0
        %3648 = vmatprep.subr.bf16.mxu0 0
        %3649 = vmatpush1.bf16.msra.mxu0 0
        %3650 = vmatprep.subr.bf16.mxu0 0
        %3651 = vmatpush1.bf16.msra.mxu0 0
        %3652 = vmatprep.subr.bf16.mxu0 0
        %3653 = vmatpush1.bf16.msra.mxu0 0
        %3654 = vmatprep.subr.bf16.mxu0 0
        %3655 = vmatpush1.bf16.msra.mxu0 0
        %3656 = vmatprep.subr.bf16.mxu0 0
        %3657 = vmatpush1.bf16.msra.mxu0 0
        %3658 = vmatprep.subr.bf16.mxu0 %v3170
        %3659 = vmatpush1.bf16.msra.mxu0 %v3169
        %3660 = vmatprep.subr.bf16.mxu0 %v3138
        %3661 = vmatpush1.bf16.msra.mxu0 %v3137
        %3662 = vmatprep.subr.bf16.mxu0 %v3106
        %3663 = vmatpush1.bf16.msra.mxu0 %v3105
        %3664 = vmatprep.subr.bf16.mxu0 0
        %3665 = vmatpush2.bf16.msra.mxu0 0
        %3666 = vmatprep.subr.bf16.mxu0 0
        %3667 = vmatpush2.bf16.msra.mxu0 0
        %3668 = vmatprep.subr.bf16.mxu0 0
        %3669 = vmatpush2.bf16.msra.mxu0 0
        %3670 = vmatprep.subr.bf16.mxu0 0
        %3671 = vmatpush2.bf16.msra.mxu0 0
        %3672 = vmatprep.subr.bf16.mxu0 0
        %3673 = vmatpush2.bf16.msra.mxu0 0
        %3674 = vmatprep.subr.bf16.mxu0 0
        %3675 = vmatpush2.bf16.msra.mxu0 0
        %3676 = vmatprep.subr.bf16.mxu0 0
        %3677 = vmatpush2.bf16.msra.mxu0 0
        %3678 = vmatprep.subr.bf16.mxu0 0
        %3679 = vmatpush2.bf16.msra.mxu0 0
        %3680 = vmatprep.mubr.bf16.mxu0 0
        %3681 = vmatmul.mubr.bf16.gmra.mxu0 %v811
        %v3682 = vpop.f32.mrf.mxu0
        %v3683 = vadd.f32 0.0, %v3682
        %v3684 = vpop.f32.mrf.mxu0
        %v3685 = vadd.f32 0.0, %v3684
        %v3686 = vpop.f32.mrf.mxu0
        %v3687 = vpop.f32.mrf.mxu0
        %3688 = vdwg.mxu0
        %3689 = vmatprep.subr.bf16.mxu0 0
        %3690 = vmatpush1.bf16.msra.mxu0 0
        %3691 = vmatprep.subr.bf16.mxu0 0
        %3692 = vmatpush1.bf16.msra.mxu0 0
        %3693 = vmatprep.subr.bf16.mxu0 0
        %3694 = vmatpush1.bf16.msra.mxu0 0
        %3695 = vmatprep.subr.bf16.mxu0 0
        %3696 = vmatpush1.bf16.msra.mxu0 0
        %3697 = vmatprep.subr.bf16.mxu0 0
        %3698 = vmatpush1.bf16.msra.mxu0 0
        %3699 = vmatprep.subr.bf16.mxu0 %v3172
        %3700 = vmatpush1.bf16.msra.mxu0 %v3171
        %3701 = vmatprep.subr.bf16.mxu0 %v3140
        %3702 = vmatpush1.bf16.msra.mxu0 %v3139
        %3703 = vmatprep.subr.bf16.mxu0 %v3108
        %3704 = vmatpush1.bf16.msra.mxu0 %v3107
        %3705 = vmatprep.subr.bf16.mxu0 0
        %3706 = vmatpush2.bf16.msra.mxu0 0
        %3707 = vmatprep.subr.bf16.mxu0 0
        %3708 = vmatpush2.bf16.msra.mxu0 0
        %3709 = vmatprep.subr.bf16.mxu0 0
        %3710 = vmatpush2.bf16.msra.mxu0 0
        %3711 = vmatprep.subr.bf16.mxu0 0
        %3712 = vmatpush2.bf16.msra.mxu0 0
        %3713 = vmatprep.subr.bf16.mxu0 0
        %3714 = vmatpush2.bf16.msra.mxu0 0
        %3715 = vmatprep.subr.bf16.mxu0 0
        %3716 = vmatpush2.bf16.msra.mxu0 0
        %3717 = vmatprep.subr.bf16.mxu0 0
        %3718 = vmatpush2.bf16.msra.mxu0 0
        %3719 = vmatprep.subr.bf16.mxu0 0
        %3720 = vmatpush2.bf16.msra.mxu0 0
        %3721 = vmatprep.mubr.bf16.mxu0 0
        %3722 = vmatmul.mubr.bf16.gmra.mxu0 %v811
        %v3723 = vpop.f32.mrf.mxu0
        %v3724 = vadd.f32 0.0, %v3723
        %v3725 = vpop.f32.mrf.mxu0
        %v3726 = vadd.f32 0.0, %v3725
        %v3727 = vpop.f32.mrf.mxu0
        %v3728 = vpop.f32.mrf.mxu0
        %3729 = vdwg.mxu0
        %3730 = vmatprep.subr.bf16.mxu0 0
        %3731 = vmatpush1.bf16.msra.mxu0 0
        %3732 = vmatprep.subr.bf16.mxu0 0
        %3733 = vmatpush1.bf16.msra.mxu0 0
        %3734 = vmatprep.subr.bf16.mxu0 0
        %3735 = vmatpush1.bf16.msra.mxu0 0
        %3736 = vmatprep.subr.bf16.mxu0 0
        %3737 = vmatpush1.bf16.msra.mxu0 0
        %3738 = vmatprep.subr.bf16.mxu0 0
        %3739 = vmatpush1.bf16.msra.mxu0 0
        %3740 = vmatprep.subr.bf16.mxu0 %v3174
        %3741 = vmatpush1.bf16.msra.mxu0 %v3173
        %3742 = vmatprep.subr.bf16.mxu0 %v3142
        %3743 = vmatpush1.bf16.msra.mxu0 %v3141
        %3744 = vmatprep.subr.bf16.mxu0 %v3110
        %3745 = vmatpush1.bf16.msra.mxu0 %v3109
        %3746 = vmatprep.subr.bf16.mxu0 0
        %3747 = vmatpush2.bf16.msra.mxu0 0
        %3748 = vmatprep.subr.bf16.mxu0 0
        %3749 = vmatpush2.bf16.msra.mxu0 0
        %3750 = vmatprep.subr.bf16.mxu0 0
        %3751 = vmatpush2.bf16.msra.mxu0 0
        %3752 = vmatprep.subr.bf16.mxu0 0
        %3753 = vmatpush2.bf16.msra.mxu0 0
        %3754 = vmatprep.subr.bf16.mxu0 0
        %3755 = vmatpush2.bf16.msra.mxu0 0
        %3756 = vmatprep.subr.bf16.mxu0 0
        %3757 = vmatpush2.bf16.msra.mxu0 0
        %3758 = vmatprep.subr.bf16.mxu0 0
        %3759 = vmatpush2.bf16.msra.mxu0 0
        %3760 = vmatprep.subr.bf16.mxu0 0
        %3761 = vmatpush2.bf16.msra.mxu0 0
        %3762 = vmatprep.mubr.bf16.mxu0 0
        %3763 = vmatmul.mubr.bf16.gmra.mxu0 %v811
        %v3764 = vpop.f32.mrf.mxu0
        %v3765 = vadd.f32 0.0, %v3764
        %v3766 = vpop.f32.mrf.mxu0
        %v3767 = vadd.f32 0.0, %v3766
        %v3768 = vpop.f32.mrf.mxu0
        %v3769 = vpop.f32.mrf.mxu0
        %3770 = vdwg.mxu0
        %3771 = vmatprep.subr.bf16.mxu0 0
        %3772 = vmatpush1.bf16.msra.mxu0 0
        %3773 = vmatprep.subr.bf16.mxu0 0
        %3774 = vmatpush1.bf16.msra.mxu0 0
        %3775 = vmatprep.subr.bf16.mxu0 0
        %3776 = vmatpush1.bf16.msra.mxu0 0
        %3777 = vmatprep.subr.bf16.mxu0 0
        %3778 = vmatpush1.bf16.msra.mxu0 0
        %3779 = vmatprep.subr.bf16.mxu0 0
        %3780 = vmatpush1.bf16.msra.mxu0 0
        %3781 = vmatprep.subr.bf16.mxu0 %v3176
        %3782 = vmatpush1.bf16.msra.mxu0 %v3175
        %3783 = vmatprep.subr.bf16.mxu0 %v3144
        %3784 = vmatpush1.bf16.msra.mxu0 %v3143
        %3785 = vmatprep.subr.bf16.mxu0 %v3112
        %3786 = vmatpush1.bf16.msra.mxu0 %v3111
        %3787 = vmatprep.subr.bf16.mxu0 0
        %3788 = vmatpush2.bf16.msra.mxu0 0
        %3789 = vmatprep.subr.bf16.mxu0 0
        %3790 = vmatpush2.bf16.msra.mxu0 0
        %3791 = vmatprep.subr.bf16.mxu0 0
        %3792 = vmatpush2.bf16.msra.mxu0 0
        %3793 = vmatprep.subr.bf16.mxu0 0
        %3794 = vmatpush2.bf16.msra.mxu0 0
        %3795 = vmatprep.subr.bf16.mxu0 0
        %3796 = vmatpush2.bf16.msra.mxu0 0
        %3797 = vmatprep.subr.bf16.mxu0 0
        %3798 = vmatpush2.bf16.msra.mxu0 0
        %3799 = vmatprep.subr.bf16.mxu0 0
        %3800 = vmatpush2.bf16.msra.mxu0 0
        %3801 = vmatprep.subr.bf16.mxu0 0
        %3802 = vmatpush2.bf16.msra.mxu0 0
        %3803 = vmatprep.mubr.bf16.mxu0 0
        %3804 = vmatmul.mubr.bf16.gmra.mxu0 %v811
        %v3805 = vpop.f32.mrf.mxu0
        %v3806 = vadd.f32 0.0, %v3805
        %v3807 = vpop.f32.mrf.mxu0
        %v3808 = vadd.f32 0.0, %v3807
        %v3809 = vpop.f32.mrf.mxu0
        %v3810 = vpop.f32.mrf.mxu0
        %3811 = vdwg.mxu0
        %3812 = vmatprep.subr.bf16.mxu0 0
        %3813 = vmatpush1.bf16.msra.mxu0 0
        %3814 = vmatprep.subr.bf16.mxu0 0
        %3815 = vmatpush1.bf16.msra.mxu0 0
        %3816 = vmatprep.subr.bf16.mxu0 0
        %3817 = vmatpush1.bf16.msra.mxu0 0
        %3818 = vmatprep.subr.bf16.mxu0 0
        %3819 = vmatpush1.bf16.msra.mxu0 0
        %3820 = vmatprep.subr.bf16.mxu0 0
        %3821 = vmatpush1.bf16.msra.mxu0 0
        %3822 = vmatprep.subr.bf16.mxu0 %v3178
        %3823 = vmatpush1.bf16.msra.mxu0 %v3177
        %3824 = vmatprep.subr.bf16.mxu0 %v3146
        %3825 = vmatpush1.bf16.msra.mxu0 %v3145
        %3826 = vmatprep.subr.bf16.mxu0 %v3114
        %3827 = vmatpush1.bf16.msra.mxu0 %v3113
        %3828 = vmatprep.subr.bf16.mxu0 0
        %3829 = vmatpush2.bf16.msra.mxu0 0
        %3830 = vmatprep.subr.bf16.mxu0 0
        %3831 = vmatpush2.bf16.msra.mxu0 0
        %3832 = vmatprep.subr.bf16.mxu0 0
        %3833 = vmatpush2.bf16.msra.mxu0 0
        %3834 = vmatprep.subr.bf16.mxu0 0
        %3835 = vmatpush2.bf16.msra.mxu0 0
        %3836 = vmatprep.subr.bf16.mxu0 0
        %3837 = vmatpush2.bf16.msra.mxu0 0
        %3838 = vmatprep.subr.bf16.mxu0 0
        %3839 = vmatpush2.bf16.msra.mxu0 0
        %3840 = vmatprep.subr.bf16.mxu0 0
        %3841 = vmatpush2.bf16.msra.mxu0 0
        %3842 = vmatprep.subr.bf16.mxu0 0
        %3843 = vmatpush2.bf16.msra.mxu0 0
        %3844 = vmatprep.mubr.bf16.mxu0 0
        %3845 = vmatmul.mubr.bf16.gmra.mxu0 %v811
        %v3846 = vpop.f32.mrf.mxu0
        %v3847 = vadd.f32 0.0, %v3846
        %v3848 = vpop.f32.mrf.mxu0
        %v3849 = vadd.f32 0.0, %v3848
        %v3850 = vpop.f32.mrf.mxu0
        %v3851 = vpop.f32.mrf.mxu0
        %3852 = vdwg.mxu0
        %3853 = vmatprep.subr.bf16.mxu0 0
        %3854 = vmatpush1.bf16.msra.mxu0 0
        %3855 = vmatprep.subr.bf16.mxu0 0
        %3856 = vmatpush1.bf16.msra.mxu0 0
        %3857 = vmatprep.subr.bf16.mxu0 0
        %3858 = vmatpush1.bf16.msra.mxu0 0
        %3859 = vmatprep.subr.bf16.mxu0 0
        %3860 = vmatpush1.bf16.msra.mxu0 0
        %3861 = vmatprep.subr.bf16.mxu0 0
        %3862 = vmatpush1.bf16.msra.mxu0 0
        %3863 = vmatprep.subr.bf16.mxu0 %v3180
        %3864 = vmatpush1.bf16.msra.mxu0 %v3179
        %3865 = vmatprep.subr.bf16.mxu0 %v3148
        %3866 = vmatpush1.bf16.msra.mxu0 %v3147
        %3867 = vmatprep.subr.bf16.mxu0 %v3116
        %3868 = vmatpush1.bf16.msra.mxu0 %v3115
        %3869 = vmatprep.subr.bf16.mxu0 0
        %3870 = vmatpush2.bf16.msra.mxu0 0
        %3871 = vmatprep.subr.bf16.mxu0 0
        %3872 = vmatpush2.bf16.msra.mxu0 0
        %3873 = vmatprep.subr.bf16.mxu0 0
        %3874 = vmatpush2.bf16.msra.mxu0 0
        %3875 = vmatprep.subr.bf16.mxu0 0
        %3876 = vmatpush2.bf16.msra.mxu0 0
        %3877 = vmatprep.subr.bf16.mxu0 0
        %3878 = vmatpush2.bf16.msra.mxu0 0
        %3879 = vmatprep.subr.bf16.mxu0 0
        %3880 = vmatpush2.bf16.msra.mxu0 0
        %3881 = vmatprep.subr.bf16.mxu0 0
        %3882 = vmatpush2.bf16.msra.mxu0 0
        %3883 = vmatprep.subr.bf16.mxu0 0
        %3884 = vmatpush2.bf16.msra.mxu0 0
        %3885 = vmatprep.mubr.bf16.mxu0 0
        %3886 = vmatmul.mubr.bf16.gmra.mxu0 %v811
        %v3887 = vpop.f32.mrf.mxu0
        %v3888 = vadd.f32 0.0, %v3887
        %v3889 = vpop.f32.mrf.mxu0
        %v3890 = vadd.f32 0.0, %v3889
        %v3891 = vpop.f32.mrf.mxu0
        %v3892 = vpop.f32.mrf.mxu0
        %3893 = vdwg.mxu0
        %3894 = vmatprep.subr.bf16.mxu0 0
        %3895 = vmatpush1.bf16.msra.mxu0 0
        %3896 = vmatprep.subr.bf16.mxu0 0
        %3897 = vmatpush1.bf16.msra.mxu0 0
        %3898 = vmatprep.subr.bf16.mxu0 0
        %3899 = vmatpush1.bf16.msra.mxu0 0
        %3900 = vmatprep.subr.bf16.mxu0 0
        %3901 = vmatpush1.bf16.msra.mxu0 0
        %3902 = vmatprep.subr.bf16.mxu0 0
        %3903 = vmatpush1.bf16.msra.mxu0 0
        %3904 = vmatprep.subr.bf16.mxu0 %v3182
        %3905 = vmatpush1.bf16.msra.mxu0 %v3181
        %3906 = vmatprep.subr.bf16.mxu0 %v3150
        %3907 = vmatpush1.bf16.msra.mxu0 %v3149
        %3908 = vmatprep.subr.bf16.mxu0 %v3118
        %3909 = vmatpush1.bf16.msra.mxu0 %v3117
        %3910 = vmatprep.subr.bf16.mxu0 0
        %3911 = vmatpush2.bf16.msra.mxu0 0
        %3912 = vmatprep.subr.bf16.mxu0 0
        %3913 = vmatpush2.bf16.msra.mxu0 0
        %3914 = vmatprep.subr.bf16.mxu0 0
        %3915 = vmatpush2.bf16.msra.mxu0 0
        %3916 = vmatprep.subr.bf16.mxu0 0
        %3917 = vmatpush2.bf16.msra.mxu0 0
        %3918 = vmatprep.subr.bf16.mxu0 0
        %3919 = vmatpush2.bf16.msra.mxu0 0
        %3920 = vmatprep.subr.bf16.mxu0 0
        %3921 = vmatpush2.bf16.msra.mxu0 0
        %3922 = vmatprep.subr.bf16.mxu0 0
        %3923 = vmatpush2.bf16.msra.mxu0 0
        %3924 = vmatprep.subr.bf16.mxu0 0
        %3925 = vmatpush2.bf16.msra.mxu0 0
        %3926 = vmatprep.mubr.bf16.mxu0 0
        %3927 = vmatmul.mubr.bf16.gmra.mxu0 %v811
        %v3928 = vpop.f32.mrf.mxu0
        %v3929 = vadd.f32 0.0, %v3928
        %v3930 = vpop.f32.mrf.mxu0
        %v3931 = vadd.f32 0.0, %v3930
        %v3932 = vpop.f32.mrf.mxu0
        %v3933 = vpop.f32.mrf.mxu0
        %3934 = vdwg.mxu0
        %v3939 = vlaneseq
        %v3940 = vshrl.u32 %v3939, 7
        %v3941 = vsub.s32 0, %v3940
        %v3942 = vrot.slane %v229, %v3941
        %v3943 = vlaneseq
        %v3944 = vshrl.u32 %v3943, 7
        %v3945 = vsub.s32 1, %v3944
        %v3946 = vrot.slane %v229, %v3945
        %v3947 = vlaneseq
        %v3948 = vshrl.u32 %v3947, 7
        %v3949 = vsub.s32 2, %v3948
        %v3950 = vrot.slane %v229, %v3949
        %v3951 = vlaneseq
        %v3952 = vshrl.u32 %v3951, 7
        %v3953 = vsub.s32 3, %v3952
        %v3954 = vrot.slane %v229, %v3953
        %v3955 = vlaneseq
        %v3956 = vshrl.u32 %v3955, 7
        %v3957 = vsub.s32 4, %v3956
        %v3958 = vrot.slane %v229, %v3957
        %v3959 = vlaneseq
        %v3960 = vshrl.u32 %v3959, 7
        %v3961 = vsub.s32 5, %v3960
        %v3962 = vrot.slane %v229, %v3961
        %v3963 = vlaneseq
        %v3964 = vshrl.u32 %v3963, 7
        %v3965 = vsub.s32 6, %v3964
        %v3966 = vrot.slane %v229, %v3965
        %v3967 = vlaneseq
        %v3968 = vshrl.u32 %v3967, 7
        %v3969 = vsub.s32 7, %v3968
        %v3970 = vrot.slane %v229, %v3969
        %v3971 = vlaneseq
        %v3972 = vshrl.u32 %v3971, 7
        %v3973 = vsub.s32 0, %v3972
        %v3974 = vrot.slane %v230, %v3973
        %v3975 = vlaneseq
        %v3976 = vshrl.u32 %v3975, 7
        %v3977 = vsub.s32 1, %v3976
        %v3978 = vrot.slane %v230, %v3977
        %v3979 = vlaneseq
        %v3980 = vshrl.u32 %v3979, 7
        %v3981 = vsub.s32 2, %v3980
        %v3982 = vrot.slane %v230, %v3981
        %v3983 = vlaneseq
        %v3984 = vshrl.u32 %v3983, 7
        %v3985 = vsub.s32 3, %v3984
        %v3986 = vrot.slane %v230, %v3985
        %v3987 = vlaneseq
        %v3988 = vshrl.u32 %v3987, 7
        %v3989 = vsub.s32 4, %v3988
        %v3990 = vrot.slane %v230, %v3989
        %v3991 = vlaneseq
        %v3992 = vshrl.u32 %v3991, 7
        %v3993 = vsub.s32 5, %v3992
        %v3994 = vrot.slane %v230, %v3993
        %v3995 = vlaneseq
        %v3996 = vshrl.u32 %v3995, 7
        %v3997 = vsub.s32 6, %v3996
        %v3998 = vrot.slane %v230, %v3997
        %v3999 = vlaneseq
        %v4000 = vshrl.u32 %v3999, 7
        %v4001 = vsub.s32 7, %v4000
        %v4002 = vrot.slane %v230, %v4001
        %v4003 = vlaneseq
        %v4004 = vshrl.u32 %v4003, 7
        %v4005 = vsub.s32 0, %v4004
        %v4006 = vrot.slane %v231, %v4005
        %v4007 = vlaneseq
        %v4008 = vshrl.u32 %v4007, 7
        %v4009 = vsub.s32 1, %v4008
        %v4010 = vrot.slane %v231, %v4009
        %v4011 = vlaneseq
        %v4012 = vshrl.u32 %v4011, 7
        %v4013 = vsub.s32 2, %v4012
        %v4014 = vrot.slane %v231, %v4013
        %v4015 = vlaneseq
        %v4016 = vshrl.u32 %v4015, 7
        %v4017 = vsub.s32 3, %v4016
        %v4018 = vrot.slane %v231, %v4017
        %v4019 = vlaneseq
        %v4020 = vshrl.u32 %v4019, 7
        %v4021 = vsub.s32 4, %v4020
        %v4022 = vrot.slane %v231, %v4021
        %v4023 = vlaneseq
        %v4024 = vshrl.u32 %v4023, 7
        %v4025 = vsub.s32 5, %v4024
        %v4026 = vrot.slane %v231, %v4025
        %v4027 = vlaneseq
        %v4028 = vshrl.u32 %v4027, 7
        %v4029 = vsub.s32 6, %v4028
        %v4030 = vrot.slane %v231, %v4029
        %v4031 = vlaneseq
        %v4032 = vshrl.u32 %v4031, 7
        %v4033 = vsub.s32 7, %v4032
        %v4034 = vrot.slane %v231, %v4033
        %v4035 = vlaneseq
        %v4036 = vshrl.u32 %v4035, 7
        %v4037 = vsub.s32 0, %v4036
        %v4038 = vrot.slane %v232, %v4037
        %v4039 = vlaneseq
        %v4040 = vshrl.u32 %v4039, 7
        %v4041 = vsub.s32 1, %v4040
        %v4042 = vrot.slane %v232, %v4041
        %v4043 = vlaneseq
        %v4044 = vshrl.u32 %v4043, 7
        %v4045 = vsub.s32 2, %v4044
        %v4046 = vrot.slane %v232, %v4045
        %v4047 = vlaneseq
        %v4048 = vshrl.u32 %v4047, 7
        %v4049 = vsub.s32 3, %v4048
        %v4050 = vrot.slane %v232, %v4049
        %v4051 = vlaneseq
        %v4052 = vshrl.u32 %v4051, 7
        %v4053 = vsub.s32 4, %v4052
        %v4054 = vrot.slane %v232, %v4053
        %v4055 = vlaneseq
        %v4056 = vshrl.u32 %v4055, 7
        %v4057 = vsub.s32 5, %v4056
        %v4058 = vrot.slane %v232, %v4057
        %v4059 = vlaneseq
        %v4060 = vshrl.u32 %v4059, 7
        %v4061 = vsub.s32 6, %v4060
        %v4062 = vrot.slane %v232, %v4061
        %v4063 = vlaneseq
        %v4064 = vshrl.u32 %v4063, 7
        %v4065 = vsub.s32 7, %v4064
        %v4066 = vrot.slane %v232, %v4065
        %4100 = vset.pattern.permute.xlu0 63
        %4101 = vperm.xlu0 %4100, %v227
        %v4102 = vpop.permute.xlu0 %4101
        %v4104 = vmul.f32 %v3942, %v4102
        %v4105 = vmul.f32 %v3946, %v4102
        %v4106 = vmul.f32 %v3950, %v4102
        %v4107 = vmul.f32 %v3954, %v4102
        %v4108 = vmul.f32 %v3958, %v4102
        %v4109 = vmul.f32 %v3962, %v4102
        %v4110 = vmul.f32 %v3966, %v4102
        %v4111 = vmul.f32 %v3970, %v4102
        %v4112 = vmul.f32 %v3974, %v4102
        %v4113 = vmul.f32 %v3978, %v4102
        %v4114 = vmul.f32 %v3982, %v4102
        %v4115 = vmul.f32 %v3986, %v4102
        %v4116 = vmul.f32 %v3990, %v4102
        %v4117 = vmul.f32 %v3994, %v4102
        %v4118 = vmul.f32 %v3998, %v4102
        %v4119 = vmul.f32 %v4002, %v4102
        %v4120 = vmul.f32 %v4006, %v4102
        %v4121 = vmul.f32 %v4010, %v4102
        %v4122 = vmul.f32 %v4014, %v4102
        %v4123 = vmul.f32 %v4018, %v4102
        %v4124 = vmul.f32 %v4022, %v4102
        %v4125 = vmul.f32 %v4026, %v4102
        %v4126 = vmul.f32 %v4030, %v4102
        %v4127 = vmul.f32 %v4034, %v4102
        %v4128 = vmul.f32 %v4038, %v4102
        %v4129 = vmul.f32 %v4042, %v4102
        %v4130 = vmul.f32 %v4046, %v4102
        %v4131 = vmul.f32 %v4050, %v4102
        %v4132 = vmul.f32 %v4054, %v4102
        %v4133 = vmul.f32 %v4058, %v4102
        %v4134 = vmul.f32 %v4062, %v4102
        %v4135 = vmul.f32 %v4066, %v4102
        %4136 = vset.pattern.permute.xlu0 51
        %4137 = vperm.xlu0 %4136, %v227
        %v4138 = vpop.permute.xlu0 %4137
        %v4140 = vadd.f32 %v4138, %v4104
        %v4141 = vadd.f32 %v4138, %v4105
        %v4142 = vadd.f32 %v4138, %v4106
        %v4143 = vadd.f32 %v4138, %v4107
        %v4144 = vadd.f32 %v4138, %v4108
        %v4145 = vadd.f32 %v4138, %v4109
        %v4146 = vadd.f32 %v4138, %v4110
        %v4147 = vadd.f32 %v4138, %v4111
        %v4148 = vadd.f32 %v4138, %v4112
        %v4149 = vadd.f32 %v4138, %v4113
        %v4150 = vadd.f32 %v4138, %v4114
        %v4151 = vadd.f32 %v4138, %v4115
        %v4152 = vadd.f32 %v4138, %v4116
        %v4153 = vadd.f32 %v4138, %v4117
        %v4154 = vadd.f32 %v4138, %v4118
        %v4155 = vadd.f32 %v4138, %v4119
        %v4156 = vadd.f32 %v4138, %v4120
        %v4157 = vadd.f32 %v4138, %v4121
        %v4158 = vadd.f32 %v4138, %v4122
        %v4159 = vadd.f32 %v4138, %v4123
        %v4160 = vadd.f32 %v4138, %v4124
        %v4161 = vadd.f32 %v4138, %v4125
        %v4162 = vadd.f32 %v4138, %v4126
        %v4163 = vadd.f32 %v4138, %v4127
        %v4164 = vadd.f32 %v4138, %v4128
        %v4165 = vadd.f32 %v4138, %v4129
        %v4166 = vadd.f32 %v4138, %v4130
        %v4167 = vadd.f32 %v4138, %v4131
        %v4168 = vadd.f32 %v4138, %v4132
        %v4169 = vadd.f32 %v4138, %v4133
        %v4170 = vadd.f32 %v4138, %v4134
        %v4171 = vadd.f32 %v4138, %v4135
        %4172 = vset.pattern.permute.xlu0 60
        %4173 = vperm.xlu0 %4172, %v227
        %v4174 = vpop.permute.xlu0 %4173
        %v4176 = vmul.f32 %v3942, %v4174
        %v4177 = vmul.f32 %v3946, %v4174
        %v4178 = vmul.f32 %v3950, %v4174
        %v4179 = vmul.f32 %v3954, %v4174
        %v4180 = vmul.f32 %v3958, %v4174
        %v4181 = vmul.f32 %v3962, %v4174
        %v4182 = vmul.f32 %v3966, %v4174
        %v4183 = vmul.f32 %v3970, %v4174
        %v4184 = vmul.f32 %v3974, %v4174
        %v4185 = vmul.f32 %v3978, %v4174
        %v4186 = vmul.f32 %v3982, %v4174
        %v4187 = vmul.f32 %v3986, %v4174
        %v4188 = vmul.f32 %v3990, %v4174
        %v4189 = vmul.f32 %v3994, %v4174
        %v4190 = vmul.f32 %v3998, %v4174
        %v4191 = vmul.f32 %v4002, %v4174
        %v4192 = vmul.f32 %v4006, %v4174
        %v4193 = vmul.f32 %v4010, %v4174
        %v4194 = vmul.f32 %v4014, %v4174
        %v4195 = vmul.f32 %v4018, %v4174
        %v4196 = vmul.f32 %v4022, %v4174
        %v4197 = vmul.f32 %v4026, %v4174
        %v4198 = vmul.f32 %v4030, %v4174
        %v4199 = vmul.f32 %v4034, %v4174
        %v4200 = vmul.f32 %v4038, %v4174
        %v4201 = vmul.f32 %v4042, %v4174
        %v4202 = vmul.f32 %v4046, %v4174
        %v4203 = vmul.f32 %v4050, %v4174
        %v4204 = vmul.f32 %v4054, %v4174
        %v4205 = vmul.f32 %v4058, %v4174
        %v4206 = vmul.f32 %v4062, %v4174
        %v4207 = vmul.f32 %v4066, %v4174
        %4208 = vset.pattern.permute.xlu0 48
        %4209 = vperm.xlu0 %4208, %v227
        %v4210 = vpop.permute.xlu0 %4209
        %v4212 = vadd.f32 %v4210, %v4176
        %v4213 = vadd.f32 %v4210, %v4177
        %v4214 = vadd.f32 %v4210, %v4178
        %v4215 = vadd.f32 %v4210, %v4179
        %v4216 = vadd.f32 %v4210, %v4180
        %v4217 = vadd.f32 %v4210, %v4181
        %v4218 = vadd.f32 %v4210, %v4182
        %v4219 = vadd.f32 %v4210, %v4183
        %v4220 = vadd.f32 %v4210, %v4184
        %v4221 = vadd.f32 %v4210, %v4185
        %v4222 = vadd.f32 %v4210, %v4186
        %v4223 = vadd.f32 %v4210, %v4187
        %v4224 = vadd.f32 %v4210, %v4188
        %v4225 = vadd.f32 %v4210, %v4189
        %v4226 = vadd.f32 %v4210, %v4190
        %v4227 = vadd.f32 %v4210, %v4191
        %v4228 = vadd.f32 %v4210, %v4192
        %v4229 = vadd.f32 %v4210, %v4193
        %v4230 = vadd.f32 %v4210, %v4194
        %v4231 = vadd.f32 %v4210, %v4195
        %v4232 = vadd.f32 %v4210, %v4196
        %v4233 = vadd.f32 %v4210, %v4197
        %v4234 = vadd.f32 %v4210, %v4198
        %v4235 = vadd.f32 %v4210, %v4199
        %v4236 = vadd.f32 %v4210, %v4200
        %v4237 = vadd.f32 %v4210, %v4201
        %v4238 = vadd.f32 %v4210, %v4202
        %v4239 = vadd.f32 %v4210, %v4203
        %v4240 = vadd.f32 %v4210, %v4204
        %v4241 = vadd.f32 %v4210, %v4205
        %v4242 = vadd.f32 %v4210, %v4206
        %v4243 = vadd.f32 %v4210, %v4207
        %v4244 = vmul.f32 %v4212, %v848
        %v4245 = vmul.f32 %v4213, %v850
        %v4246 = vmul.f32 %v4214, %v889
        %v4247 = vmul.f32 %v4215, %v891
        %v4248 = vmul.f32 %v4216, %v930
        %v4249 = vmul.f32 %v4217, %v932
        %v4250 = vmul.f32 %v4218, %v971
        %v4251 = vmul.f32 %v4219, %v973
        %v4252 = vmul.f32 %v4220, %v1012
        %v4253 = vmul.f32 %v4221, %v1014
        %v4254 = vmul.f32 %v4222, %v1053
        %v4255 = vmul.f32 %v4223, %v1055
        %v4256 = vmul.f32 %v4224, %v1094
        %v4257 = vmul.f32 %v4225, %v1096
        %v4258 = vmul.f32 %v4226, %v1135
        %v4259 = vmul.f32 %v4227, %v1137
        %v4260 = vmul.f32 %v4228, %v1176
        %v4261 = vmul.f32 %v4229, %v1178
        %v4262 = vmul.f32 %v4230, %v1217
        %v4263 = vmul.f32 %v4231, %v1219
        %v4264 = vmul.f32 %v4232, %v1258
        %v4265 = vmul.f32 %v4233, %v1260
        %v4266 = vmul.f32 %v4234, %v1299
        %v4267 = vmul.f32 %v4235, %v1301
        %v4268 = vmul.f32 %v4236, %v1340
        %v4269 = vmul.f32 %v4237, %v1342
        %v4270 = vmul.f32 %v4238, %v1381
        %v4271 = vmul.f32 %v4239, %v1383
        %v4272 = vmul.f32 %v4240, %v1422
        %v4273 = vmul.f32 %v4241, %v1424
        %v4274 = vmul.f32 %v4242, %v1463
        %v4275 = vmul.f32 %v4243, %v1465
        %v4276 = vadd.f32 %v4140, %v4244
        %v4277 = vadd.f32 %v4141, %v4245
        %v4278 = vadd.f32 %v4142, %v4246
        %v4279 = vadd.f32 %v4143, %v4247
        %v4280 = vadd.f32 %v4144, %v4248
        %v4281 = vadd.f32 %v4145, %v4249
        %v4282 = vadd.f32 %v4146, %v4250
        %v4283 = vadd.f32 %v4147, %v4251
        %v4284 = vadd.f32 %v4148, %v4252
        %v4285 = vadd.f32 %v4149, %v4253
        %v4286 = vadd.f32 %v4150, %v4254
        %v4287 = vadd.f32 %v4151, %v4255
        %v4288 = vadd.f32 %v4152, %v4256
        %v4289 = vadd.f32 %v4153, %v4257
        %v4290 = vadd.f32 %v4154, %v4258
        %v4291 = vadd.f32 %v4155, %v4259
        %v4292 = vadd.f32 %v4156, %v4260
        %v4293 = vadd.f32 %v4157, %v4261
        %v4294 = vadd.f32 %v4158, %v4262
        %v4295 = vadd.f32 %v4159, %v4263
        %v4296 = vadd.f32 %v4160, %v4264
        %v4297 = vadd.f32 %v4161, %v4265
        %v4298 = vadd.f32 %v4162, %v4266
        %v4299 = vadd.f32 %v4163, %v4267
        %v4300 = vadd.f32 %v4164, %v4268
        %v4301 = vadd.f32 %v4165, %v4269
        %v4302 = vadd.f32 %v4166, %v4270
        %v4303 = vadd.f32 %v4167, %v4271
        %v4304 = vadd.f32 %v4168, %v4272
        %v4305 = vadd.f32 %v4169, %v4273
        %v4306 = vadd.f32 %v4170, %v4274
        %v4307 = vadd.f32 %v4171, %v4275
        %4308 = vset.pattern.permute.xlu0 61
        %4309 = vperm.xlu0 %4308, %v227
        %v4310 = vpop.permute.xlu0 %4309
        %v4312 = vmul.f32 %v3942, %v4310
        %v4313 = vmul.f32 %v3946, %v4310
        %v4314 = vmul.f32 %v3950, %v4310
        %v4315 = vmul.f32 %v3954, %v4310
        %v4316 = vmul.f32 %v3958, %v4310
        %v4317 = vmul.f32 %v3962, %v4310
        %v4318 = vmul.f32 %v3966, %v4310
        %v4319 = vmul.f32 %v3970, %v4310
        %v4320 = vmul.f32 %v3974, %v4310
        %v4321 = vmul.f32 %v3978, %v4310
        %v4322 = vmul.f32 %v3982, %v4310
        %v4323 = vmul.f32 %v3986, %v4310
        %v4324 = vmul.f32 %v3990, %v4310
        %v4325 = vmul.f32 %v3994, %v4310
        %v4326 = vmul.f32 %v3998, %v4310
        %v4327 = vmul.f32 %v4002, %v4310
        %v4328 = vmul.f32 %v4006, %v4310
        %v4329 = vmul.f32 %v4010, %v4310
        %v4330 = vmul.f32 %v4014, %v4310
        %v4331 = vmul.f32 %v4018, %v4310
        %v4332 = vmul.f32 %v4022, %v4310
        %v4333 = vmul.f32 %v4026, %v4310
        %v4334 = vmul.f32 %v4030, %v4310
        %v4335 = vmul.f32 %v4034, %v4310
        %v4336 = vmul.f32 %v4038, %v4310
        %v4337 = vmul.f32 %v4042, %v4310
        %v4338 = vmul.f32 %v4046, %v4310
        %v4339 = vmul.f32 %v4050, %v4310
        %v4340 = vmul.f32 %v4054, %v4310
        %v4341 = vmul.f32 %v4058, %v4310
        %v4342 = vmul.f32 %v4062, %v4310
        %v4343 = vmul.f32 %v4066, %v4310
        %4344 = vset.pattern.permute.xlu0 49
        %4345 = vperm.xlu0 %4344, %v227
        %v4346 = vpop.permute.xlu0 %4345
        %v4348 = vadd.f32 %v4346, %v4312
        %v4349 = vadd.f32 %v4346, %v4313
        %v4350 = vadd.f32 %v4346, %v4314
        %v4351 = vadd.f32 %v4346, %v4315
        %v4352 = vadd.f32 %v4346, %v4316
        %v4353 = vadd.f32 %v4346, %v4317
        %v4354 = vadd.f32 %v4346, %v4318
        %v4355 = vadd.f32 %v4346, %v4319
        %v4356 = vadd.f32 %v4346, %v4320
        %v4357 = vadd.f32 %v4346, %v4321
        %v4358 = vadd.f32 %v4346, %v4322
        %v4359 = vadd.f32 %v4346, %v4323
        %v4360 = vadd.f32 %v4346, %v4324
        %v4361 = vadd.f32 %v4346, %v4325
        %v4362 = vadd.f32 %v4346, %v4326
        %v4363 = vadd.f32 %v4346, %v4327
        %v4364 = vadd.f32 %v4346, %v4328
        %v4365 = vadd.f32 %v4346, %v4329
        %v4366 = vadd.f32 %v4346, %v4330
        %v4367 = vadd.f32 %v4346, %v4331
        %v4368 = vadd.f32 %v4346, %v4332
        %v4369 = vadd.f32 %v4346, %v4333
        %v4370 = vadd.f32 %v4346, %v4334
        %v4371 = vadd.f32 %v4346, %v4335
        %v4372 = vadd.f32 %v4346, %v4336
        %v4373 = vadd.f32 %v4346, %v4337
        %v4374 = vadd.f32 %v4346, %v4338
        %v4375 = vadd.f32 %v4346, %v4339
        %v4376 = vadd.f32 %v4346, %v4340
        %v4377 = vadd.f32 %v4346, %v4341
        %v4378 = vadd.f32 %v4346, %v4342
        %v4379 = vadd.f32 %v4346, %v4343
        %v4380 = vmul.f32 %v4348, %v2081
        %v4381 = vmul.f32 %v4349, %v2083
        %v4382 = vmul.f32 %v4350, %v2122
        %v4383 = vmul.f32 %v4351, %v2124
        %v4384 = vmul.f32 %v4352, %v2163
        %v4385 = vmul.f32 %v4353, %v2165
        %v4386 = vmul.f32 %v4354, %v2204
        %v4387 = vmul.f32 %v4355, %v2206
        %v4388 = vmul.f32 %v4356, %v2245
        %v4389 = vmul.f32 %v4357, %v2247
        %v4390 = vmul.f32 %v4358, %v2286
        %v4391 = vmul.f32 %v4359, %v2288
        %v4392 = vmul.f32 %v4360, %v2327
        %v4393 = vmul.f32 %v4361, %v2329
        %v4394 = vmul.f32 %v4362, %v2368
        %v4395 = vmul.f32 %v4363, %v2370
        %v4396 = vmul.f32 %v4364, %v2409
        %v4397 = vmul.f32 %v4365, %v2411
        %v4398 = vmul.f32 %v4366, %v2450
        %v4399 = vmul.f32 %v4367, %v2452
        %v4400 = vmul.f32 %v4368, %v2491
        %v4401 = vmul.f32 %v4369, %v2493
        %v4402 = vmul.f32 %v4370, %v2532
        %v4403 = vmul.f32 %v4371, %v2534
        %v4404 = vmul.f32 %v4372, %v2573
        %v4405 = vmul.f32 %v4373, %v2575
        %v4406 = vmul.f32 %v4374, %v2614
        %v4407 = vmul.f32 %v4375, %v2616
        %v4408 = vmul.f32 %v4376, %v2655
        %v4409 = vmul.f32 %v4377, %v2657
        %v4410 = vmul.f32 %v4378, %v2696
        %v4411 = vmul.f32 %v4379, %v2698
        %v4412 = vadd.f32 %v4276, %v4380
        %v4413 = vadd.f32 %v4277, %v4381
        %v4414 = vadd.f32 %v4278, %v4382
        %v4415 = vadd.f32 %v4279, %v4383
        %v4416 = vadd.f32 %v4280, %v4384
        %v4417 = vadd.f32 %v4281, %v4385
        %v4418 = vadd.f32 %v4282, %v4386
        %v4419 = vadd.f32 %v4283, %v4387
        %v4420 = vadd.f32 %v4284, %v4388
        %v4421 = vadd.f32 %v4285, %v4389
        %v4422 = vadd.f32 %v4286, %v4390
        %v4423 = vadd.f32 %v4287, %v4391
        %v4424 = vadd.f32 %v4288, %v4392
        %v4425 = vadd.f32 %v4289, %v4393
        %v4426 = vadd.f32 %v4290, %v4394
        %v4427 = vadd.f32 %v4291, %v4395
        %v4428 = vadd.f32 %v4292, %v4396
        %v4429 = vadd.f32 %v4293, %v4397
        %v4430 = vadd.f32 %v4294, %v4398
        %v4431 = vadd.f32 %v4295, %v4399
        %v4432 = vadd.f32 %v4296, %v4400
        %v4433 = vadd.f32 %v4297, %v4401
        %v4434 = vadd.f32 %v4298, %v4402
        %v4435 = vadd.f32 %v4299, %v4403
        %v4436 = vadd.f32 %v4300, %v4404
        %v4437 = vadd.f32 %v4301, %v4405
        %v4438 = vadd.f32 %v4302, %v4406
        %v4439 = vadd.f32 %v4303, %v4407
        %v4440 = vadd.f32 %v4304, %v4408
        %v4441 = vadd.f32 %v4305, %v4409
        %v4442 = vadd.f32 %v4306, %v4410
        %v4443 = vadd.f32 %v4307, %v4411
        %4444 = vset.pattern.permute.xlu0 62
        %4445 = vperm.xlu0 %4444, %v227
        %v4446 = vpop.permute.xlu0 %4445
        %v4448 = vmul.f32 %v3942, %v4446
        %v4449 = vmul.f32 %v3946, %v4446
        %v4450 = vmul.f32 %v3950, %v4446
        %v4451 = vmul.f32 %v3954, %v4446
        %v4452 = vmul.f32 %v3958, %v4446
        %v4453 = vmul.f32 %v3962, %v4446
        %v4454 = vmul.f32 %v3966, %v4446
        %v4455 = vmul.f32 %v3970, %v4446
        %v4456 = vmul.f32 %v3974, %v4446
        %v4457 = vmul.f32 %v3978, %v4446
        %v4458 = vmul.f32 %v3982, %v4446
        %v4459 = vmul.f32 %v3986, %v4446
        %v4460 = vmul.f32 %v3990, %v4446
        %v4461 = vmul.f32 %v3994, %v4446
        %v4462 = vmul.f32 %v3998, %v4446
        %v4463 = vmul.f32 %v4002, %v4446
        %v4464 = vmul.f32 %v4006, %v4446
        %v4465 = vmul.f32 %v4010, %v4446
        %v4466 = vmul.f32 %v4014, %v4446
        %v4467 = vmul.f32 %v4018, %v4446
        %v4468 = vmul.f32 %v4022, %v4446
        %v4469 = vmul.f32 %v4026, %v4446
        %v4470 = vmul.f32 %v4030, %v4446
        %v4471 = vmul.f32 %v4034, %v4446
        %v4472 = vmul.f32 %v4038, %v4446
        %v4473 = vmul.f32 %v4042, %v4446
        %v4474 = vmul.f32 %v4046, %v4446
        %v4475 = vmul.f32 %v4050, %v4446
        %v4476 = vmul.f32 %v4054, %v4446
        %v4477 = vmul.f32 %v4058, %v4446
        %v4478 = vmul.f32 %v4062, %v4446
        %v4479 = vmul.f32 %v4066, %v4446
        %4480 = vset.pattern.permute.xlu0 50
        %4481 = vperm.xlu0 %4480, %v227
        %v4482 = vpop.permute.xlu0 %4481
        %v4484 = vadd.f32 %v4482, %v4448
        %v4485 = vadd.f32 %v4482, %v4449
        %v4486 = vadd.f32 %v4482, %v4450
        %v4487 = vadd.f32 %v4482, %v4451
        %v4488 = vadd.f32 %v4482, %v4452
        %v4489 = vadd.f32 %v4482, %v4453
        %v4490 = vadd.f32 %v4482, %v4454
        %v4491 = vadd.f32 %v4482, %v4455
        %v4492 = vadd.f32 %v4482, %v4456
        %v4493 = vadd.f32 %v4482, %v4457
        %v4494 = vadd.f32 %v4482, %v4458
        %v4495 = vadd.f32 %v4482, %v4459
        %v4496 = vadd.f32 %v4482, %v4460
        %v4497 = vadd.f32 %v4482, %v4461
        %v4498 = vadd.f32 %v4482, %v4462
        %v4499 = vadd.f32 %v4482, %v4463
        %v4500 = vadd.f32 %v4482, %v4464
        %v4501 = vadd.f32 %v4482, %v4465
        %v4502 = vadd.f32 %v4482, %v4466
        %v4503 = vadd.f32 %v4482, %v4467
        %v4504 = vadd.f32 %v4482, %v4468
        %v4505 = vadd.f32 %v4482, %v4469
        %v4506 = vadd.f32 %v4482, %v4470
        %v4507 = vadd.f32 %v4482, %v4471
        %v4508 = vadd.f32 %v4482, %v4472
        %v4509 = vadd.f32 %v4482, %v4473
        %v4510 = vadd.f32 %v4482, %v4474
        %v4511 = vadd.f32 %v4482, %v4475
        %v4512 = vadd.f32 %v4482, %v4476
        %v4513 = vadd.f32 %v4482, %v4477
        %v4514 = vadd.f32 %v4482, %v4478
        %v4515 = vadd.f32 %v4482, %v4479
        %v4516 = vmul.f32 %v4484, %v3314
        %v4517 = vmul.f32 %v4485, %v3316
        %v4518 = vmul.f32 %v4486, %v3355
        %v4519 = vmul.f32 %v4487, %v3357
        %v4520 = vmul.f32 %v4488, %v3396
        %v4521 = vmul.f32 %v4489, %v3398
        %v4522 = vmul.f32 %v4490, %v3437
        %v4523 = vmul.f32 %v4491, %v3439
        %v4524 = vmul.f32 %v4492, %v3478
        %v4525 = vmul.f32 %v4493, %v3480
        %v4526 = vmul.f32 %v4494, %v3519
        %v4527 = vmul.f32 %v4495, %v3521
        %v4528 = vmul.f32 %v4496, %v3560
        %v4529 = vmul.f32 %v4497, %v3562
        %v4530 = vmul.f32 %v4498, %v3601
        %v4531 = vmul.f32 %v4499, %v3603
        %v4532 = vmul.f32 %v4500, %v3642
        %v4533 = vmul.f32 %v4501, %v3644
        %v4534 = vmul.f32 %v4502, %v3683
        %v4535 = vmul.f32 %v4503, %v3685
        %v4536 = vmul.f32 %v4504, %v3724
        %v4537 = vmul.f32 %v4505, %v3726
        %v4538 = vmul.f32 %v4506, %v3765
        %v4539 = vmul.f32 %v4507, %v3767
        %v4540 = vmul.f32 %v4508, %v3806
        %v4541 = vmul.f32 %v4509, %v3808
        %v4542 = vmul.f32 %v4510, %v3847
        %v4543 = vmul.f32 %v4511, %v3849
        %v4544 = vmul.f32 %v4512, %v3888
        %v4545 = vmul.f32 %v4513, %v3890
        %v4546 = vmul.f32 %v4514, %v3929
        %v4547 = vmul.f32 %v4515, %v3931
        %v4548 = vadd.f32 %v4412, %v4516
        %v4549 = vadd.f32 %v4413, %v4517
        %v4550 = vadd.f32 %v4414, %v4518
        %v4551 = vadd.f32 %v4415, %v4519
        %v4552 = vadd.f32 %v4416, %v4520
        %v4553 = vadd.f32 %v4417, %v4521
        %v4554 = vadd.f32 %v4418, %v4522
        %v4555 = vadd.f32 %v4419, %v4523
        %v4556 = vadd.f32 %v4420, %v4524
        %v4557 = vadd.f32 %v4421, %v4525
        %v4558 = vadd.f32 %v4422, %v4526
        %v4559 = vadd.f32 %v4423, %v4527
        %v4560 = vadd.f32 %v4424, %v4528
        %v4561 = vadd.f32 %v4425, %v4529
        %v4562 = vadd.f32 %v4426, %v4530
        %v4563 = vadd.f32 %v4427, %v4531
        %v4564 = vadd.f32 %v4428, %v4532
        %v4565 = vadd.f32 %v4429, %v4533
        %v4566 = vadd.f32 %v4430, %v4534
        %v4567 = vadd.f32 %v4431, %v4535
        %v4568 = vadd.f32 %v4432, %v4536
        %v4569 = vadd.f32 %v4433, %v4537
        %v4570 = vadd.f32 %v4434, %v4538
        %v4571 = vadd.f32 %v4435, %v4539
        %v4572 = vadd.f32 %v4436, %v4540
        %v4573 = vadd.f32 %v4437, %v4541
        %v4574 = vadd.f32 %v4438, %v4542
        %v4575 = vadd.f32 %v4439, %v4543
        %v4576 = vadd.f32 %v4440, %v4544
        %v4577 = vadd.f32 %v4441, %v4545
        %v4578 = vadd.f32 %v4442, %v4546
        %v4579 = vadd.f32 %v4443, %v4547
        %v4612 = vcombine.low %v4548, %v4549
        %v4613 = vcombine.low %v4550, %v4551
        %v4615 = vunpack.c.l.s4 1983009808
        %v4616 = vunpack.c.0.s8 %v4615
        %v4617 = vlaneseq
        %v4618 = vshrl.u32 %v4617, 7
        %v4619 = vsub.s32 %v4616, %v4618
        %v4620 = vrot.slane %v4612, %v4619
        %v4622 = vunpack.c.l.s4 1983009808
        %v4623 = vunpack.c.0.s8 %v4622
        %v4624 = vlaneseq
        %v4625 = vshrl.u32 %v4624, 7
        %v4626 = vsub.s32 %v4623, %v4625
        %v4627 = vrot.slane %v4613, %v4626
        %v4628 = vcombine.low %v4620, %v4627
        %v4629 = vcombine.low %v4552, %v4553
        %v4630 = vcombine.low %v4554, %v4555
        %v4632 = vunpack.c.l.s4 1983009808
        %v4633 = vunpack.c.0.s8 %v4632
        %v4634 = vlaneseq
        %v4635 = vshrl.u32 %v4634, 7
        %v4636 = vsub.s32 %v4633, %v4635
        %v4637 = vrot.slane %v4629, %v4636
        %v4639 = vunpack.c.l.s4 1983009808
        %v4640 = vunpack.c.0.s8 %v4639
        %v4641 = vlaneseq
        %v4642 = vshrl.u32 %v4641, 7
        %v4643 = vsub.s32 %v4640, %v4642
        %v4644 = vrot.slane %v4630, %v4643
        %v4645 = vcombine.low %v4637, %v4644
        %v4646 = vcombine.low %v4556, %v4557
        %v4647 = vcombine.low %v4558, %v4559
        %v4649 = vunpack.c.l.s4 1983009808
        %v4650 = vunpack.c.0.s8 %v4649
        %v4651 = vlaneseq
        %v4652 = vshrl.u32 %v4651, 7
        %v4653 = vsub.s32 %v4650, %v4652
        %v4654 = vrot.slane %v4646, %v4653
        %v4656 = vunpack.c.l.s4 1983009808
        %v4657 = vunpack.c.0.s8 %v4656
        %v4658 = vlaneseq
        %v4659 = vshrl.u32 %v4658, 7
        %v4660 = vsub.s32 %v4657, %v4659
        %v4661 = vrot.slane %v4647, %v4660
        %v4662 = vcombine.low %v4654, %v4661
        %v4663 = vcombine.low %v4560, %v4561
        %v4664 = vcombine.low %v4562, %v4563
        %v4666 = vunpack.c.l.s4 1983009808
        %v4667 = vunpack.c.0.s8 %v4666
        %v4668 = vlaneseq
        %v4669 = vshrl.u32 %v4668, 7
        %v4670 = vsub.s32 %v4667, %v4669
        %v4671 = vrot.slane %v4663, %v4670
        %v4673 = vunpack.c.l.s4 1983009808
        %v4674 = vunpack.c.0.s8 %v4673
        %v4675 = vlaneseq
        %v4676 = vshrl.u32 %v4675, 7
        %v4677 = vsub.s32 %v4674, %v4676
        %v4678 = vrot.slane %v4664, %v4677
        %v4679 = vcombine.low %v4671, %v4678
        %v4680 = vcombine.low %v4564, %v4565
        %v4681 = vcombine.low %v4566, %v4567
        %v4683 = vunpack.c.l.s4 1983009808
        %v4684 = vunpack.c.0.s8 %v4683
        %v4685 = vlaneseq
        %v4686 = vshrl.u32 %v4685, 7
        %v4687 = vsub.s32 %v4684, %v4686
        %v4688 = vrot.slane %v4680, %v4687
        %v4690 = vunpack.c.l.s4 1983009808
        %v4691 = vunpack.c.0.s8 %v4690
        %v4692 = vlaneseq
        %v4693 = vshrl.u32 %v4692, 7
        %v4694 = vsub.s32 %v4691, %v4693
        %v4695 = vrot.slane %v4681, %v4694
        %v4696 = vcombine.low %v4688, %v4695
        %v4697 = vcombine.low %v4568, %v4569
        %v4698 = vcombine.low %v4570, %v4571
        %v4700 = vunpack.c.l.s4 1983009808
        %v4701 = vunpack.c.0.s8 %v4700
        %v4702 = vlaneseq
        %v4703 = vshrl.u32 %v4702, 7
        %v4704 = vsub.s32 %v4701, %v4703
        %v4705 = vrot.slane %v4697, %v4704
        %v4707 = vunpack.c.l.s4 1983009808
        %v4708 = vunpack.c.0.s8 %v4707
        %v4709 = vlaneseq
        %v4710 = vshrl.u32 %v4709, 7
        %v4711 = vsub.s32 %v4708, %v4710
        %v4712 = vrot.slane %v4698, %v4711
        %v4713 = vcombine.low %v4705, %v4712
        %v4714 = vcombine.low %v4572, %v4573
        %v4715 = vcombine.low %v4574, %v4575
        %v4717 = vunpack.c.l.s4 1983009808
        %v4718 = vunpack.c.0.s8 %v4717
        %v4719 = vlaneseq
        %v4720 = vshrl.u32 %v4719, 7
        %v4721 = vsub.s32 %v4718, %v4720
        %v4722 = vrot.slane %v4714, %v4721
        %v4724 = vunpack.c.l.s4 1983009808
        %v4725 = vunpack.c.0.s8 %v4724
        %v4726 = vlaneseq
        %v4727 = vshrl.u32 %v4726, 7
        %v4728 = vsub.s32 %v4725, %v4727
        %v4729 = vrot.slane %v4715, %v4728
        %v4730 = vcombine.low %v4722, %v4729
        %v4731 = vcombine.low %v4576, %v4577
        %v4732 = vcombine.low %v4578, %v4579
        %v4734 = vunpack.c.l.s4 1983009808
        %v4735 = vunpack.c.0.s8 %v4734
        %v4736 = vlaneseq
        %v4737 = vshrl.u32 %v4736, 7
        %v4738 = vsub.s32 %v4735, %v4737
        %v4739 = vrot.slane %v4731, %v4738
        %v4741 = vunpack.c.l.s4 1983009808
        %v4742 = vunpack.c.0.s8 %v4741
        %v4743 = vlaneseq
        %v4744 = vshrl.u32 %v4743, 7
        %v4745 = vsub.s32 %v4742, %v4744
        %v4746 = vrot.slane %v4732, %v4745
        %v4747 = vcombine.low %v4739, %v4746
        %4756 = vst [vmem:[%s222] sm:$0xff] %v4628
        %4757 = vst [vmem:[%s222 + $0x8] sm:$0xff] %v4645
        %4758 = vst [vmem:[%s222 + $0x10] sm:$0xff] %v4662
        %4759 = vst [vmem:[%s222 + $0x18] sm:$0xff] %v4679
        %4760 = vst [vmem:[%s222 + $0x20] sm:$0xff] %v4696
        %4761 = vst [vmem:[%s222 + $0x28] sm:$0xff] %v4713
        %4762 = vst [vmem:[%s222 + $0x30] sm:$0xff] %v4730
        %4763 = vst [vmem:[%s222 + $0x38] sm:$0xff] %v4747
        %v4764 = vld [vmem:[%s0] sm:$0x3]
        %4766 = vset.pattern.permute.xlu0 67
        %4767 = vperm.xlu0 %4766, %v4764
        %v4768 = vpop.permute.xlu0 %4767
        %v4770 = vmul.f32 %v3942, %v4768
        %v4771 = vmul.f32 %v3946, %v4768
        %v4772 = vmul.f32 %v3950, %v4768
        %v4773 = vmul.f32 %v3954, %v4768
        %v4774 = vmul.f32 %v3958, %v4768
        %v4775 = vmul.f32 %v3962, %v4768
        %v4776 = vmul.f32 %v3966, %v4768
        %v4777 = vmul.f32 %v3970, %v4768
        %v4778 = vmul.f32 %v3974, %v4768
        %v4779 = vmul.f32 %v3978, %v4768
        %v4780 = vmul.f32 %v3982, %v4768
        %v4781 = vmul.f32 %v3986, %v4768
        %v4782 = vmul.f32 %v3990, %v4768
        %v4783 = vmul.f32 %v3994, %v4768
        %v4784 = vmul.f32 %v3998, %v4768
        %v4785 = vmul.f32 %v4002, %v4768
        %v4786 = vmul.f32 %v4006, %v4768
        %v4787 = vmul.f32 %v4010, %v4768
        %v4788 = vmul.f32 %v4014, %v4768
        %v4789 = vmul.f32 %v4018, %v4768
        %v4790 = vmul.f32 %v4022, %v4768
        %v4791 = vmul.f32 %v4026, %v4768
        %v4792 = vmul.f32 %v4030, %v4768
        %v4793 = vmul.f32 %v4034, %v4768
        %v4794 = vmul.f32 %v4038, %v4768
        %v4795 = vmul.f32 %v4042, %v4768
        %v4796 = vmul.f32 %v4046, %v4768
        %v4797 = vmul.f32 %v4050, %v4768
        %v4798 = vmul.f32 %v4054, %v4768
        %v4799 = vmul.f32 %v4058, %v4768
        %v4800 = vmul.f32 %v4062, %v4768
        %v4801 = vmul.f32 %v4066, %v4768
        %4802 = vset.pattern.permute.xlu0 55
        %4803 = vperm.xlu0 %4802, %v4764
        %v4804 = vpop.permute.xlu0 %4803
        %v4806 = vadd.f32 %v4804, %v4770
        %v4807 = vadd.f32 %v4804, %v4771
        %v4808 = vadd.f32 %v4804, %v4772
        %v4809 = vadd.f32 %v4804, %v4773
        %v4810 = vadd.f32 %v4804, %v4774
        %v4811 = vadd.f32 %v4804, %v4775
        %v4812 = vadd.f32 %v4804, %v4776
        %v4813 = vadd.f32 %v4804, %v4777
        %v4814 = vadd.f32 %v4804, %v4778
        %v4815 = vadd.f32 %v4804, %v4779
        %v4816 = vadd.f32 %v4804, %v4780
        %v4817 = vadd.f32 %v4804, %v4781
        %v4818 = vadd.f32 %v4804, %v4782
        %v4819 = vadd.f32 %v4804, %v4783
        %v4820 = vadd.f32 %v4804, %v4784
        %v4821 = vadd.f32 %v4804, %v4785
        %v4822 = vadd.f32 %v4804, %v4786
        %v4823 = vadd.f32 %v4804, %v4787
        %v4824 = vadd.f32 %v4804, %v4788
        %v4825 = vadd.f32 %v4804, %v4789
        %v4826 = vadd.f32 %v4804, %v4790
        %v4827 = vadd.f32 %v4804, %v4791
        %v4828 = vadd.f32 %v4804, %v4792
        %v4829 = vadd.f32 %v4804, %v4793
        %v4830 = vadd.f32 %v4804, %v4794
        %v4831 = vadd.f32 %v4804, %v4795
        %v4832 = vadd.f32 %v4804, %v4796
        %v4833 = vadd.f32 %v4804, %v4797
        %v4834 = vadd.f32 %v4804, %v4798
        %v4835 = vadd.f32 %v4804, %v4799
        %v4836 = vadd.f32 %v4804, %v4800
        %v4837 = vadd.f32 %v4804, %v4801
        %4838 = vset.pattern.permute.xlu0 64
        %4839 = vperm.xlu0 %4838, %v4764
        %v4840 = vpop.permute.xlu0 %4839
        %v4842 = vmul.f32 %v3942, %v4840
        %v4843 = vmul.f32 %v3946, %v4840
        %v4844 = vmul.f32 %v3950, %v4840
        %v4845 = vmul.f32 %v3954, %v4840
        %v4846 = vmul.f32 %v3958, %v4840
        %v4847 = vmul.f32 %v3962, %v4840
        %v4848 = vmul.f32 %v3966, %v4840
        %v4849 = vmul.f32 %v3970, %v4840
        %v4850 = vmul.f32 %v3974, %v4840
        %v4851 = vmul.f32 %v3978, %v4840
        %v4852 = vmul.f32 %v3982, %v4840
        %v4853 = vmul.f32 %v3986, %v4840
        %v4854 = vmul.f32 %v3990, %v4840
        %v4855 = vmul.f32 %v3994, %v4840
        %v4856 = vmul.f32 %v3998, %v4840
        %v4857 = vmul.f32 %v4002, %v4840
        %v4858 = vmul.f32 %v4006, %v4840
        %v4859 = vmul.f32 %v4010, %v4840
        %v4860 = vmul.f32 %v4014, %v4840
        %v4861 = vmul.f32 %v4018, %v4840
        %v4862 = vmul.f32 %v4022, %v4840
        %v4863 = vmul.f32 %v4026, %v4840
        %v4864 = vmul.f32 %v4030, %v4840
        %v4865 = vmul.f32 %v4034, %v4840
        %v4866 = vmul.f32 %v4038, %v4840
        %v4867 = vmul.f32 %v4042, %v4840
        %v4868 = vmul.f32 %v4046, %v4840
        %v4869 = vmul.f32 %v4050, %v4840
        %v4870 = vmul.f32 %v4054, %v4840
        %v4871 = vmul.f32 %v4058, %v4840
        %v4872 = vmul.f32 %v4062, %v4840
        %v4873 = vmul.f32 %v4066, %v4840
        %4874 = vset.pattern.permute.xlu0 52
        %4875 = vperm.xlu0 %4874, %v4764
        %v4876 = vpop.permute.xlu0 %4875
        %v4878 = vadd.f32 %v4876, %v4842
        %v4879 = vadd.f32 %v4876, %v4843
        %v4880 = vadd.f32 %v4876, %v4844
        %v4881 = vadd.f32 %v4876, %v4845
        %v4882 = vadd.f32 %v4876, %v4846
        %v4883 = vadd.f32 %v4876, %v4847
        %v4884 = vadd.f32 %v4876, %v4848
        %v4885 = vadd.f32 %v4876, %v4849
        %v4886 = vadd.f32 %v4876, %v4850
        %v4887 = vadd.f32 %v4876, %v4851
        %v4888 = vadd.f32 %v4876, %v4852
        %v4889 = vadd.f32 %v4876, %v4853
        %v4890 = vadd.f32 %v4876, %v4854
        %v4891 = vadd.f32 %v4876, %v4855
        %v4892 = vadd.f32 %v4876, %v4856
        %v4893 = vadd.f32 %v4876, %v4857
        %v4894 = vadd.f32 %v4876, %v4858
        %v4895 = vadd.f32 %v4876, %v4859
        %v4896 = vadd.f32 %v4876, %v4860
        %v4897 = vadd.f32 %v4876, %v4861
        %v4898 = vadd.f32 %v4876, %v4862
        %v4899 = vadd.f32 %v4876, %v4863
        %v4900 = vadd.f32 %v4876, %v4864
        %v4901 = vadd.f32 %v4876, %v4865
        %v4902 = vadd.f32 %v4876, %v4866
        %v4903 = vadd.f32 %v4876, %v4867
        %v4904 = vadd.f32 %v4876, %v4868
        %v4905 = vadd.f32 %v4876, %v4869
        %v4906 = vadd.f32 %v4876, %v4870
        %v4907 = vadd.f32 %v4876, %v4871
        %v4908 = vadd.f32 %v4876, %v4872
        %v4909 = vadd.f32 %v4876, %v4873
        %v4910 = vmul.f32 %v4878, %v848
        %v4911 = vmul.f32 %v4879, %v850
        %v4912 = vmul.f32 %v4880, %v889
        %v4913 = vmul.f32 %v4881, %v891
        %v4914 = vmul.f32 %v4882, %v930
        %v4915 = vmul.f32 %v4883, %v932
        %v4916 = vmul.f32 %v4884, %v971
        %v4917 = vmul.f32 %v4885, %v973
        %v4918 = vmul.f32 %v4886, %v1012
        %v4919 = vmul.f32 %v4887, %v1014
        %v4920 = vmul.f32 %v4888, %v1053
        %v4921 = vmul.f32 %v4889, %v1055
        %v4922 = vmul.f32 %v4890, %v1094
        %v4923 = vmul.f32 %v4891, %v1096
        %v4924 = vmul.f32 %v4892, %v1135
        %v4925 = vmul.f32 %v4893, %v1137
        %v4926 = vmul.f32 %v4894, %v1176
        %v4927 = vmul.f32 %v4895, %v1178
        %v4928 = vmul.f32 %v4896, %v1217
        %v4929 = vmul.f32 %v4897, %v1219
        %v4930 = vmul.f32 %v4898, %v1258
        %v4931 = vmul.f32 %v4899, %v1260
        %v4932 = vmul.f32 %v4900, %v1299
        %v4933 = vmul.f32 %v4901, %v1301
        %v4934 = vmul.f32 %v4902, %v1340
        %v4935 = vmul.f32 %v4903, %v1342
        %v4936 = vmul.f32 %v4904, %v1381
        %v4937 = vmul.f32 %v4905, %v1383
        %v4938 = vmul.f32 %v4906, %v1422
        %v4939 = vmul.f32 %v4907, %v1424
        %v4940 = vmul.f32 %v4908, %v1463
        %v4941 = vmul.f32 %v4909, %v1465
        %v4942 = vadd.f32 %v4806, %v4910
        %v4943 = vadd.f32 %v4807, %v4911
        %v4944 = vadd.f32 %v4808, %v4912
        %v4945 = vadd.f32 %v4809, %v4913
        %v4946 = vadd.f32 %v4810, %v4914
        %v4947 = vadd.f32 %v4811, %v4915
        %v4948 = vadd.f32 %v4812, %v4916
        %v4949 = vadd.f32 %v4813, %v4917
        %v4950 = vadd.f32 %v4814, %v4918
        %v4951 = vadd.f32 %v4815, %v4919
        %v4952 = vadd.f32 %v4816, %v4920
        %v4953 = vadd.f32 %v4817, %v4921
        %v4954 = vadd.f32 %v4818, %v4922
        %v4955 = vadd.f32 %v4819, %v4923
        %v4956 = vadd.f32 %v4820, %v4924
        %v4957 = vadd.f32 %v4821, %v4925
        %v4958 = vadd.f32 %v4822, %v4926
        %v4959 = vadd.f32 %v4823, %v4927
        %v4960 = vadd.f32 %v4824, %v4928
        %v4961 = vadd.f32 %v4825, %v4929
        %v4962 = vadd.f32 %v4826, %v4930
        %v4963 = vadd.f32 %v4827, %v4931
        %v4964 = vadd.f32 %v4828, %v4932
        %v4965 = vadd.f32 %v4829, %v4933
        %v4966 = vadd.f32 %v4830, %v4934
        %v4967 = vadd.f32 %v4831, %v4935
        %v4968 = vadd.f32 %v4832, %v4936
        %v4969 = vadd.f32 %v4833, %v4937
        %v4970 = vadd.f32 %v4834, %v4938
        %v4971 = vadd.f32 %v4835, %v4939
        %v4972 = vadd.f32 %v4836, %v4940
        %v4973 = vadd.f32 %v4837, %v4941
        %4974 = vset.pattern.permute.xlu0 65
        %4975 = vperm.xlu0 %4974, %v4764
        %v4976 = vpop.permute.xlu0 %4975
        %v4978 = vmul.f32 %v3942, %v4976
        %v4979 = vmul.f32 %v3946, %v4976
        %v4980 = vmul.f32 %v3950, %v4976
        %v4981 = vmul.f32 %v3954, %v4976
        %v4982 = vmul.f32 %v3958, %v4976
        %v4983 = vmul.f32 %v3962, %v4976
        %v4984 = vmul.f32 %v3966, %v4976
        %v4985 = vmul.f32 %v3970, %v4976
        %v4986 = vmul.f32 %v3974, %v4976
        %v4987 = vmul.f32 %v3978, %v4976
        %v4988 = vmul.f32 %v3982, %v4976
        %v4989 = vmul.f32 %v3986, %v4976
        %v4990 = vmul.f32 %v3990, %v4976
        %v4991 = vmul.f32 %v3994, %v4976
        %v4992 = vmul.f32 %v3998, %v4976
        %v4993 = vmul.f32 %v4002, %v4976
        %v4994 = vmul.f32 %v4006, %v4976
        %v4995 = vmul.f32 %v4010, %v4976
        %v4996 = vmul.f32 %v4014, %v4976
        %v4997 = vmul.f32 %v4018, %v4976
        %v4998 = vmul.f32 %v4022, %v4976
        %v4999 = vmul.f32 %v4026, %v4976
        %v5000 = vmul.f32 %v4030, %v4976
        %v5001 = vmul.f32 %v4034, %v4976
        %v5002 = vmul.f32 %v4038, %v4976
        %v5003 = vmul.f32 %v4042, %v4976
        %v5004 = vmul.f32 %v4046, %v4976
        %v5005 = vmul.f32 %v4050, %v4976
        %v5006 = vmul.f32 %v4054, %v4976
        %v5007 = vmul.f32 %v4058, %v4976
        %v5008 = vmul.f32 %v4062, %v4976
        %v5009 = vmul.f32 %v4066, %v4976
        %5010 = vset.pattern.permute.xlu0 53
        %5011 = vperm.xlu0 %5010, %v4764
        %v5012 = vpop.permute.xlu0 %5011
        %v5014 = vadd.f32 %v5012, %v4978
        %v5015 = vadd.f32 %v5012, %v4979
        %v5016 = vadd.f32 %v5012, %v4980
        %v5017 = vadd.f32 %v5012, %v4981
        %v5018 = vadd.f32 %v5012, %v4982
        %v5019 = vadd.f32 %v5012, %v4983
        %v5020 = vadd.f32 %v5012, %v4984
        %v5021 = vadd.f32 %v5012, %v4985
        %v5022 = vadd.f32 %v5012, %v4986
        %v5023 = vadd.f32 %v5012, %v4987
        %v5024 = vadd.f32 %v5012, %v4988
        %v5025 = vadd.f32 %v5012, %v4989
        %v5026 = vadd.f32 %v5012, %v4990
        %v5027 = vadd.f32 %v5012, %v4991
        %v5028 = vadd.f32 %v5012, %v4992
        %v5029 = vadd.f32 %v5012, %v4993
        %v5030 = vadd.f32 %v5012, %v4994
        %v5031 = vadd.f32 %v5012, %v4995
        %v5032 = vadd.f32 %v5012, %v4996
        %v5033 = vadd.f32 %v5012, %v4997
        %v5034 = vadd.f32 %v5012, %v4998
        %v5035 = vadd.f32 %v5012, %v4999
        %v5036 = vadd.f32 %v5012, %v5000
        %v5037 = vadd.f32 %v5012, %v5001
        %v5038 = vadd.f32 %v5012, %v5002
        %v5039 = vadd.f32 %v5012, %v5003
        %v5040 = vadd.f32 %v5012, %v5004
        %v5041 = vadd.f32 %v5012, %v5005
        %v5042 = vadd.f32 %v5012, %v5006
        %v5043 = vadd.f32 %v5012, %v5007
        %v5044 = vadd.f32 %v5012, %v5008
        %v5045 = vadd.f32 %v5012, %v5009
        %v5046 = vmul.f32 %v5014, %v2081
        %v5047 = vmul.f32 %v5015, %v2083
        %v5048 = vmul.f32 %v5016, %v2122
        %v5049 = vmul.f32 %v5017, %v2124
        %v5050 = vmul.f32 %v5018, %v2163
        %v5051 = vmul.f32 %v5019, %v2165
        %v5052 = vmul.f32 %v5020, %v2204
        %v5053 = vmul.f32 %v5021, %v2206
        %v5054 = vmul.f32 %v5022, %v2245
        %v5055 = vmul.f32 %v5023, %v2247
        %v5056 = vmul.f32 %v5024, %v2286
        %v5057 = vmul.f32 %v5025, %v2288
        %v5058 = vmul.f32 %v5026, %v2327
        %v5059 = vmul.f32 %v5027, %v2329
        %v5060 = vmul.f32 %v5028, %v2368
        %v5061 = vmul.f32 %v5029, %v2370
        %v5062 = vmul.f32 %v5030, %v2409
        %v5063 = vmul.f32 %v5031, %v2411
        %v5064 = vmul.f32 %v5032, %v2450
        %v5065 = vmul.f32 %v5033, %v2452
        %v5066 = vmul.f32 %v5034, %v2491
        %v5067 = vmul.f32 %v5035, %v2493
        %v5068 = vmul.f32 %v5036, %v2532
        %v5069 = vmul.f32 %v5037, %v2534
        %v5070 = vmul.f32 %v5038, %v2573
        %v5071 = vmul.f32 %v5039, %v2575
        %v5072 = vmul.f32 %v5040, %v2614
        %v5073 = vmul.f32 %v5041, %v2616
        %v5074 = vmul.f32 %v5042, %v2655
        %v5075 = vmul.f32 %v5043, %v2657
        %v5076 = vmul.f32 %v5044, %v2696
        %v5077 = vmul.f32 %v5045, %v2698
        %v5078 = vadd.f32 %v4942, %v5046
        %v5079 = vadd.f32 %v4943, %v5047
        %v5080 = vadd.f32 %v4944, %v5048
        %v5081 = vadd.f32 %v4945, %v5049
        %v5082 = vadd.f32 %v4946, %v5050
        %v5083 = vadd.f32 %v4947, %v5051
        %v5084 = vadd.f32 %v4948, %v5052
        %v5085 = vadd.f32 %v4949, %v5053
        %v5086 = vadd.f32 %v4950, %v5054
        %v5087 = vadd.f32 %v4951, %v5055
        %v5088 = vadd.f32 %v4952, %v5056
        %v5089 = vadd.f32 %v4953, %v5057
        %v5090 = vadd.f32 %v4954, %v5058
        %v5091 = vadd.f32 %v4955, %v5059
        %v5092 = vadd.f32 %v4956, %v5060
        %v5093 = vadd.f32 %v4957, %v5061
        %v5094 = vadd.f32 %v4958, %v5062
        %v5095 = vadd.f32 %v4959, %v5063
        %v5096 = vadd.f32 %v4960, %v5064
        %v5097 = vadd.f32 %v4961, %v5065
        %v5098 = vadd.f32 %v4962, %v5066
        %v5099 = vadd.f32 %v4963, %v5067
        %v5100 = vadd.f32 %v4964, %v5068
        %v5101 = vadd.f32 %v4965, %v5069
        %v5102 = vadd.f32 %v4966, %v5070
        %v5103 = vadd.f32 %v4967, %v5071
        %v5104 = vadd.f32 %v4968, %v5072
        %v5105 = vadd.f32 %v4969, %v5073
        %v5106 = vadd.f32 %v4970, %v5074
        %v5107 = vadd.f32 %v4971, %v5075
        %v5108 = vadd.f32 %v4972, %v5076
        %v5109 = vadd.f32 %v4973, %v5077
        %5110 = vset.pattern.permute.xlu0 66
        %5111 = vperm.xlu0 %5110, %v4764
        %v5112 = vpop.permute.xlu0 %5111
        %v5114 = vmul.f32 %v3942, %v5112
        %v5115 = vmul.f32 %v3946, %v5112
        %v5116 = vmul.f32 %v3950, %v5112
        %v5117 = vmul.f32 %v3954, %v5112
        %v5118 = vmul.f32 %v3958, %v5112
        %v5119 = vmul.f32 %v3962, %v5112
        %v5120 = vmul.f32 %v3966, %v5112
        %v5121 = vmul.f32 %v3970, %v5112
        %v5122 = vmul.f32 %v3974, %v5112
        %v5123 = vmul.f32 %v3978, %v5112
        %v5124 = vmul.f32 %v3982, %v5112
        %v5125 = vmul.f32 %v3986, %v5112
        %v5126 = vmul.f32 %v3990, %v5112
        %v5127 = vmul.f32 %v3994, %v5112
        %v5128 = vmul.f32 %v3998, %v5112
        %v5129 = vmul.f32 %v4002, %v5112
        %v5130 = vmul.f32 %v4006, %v5112
        %v5131 = vmul.f32 %v4010, %v5112
        %v5132 = vmul.f32 %v4014, %v5112
        %v5133 = vmul.f32 %v4018, %v5112
        %v5134 = vmul.f32 %v4022, %v5112
        %v5135 = vmul.f32 %v4026, %v5112
        %v5136 = vmul.f32 %v4030, %v5112
        %v5137 = vmul.f32 %v4034, %v5112
        %v5138 = vmul.f32 %v4038, %v5112
        %v5139 = vmul.f32 %v4042, %v5112
        %v5140 = vmul.f32 %v4046, %v5112
        %v5141 = vmul.f32 %v4050, %v5112
        %v5142 = vmul.f32 %v4054, %v5112
        %v5143 = vmul.f32 %v4058, %v5112
        %v5144 = vmul.f32 %v4062, %v5112
        %v5145 = vmul.f32 %v4066, %v5112
        %5146 = vset.pattern.permute.xlu0 54
        %5147 = vperm.xlu0 %5146, %v4764
        %v5148 = vpop.permute.xlu0 %5147
        %v5150 = vadd.f32 %v5148, %v5114
        %v5151 = vadd.f32 %v5148, %v5115
        %v5152 = vadd.f32 %v5148, %v5116
        %v5153 = vadd.f32 %v5148, %v5117
        %v5154 = vadd.f32 %v5148, %v5118
        %v5155 = vadd.f32 %v5148, %v5119
        %v5156 = vadd.f32 %v5148, %v5120
        %v5157 = vadd.f32 %v5148, %v5121
        %v5158 = vadd.f32 %v5148, %v5122
        %v5159 = vadd.f32 %v5148, %v5123
        %v5160 = vadd.f32 %v5148, %v5124
        %v5161 = vadd.f32 %v5148, %v5125
        %v5162 = vadd.f32 %v5148, %v5126
        %v5163 = vadd.f32 %v5148, %v5127
        %v5164 = vadd.f32 %v5148, %v5128
        %v5165 = vadd.f32 %v5148, %v5129
        %v5166 = vadd.f32 %v5148, %v5130
        %v5167 = vadd.f32 %v5148, %v5131
        %v5168 = vadd.f32 %v5148, %v5132
        %v5169 = vadd.f32 %v5148, %v5133
        %v5170 = vadd.f32 %v5148, %v5134
        %v5171 = vadd.f32 %v5148, %v5135
        %v5172 = vadd.f32 %v5148, %v5136
        %v5173 = vadd.f32 %v5148, %v5137
        %v5174 = vadd.f32 %v5148, %v5138
        %v5175 = vadd.f32 %v5148, %v5139
        %v5176 = vadd.f32 %v5148, %v5140
        %v5177 = vadd.f32 %v5148, %v5141
        %v5178 = vadd.f32 %v5148, %v5142
        %v5179 = vadd.f32 %v5148, %v5143
        %v5180 = vadd.f32 %v5148, %v5144
        %v5181 = vadd.f32 %v5148, %v5145
        %v5182 = vmul.f32 %v5150, %v3314
        %v5183 = vmul.f32 %v5151, %v3316
        %v5184 = vmul.f32 %v5152, %v3355
        %v5185 = vmul.f32 %v5153, %v3357
        %v5186 = vmul.f32 %v5154, %v3396
        %v5187 = vmul.f32 %v5155, %v3398
        %v5188 = vmul.f32 %v5156, %v3437
        %v5189 = vmul.f32 %v5157, %v3439
        %v5190 = vmul.f32 %v5158, %v3478
        %v5191 = vmul.f32 %v5159, %v3480
        %v5192 = vmul.f32 %v5160, %v3519
        %v5193 = vmul.f32 %v5161, %v3521
        %v5194 = vmul.f32 %v5162, %v3560
        %v5195 = vmul.f32 %v5163, %v3562
        %v5196 = vmul.f32 %v5164, %v3601
        %v5197 = vmul.f32 %v5165, %v3603
        %v5198 = vmul.f32 %v5166, %v3642
        %v5199 = vmul.f32 %v5167, %v3644
        %v5200 = vmul.f32 %v5168, %v3683
        %v5201 = vmul.f32 %v5169, %v3685
        %v5202 = vmul.f32 %v5170, %v3724
        %v5203 = vmul.f32 %v5171, %v3726
        %v5204 = vmul.f32 %v5172, %v3765
        %v5205 = vmul.f32 %v5173, %v3767
        %v5206 = vmul.f32 %v5174, %v3806
        %v5207 = vmul.f32 %v5175, %v3808
        %v5208 = vmul.f32 %v5176, %v3847
        %v5209 = vmul.f32 %v5177, %v3849
        %v5210 = vmul.f32 %v5178, %v3888
        %v5211 = vmul.f32 %v5179, %v3890
        %v5212 = vmul.f32 %v5180, %v3929
        %v5213 = vmul.f32 %v5181, %v3931
        %v5214 = vadd.f32 %v5078, %v5182
        %v5215 = vadd.f32 %v5079, %v5183
        %v5216 = vadd.f32 %v5080, %v5184
        %v5217 = vadd.f32 %v5081, %v5185
        %v5218 = vadd.f32 %v5082, %v5186
        %v5219 = vadd.f32 %v5083, %v5187
        %v5220 = vadd.f32 %v5084, %v5188
        %v5221 = vadd.f32 %v5085, %v5189
        %v5222 = vadd.f32 %v5086, %v5190
        %v5223 = vadd.f32 %v5087, %v5191
        %v5224 = vadd.f32 %v5088, %v5192
        %v5225 = vadd.f32 %v5089, %v5193
        %v5226 = vadd.f32 %v5090, %v5194
        %v5227 = vadd.f32 %v5091, %v5195
        %v5228 = vadd.f32 %v5092, %v5196
        %v5229 = vadd.f32 %v5093, %v5197
        %v5230 = vadd.f32 %v5094, %v5198
        %v5231 = vadd.f32 %v5095, %v5199
        %v5232 = vadd.f32 %v5096, %v5200
        %v5233 = vadd.f32 %v5097, %v5201
        %v5234 = vadd.f32 %v5098, %v5202
        %v5235 = vadd.f32 %v5099, %v5203
        %v5236 = vadd.f32 %v5100, %v5204
        %v5237 = vadd.f32 %v5101, %v5205
        %v5238 = vadd.f32 %v5102, %v5206
        %v5239 = vadd.f32 %v5103, %v5207
        %v5240 = vadd.f32 %v5104, %v5208
        %v5241 = vadd.f32 %v5105, %v5209
        %v5242 = vadd.f32 %v5106, %v5210
        %v5243 = vadd.f32 %v5107, %v5211
        %v5244 = vadd.f32 %v5108, %v5212
        %v5245 = vadd.f32 %v5109, %v5213
        %v5278 = vcombine.low %v5214, %v5215
        %v5279 = vcombine.low %v5216, %v5217
        %v5281 = vunpack.c.l.s4 1983009808
        %v5282 = vunpack.c.0.s8 %v5281
        %v5283 = vlaneseq
        %v5284 = vshrl.u32 %v5283, 7
        %v5285 = vsub.s32 %v5282, %v5284
        %v5286 = vrot.slane %v5278, %v5285
        %v5288 = vunpack.c.l.s4 1983009808
        %v5289 = vunpack.c.0.s8 %v5288
        %v5290 = vlaneseq
        %v5291 = vshrl.u32 %v5290, 7
        %v5292 = vsub.s32 %v5289, %v5291
        %v5293 = vrot.slane %v5279, %v5292
        %v5294 = vcombine.low %v5286, %v5293
        %v5295 = vcombine.low %v5218, %v5219
        %v5296 = vcombine.low %v5220, %v5221
        %v5298 = vunpack.c.l.s4 1983009808
        %v5299 = vunpack.c.0.s8 %v5298
        %v5300 = vlaneseq
        %v5301 = vshrl.u32 %v5300, 7
        %v5302 = vsub.s32 %v5299, %v5301
        %v5303 = vrot.slane %v5295, %v5302
        %v5305 = vunpack.c.l.s4 1983009808
        %v5306 = vunpack.c.0.s8 %v5305
        %v5307 = vlaneseq
        %v5308 = vshrl.u32 %v5307, 7
        %v5309 = vsub.s32 %v5306, %v5308
        %v5310 = vrot.slane %v5296, %v5309
        %v5311 = vcombine.low %v5303, %v5310
        %v5312 = vcombine.low %v5222, %v5223
        %v5313 = vcombine.low %v5224, %v5225
        %v5315 = vunpack.c.l.s4 1983009808
        %v5316 = vunpack.c.0.s8 %v5315
        %v5317 = vlaneseq
        %v5318 = vshrl.u32 %v5317, 7
        %v5319 = vsub.s32 %v5316, %v5318
        %v5320 = vrot.slane %v5312, %v5319
        %v5322 = vunpack.c.l.s4 1983009808
        %v5323 = vunpack.c.0.s8 %v5322
        %v5324 = vlaneseq
        %v5325 = vshrl.u32 %v5324, 7
        %v5326 = vsub.s32 %v5323, %v5325
        %v5327 = vrot.slane %v5313, %v5326
        %v5328 = vcombine.low %v5320, %v5327
        %v5329 = vcombine.low %v5226, %v5227
        %v5330 = vcombine.low %v5228, %v5229
        %v5332 = vunpack.c.l.s4 1983009808
        %v5333 = vunpack.c.0.s8 %v5332
        %v5334 = vlaneseq
        %v5335 = vshrl.u32 %v5334, 7
        %v5336 = vsub.s32 %v5333, %v5335
        %v5337 = vrot.slane %v5329, %v5336
        %v5339 = vunpack.c.l.s4 1983009808
        %v5340 = vunpack.c.0.s8 %v5339
        %v5341 = vlaneseq
        %v5342 = vshrl.u32 %v5341, 7
        %v5343 = vsub.s32 %v5340, %v5342
        %v5344 = vrot.slane %v5330, %v5343
        %v5345 = vcombine.low %v5337, %v5344
        %v5346 = vcombine.low %v5230, %v5231
        %v5347 = vcombine.low %v5232, %v5233
        %v5349 = vunpack.c.l.s4 1983009808
        %v5350 = vunpack.c.0.s8 %v5349
        %v5351 = vlaneseq
        %v5352 = vshrl.u32 %v5351, 7
        %v5353 = vsub.s32 %v5350, %v5352
        %v5354 = vrot.slane %v5346, %v5353
        %v5356 = vunpack.c.l.s4 1983009808
        %v5357 = vunpack.c.0.s8 %v5356
        %v5358 = vlaneseq
        %v5359 = vshrl.u32 %v5358, 7
        %v5360 = vsub.s32 %v5357, %v5359
        %v5361 = vrot.slane %v5347, %v5360
        %v5362 = vcombine.low %v5354, %v5361
        %v5363 = vcombine.low %v5234, %v5235
        %v5364 = vcombine.low %v5236, %v5237
        %v5366 = vunpack.c.l.s4 1983009808
        %v5367 = vunpack.c.0.s8 %v5366
        %v5368 = vlaneseq
        %v5369 = vshrl.u32 %v5368, 7
        %v5370 = vsub.s32 %v5367, %v5369
        %v5371 = vrot.slane %v5363, %v5370
        %v5373 = vunpack.c.l.s4 1983009808
        %v5374 = vunpack.c.0.s8 %v5373
        %v5375 = vlaneseq
        %v5376 = vshrl.u32 %v5375, 7
        %v5377 = vsub.s32 %v5374, %v5376
        %v5378 = vrot.slane %v5364, %v5377
        %v5379 = vcombine.low %v5371, %v5378
        %v5380 = vcombine.low %v5238, %v5239
        %v5381 = vcombine.low %v5240, %v5241
        %v5383 = vunpack.c.l.s4 1983009808
        %v5384 = vunpack.c.0.s8 %v5383
        %v5385 = vlaneseq
        %v5386 = vshrl.u32 %v5385, 7
        %v5387 = vsub.s32 %v5384, %v5386
        %v5388 = vrot.slane %v5380, %v5387
        %v5390 = vunpack.c.l.s4 1983009808
        %v5391 = vunpack.c.0.s8 %v5390
        %v5392 = vlaneseq
        %v5393 = vshrl.u32 %v5392, 7
        %v5394 = vsub.s32 %v5391, %v5393
        %v5395 = vrot.slane %v5381, %v5394
        %v5396 = vcombine.low %v5388, %v5395
        %v5397 = vcombine.low %v5242, %v5243
        %v5398 = vcombine.low %v5244, %v5245
        %v5400 = vunpack.c.l.s4 1983009808
        %v5401 = vunpack.c.0.s8 %v5400
        %v5402 = vlaneseq
        %v5403 = vshrl.u32 %v5402, 7
        %v5404 = vsub.s32 %v5401, %v5403
        %v5405 = vrot.slane %v5397, %v5404
        %v5407 = vunpack.c.l.s4 1983009808
        %v5408 = vunpack.c.0.s8 %v5407
        %v5409 = vlaneseq
        %v5410 = vshrl.u32 %v5409, 7
        %v5411 = vsub.s32 %v5408, %v5410
        %v5412 = vrot.slane %v5398, %v5411
        %v5413 = vcombine.low %v5405, %v5412
        %s5422 = scalar_lea.vmem %s222, 64 [#allocation6]
        %5423 = vst [vmem:[%s5422] sm:$0xff] %v5294
        %5424 = vst [vmem:[%s5422 + $0x8] sm:$0xff] %v5311
        %5425 = vst [vmem:[%s5422 + $0x10] sm:$0xff] %v5328
        %5426 = vst [vmem:[%s5422 + $0x18] sm:$0xff] %v5345
        %5427 = vst [vmem:[%s5422 + $0x20] sm:$0xff] %v5362
        %5428 = vst [vmem:[%s5422 + $0x28] sm:$0xff] %v5379
        %5429 = vst [vmem:[%s5422 + $0x30] sm:$0xff] %v5396
        %5430 = vst [vmem:[%s5422 + $0x38] sm:$0xff] %v5413
        %v5431 = vld [vmem:[%s0] sm:$0x3]
        %5433 = vset.pattern.permute.xlu0 71
        %5434 = vperm.xlu0 %5433, %v5431
        %v5435 = vpop.permute.xlu0 %5434
        %v5437 = vmul.f32 %v3942, %v5435
        %v5438 = vmul.f32 %v3946, %v5435
        %v5439 = vmul.f32 %v3950, %v5435
        %v5440 = vmul.f32 %v3954, %v5435
        %v5441 = vmul.f32 %v3958, %v5435
        %v5442 = vmul.f32 %v3962, %v5435
        %v5443 = vmul.f32 %v3966, %v5435
        %v5444 = vmul.f32 %v3970, %v5435
        %v5445 = vmul.f32 %v3974, %v5435
        %v5446 = vmul.f32 %v3978, %v5435
        %v5447 = vmul.f32 %v3982, %v5435
        %v5448 = vmul.f32 %v3986, %v5435
        %v5449 = vmul.f32 %v3990, %v5435
        %v5450 = vmul.f32 %v3994, %v5435
        %v5451 = vmul.f32 %v3998, %v5435
        %v5452 = vmul.f32 %v4002, %v5435
        %v5453 = vmul.f32 %v4006, %v5435
        %v5454 = vmul.f32 %v4010, %v5435
        %v5455 = vmul.f32 %v4014, %v5435
        %v5456 = vmul.f32 %v4018, %v5435
        %v5457 = vmul.f32 %v4022, %v5435
        %v5458 = vmul.f32 %v4026, %v5435
        %v5459 = vmul.f32 %v4030, %v5435
        %v5460 = vmul.f32 %v4034, %v5435
        %v5461 = vmul.f32 %v4038, %v5435
        %v5462 = vmul.f32 %v4042, %v5435
        %v5463 = vmul.f32 %v4046, %v5435
        %v5464 = vmul.f32 %v4050, %v5435
        %v5465 = vmul.f32 %v4054, %v5435
        %v5466 = vmul.f32 %v4058, %v5435
        %v5467 = vmul.f32 %v4062, %v5435
        %v5468 = vmul.f32 %v4066, %v5435
        %5469 = vset.pattern.permute.xlu0 59
        %5470 = vperm.xlu0 %5469, %v5431
        %v5471 = vpop.permute.xlu0 %5470
        %v5473 = vadd.f32 %v5471, %v5437
        %v5474 = vadd.f32 %v5471, %v5438
        %v5475 = vadd.f32 %v5471, %v5439
        %v5476 = vadd.f32 %v5471, %v5440
        %v5477 = vadd.f32 %v5471, %v5441
        %v5478 = vadd.f32 %v5471, %v5442
        %v5479 = vadd.f32 %v5471, %v5443
        %v5480 = vadd.f32 %v5471, %v5444
        %v5481 = vadd.f32 %v5471, %v5445
        %v5482 = vadd.f32 %v5471, %v5446
        %v5483 = vadd.f32 %v5471, %v5447
        %v5484 = vadd.f32 %v5471, %v5448
        %v5485 = vadd.f32 %v5471, %v5449
        %v5486 = vadd.f32 %v5471, %v5450
        %v5487 = vadd.f32 %v5471, %v5451
        %v5488 = vadd.f32 %v5471, %v5452
        %v5489 = vadd.f32 %v5471, %v5453
        %v5490 = vadd.f32 %v5471, %v5454
        %v5491 = vadd.f32 %v5471, %v5455
        %v5492 = vadd.f32 %v5471, %v5456
        %v5493 = vadd.f32 %v5471, %v5457
        %v5494 = vadd.f32 %v5471, %v5458
        %v5495 = vadd.f32 %v5471, %v5459
        %v5496 = vadd.f32 %v5471, %v5460
        %v5497 = vadd.f32 %v5471, %v5461
        %v5498 = vadd.f32 %v5471, %v5462
        %v5499 = vadd.f32 %v5471, %v5463
        %v5500 = vadd.f32 %v5471, %v5464
        %v5501 = vadd.f32 %v5471, %v5465
        %v5502 = vadd.f32 %v5471, %v5466
        %v5503 = vadd.f32 %v5471, %v5467
        %v5504 = vadd.f32 %v5471, %v5468
        %5505 = vset.pattern.permute.xlu0 68
        %5506 = vperm.xlu0 %5505, %v5431
        %v5507 = vpop.permute.xlu0 %5506
        %v5509 = vmul.f32 %v3942, %v5507
        %v5510 = vmul.f32 %v3946, %v5507
        %v5511 = vmul.f32 %v3950, %v5507
        %v5512 = vmul.f32 %v3954, %v5507
        %v5513 = vmul.f32 %v3958, %v5507
        %v5514 = vmul.f32 %v3962, %v5507
        %v5515 = vmul.f32 %v3966, %v5507
        %v5516 = vmul.f32 %v3970, %v5507
        %v5517 = vmul.f32 %v3974, %v5507
        %v5518 = vmul.f32 %v3978, %v5507
        %v5519 = vmul.f32 %v3982, %v5507
        %v5520 = vmul.f32 %v3986, %v5507
        %v5521 = vmul.f32 %v3990, %v5507
        %v5522 = vmul.f32 %v3994, %v5507
        %v5523 = vmul.f32 %v3998, %v5507
        %v5524 = vmul.f32 %v4002, %v5507
        %v5525 = vmul.f32 %v4006, %v5507
        %v5526 = vmul.f32 %v4010, %v5507
        %v5527 = vmul.f32 %v4014, %v5507
        %v5528 = vmul.f32 %v4018, %v5507
        %v5529 = vmul.f32 %v4022, %v5507
        %v5530 = vmul.f32 %v4026, %v5507
        %v5531 = vmul.f32 %v4030, %v5507
        %v5532 = vmul.f32 %v4034, %v5507
        %v5533 = vmul.f32 %v4038, %v5507
        %v5534 = vmul.f32 %v4042, %v5507
        %v5535 = vmul.f32 %v4046, %v5507
        %v5536 = vmul.f32 %v4050, %v5507
        %v5537 = vmul.f32 %v4054, %v5507
        %v5538 = vmul.f32 %v4058, %v5507
        %v5539 = vmul.f32 %v4062, %v5507
        %v5540 = vmul.f32 %v4066, %v5507
        %5541 = vset.pattern.permute.xlu0 56
        %5542 = vperm.xlu0 %5541, %v5431
        %v5543 = vpop.permute.xlu0 %5542
        %v5545 = vadd.f32 %v5543, %v5509
        %v5546 = vadd.f32 %v5543, %v5510
        %v5547 = vadd.f32 %v5543, %v5511
        %v5548 = vadd.f32 %v5543, %v5512
        %v5549 = vadd.f32 %v5543, %v5513
        %v5550 = vadd.f32 %v5543, %v5514
        %v5551 = vadd.f32 %v5543, %v5515
        %v5552 = vadd.f32 %v5543, %v5516
        %v5553 = vadd.f32 %v5543, %v5517
        %v5554 = vadd.f32 %v5543, %v5518
        %v5555 = vadd.f32 %v5543, %v5519
        %v5556 = vadd.f32 %v5543, %v5520
        %v5557 = vadd.f32 %v5543, %v5521
        %v5558 = vadd.f32 %v5543, %v5522
        %v5559 = vadd.f32 %v5543, %v5523
        %v5560 = vadd.f32 %v5543, %v5524
        %v5561 = vadd.f32 %v5543, %v5525
        %v5562 = vadd.f32 %v5543, %v5526
        %v5563 = vadd.f32 %v5543, %v5527
        %v5564 = vadd.f32 %v5543, %v5528
        %v5565 = vadd.f32 %v5543, %v5529
        %v5566 = vadd.f32 %v5543, %v5530
        %v5567 = vadd.f32 %v5543, %v5531
        %v5568 = vadd.f32 %v5543, %v5532
        %v5569 = vadd.f32 %v5543, %v5533
        %v5570 = vadd.f32 %v5543, %v5534
        %v5571 = vadd.f32 %v5543, %v5535
        %v5572 = vadd.f32 %v5543, %v5536
        %v5573 = vadd.f32 %v5543, %v5537
        %v5574 = vadd.f32 %v5543, %v5538
        %v5575 = vadd.f32 %v5543, %v5539
        %v5576 = vadd.f32 %v5543, %v5540
        %v5577 = vmul.f32 %v5545, %v848
        %v5578 = vmul.f32 %v5546, %v850
        %v5579 = vmul.f32 %v5547, %v889
        %v5580 = vmul.f32 %v5548, %v891
        %v5581 = vmul.f32 %v5549, %v930
        %v5582 = vmul.f32 %v5550, %v932
        %v5583 = vmul.f32 %v5551, %v971
        %v5584 = vmul.f32 %v5552, %v973
        %v5585 = vmul.f32 %v5553, %v1012
        %v5586 = vmul.f32 %v5554, %v1014
        %v5587 = vmul.f32 %v5555, %v1053
        %v5588 = vmul.f32 %v5556, %v1055
        %v5589 = vmul.f32 %v5557, %v1094
        %v5590 = vmul.f32 %v5558, %v1096
        %v5591 = vmul.f32 %v5559, %v1135
        %v5592 = vmul.f32 %v5560, %v1137
        %v5593 = vmul.f32 %v5561, %v1176
        %v5594 = vmul.f32 %v5562, %v1178
        %v5595 = vmul.f32 %v5563, %v1217
        %v5596 = vmul.f32 %v5564, %v1219
        %v5597 = vmul.f32 %v5565, %v1258
        %v5598 = vmul.f32 %v5566, %v1260
        %v5599 = vmul.f32 %v5567, %v1299
        %v5600 = vmul.f32 %v5568, %v1301
        %v5601 = vmul.f32 %v5569, %v1340
        %v5602 = vmul.f32 %v5570, %v1342
        %v5603 = vmul.f32 %v5571, %v1381
        %v5604 = vmul.f32 %v5572, %v1383
        %v5605 = vmul.f32 %v5573, %v1422
        %v5606 = vmul.f32 %v5574, %v1424
        %v5607 = vmul.f32 %v5575, %v1463
        %v5608 = vmul.f32 %v5576, %v1465
        %v5609 = vadd.f32 %v5473, %v5577
        %v5610 = vadd.f32 %v5474, %v5578
        %v5611 = vadd.f32 %v5475, %v5579
        %v5612 = vadd.f32 %v5476, %v5580
        %v5613 = vadd.f32 %v5477, %v5581
        %v5614 = vadd.f32 %v5478, %v5582
        %v5615 = vadd.f32 %v5479, %v5583
        %v5616 = vadd.f32 %v5480, %v5584
        %v5617 = vadd.f32 %v5481, %v5585
        %v5618 = vadd.f32 %v5482, %v5586
        %v5619 = vadd.f32 %v5483, %v5587
        %v5620 = vadd.f32 %v5484, %v5588
        %v5621 = vadd.f32 %v5485, %v5589
        %v5622 = vadd.f32 %v5486, %v5590
        %v5623 = vadd.f32 %v5487, %v5591
        %v5624 = vadd.f32 %v5488, %v5592
        %v5625 = vadd.f32 %v5489, %v5593
        %v5626 = vadd.f32 %v5490, %v5594
        %v5627 = vadd.f32 %v5491, %v5595
        %v5628 = vadd.f32 %v5492, %v5596
        %v5629 = vadd.f32 %v5493, %v5597
        %v5630 = vadd.f32 %v5494, %v5598
        %v5631 = vadd.f32 %v5495, %v5599
        %v5632 = vadd.f32 %v5496, %v5600
        %v5633 = vadd.f32 %v5497, %v5601
        %v5634 = vadd.f32 %v5498, %v5602
        %v5635 = vadd.f32 %v5499, %v5603
        %v5636 = vadd.f32 %v5500, %v5604
        %v5637 = vadd.f32 %v5501, %v5605
        %v5638 = vadd.f32 %v5502, %v5606
        %v5639 = vadd.f32 %v5503, %v5607
        %v5640 = vadd.f32 %v5504, %v5608
        %5641 = vset.pattern.permute.xlu0 69
        %5642 = vperm.xlu0 %5641, %v5431
        %v5643 = vpop.permute.xlu0 %5642
        %v5645 = vmul.f32 %v3942, %v5643
        %v5646 = vmul.f32 %v3946, %v5643
        %v5647 = vmul.f32 %v3950, %v5643
        %v5648 = vmul.f32 %v3954, %v5643
        %v5649 = vmul.f32 %v3958, %v5643
        %v5650 = vmul.f32 %v3962, %v5643
        %v5651 = vmul.f32 %v3966, %v5643
        %v5652 = vmul.f32 %v3970, %v5643
        %v5653 = vmul.f32 %v3974, %v5643
        %v5654 = vmul.f32 %v3978, %v5643
        %v5655 = vmul.f32 %v3982, %v5643
        %v5656 = vmul.f32 %v3986, %v5643
        %v5657 = vmul.f32 %v3990, %v5643
        %v5658 = vmul.f32 %v3994, %v5643
        %v5659 = vmul.f32 %v3998, %v5643
        %v5660 = vmul.f32 %v4002, %v5643
        %v5661 = vmul.f32 %v4006, %v5643
        %v5662 = vmul.f32 %v4010, %v5643
        %v5663 = vmul.f32 %v4014, %v5643
        %v5664 = vmul.f32 %v4018, %v5643
        %v5665 = vmul.f32 %v4022, %v5643
        %v5666 = vmul.f32 %v4026, %v5643
        %v5667 = vmul.f32 %v4030, %v5643
        %v5668 = vmul.f32 %v4034, %v5643
        %v5669 = vmul.f32 %v4038, %v5643
        %v5670 = vmul.f32 %v4042, %v5643
        %v5671 = vmul.f32 %v4046, %v5643
        %v5672 = vmul.f32 %v4050, %v5643
        %v5673 = vmul.f32 %v4054, %v5643
        %v5674 = vmul.f32 %v4058, %v5643
        %v5675 = vmul.f32 %v4062, %v5643
        %v5676 = vmul.f32 %v4066, %v5643
        %5677 = vset.pattern.permute.xlu0 57
        %5678 = vperm.xlu0 %5677, %v5431
        %v5679 = vpop.permute.xlu0 %5678
        %v5681 = vadd.f32 %v5679, %v5645
        %v5682 = vadd.f32 %v5679, %v5646
        %v5683 = vadd.f32 %v5679, %v5647
        %v5684 = vadd.f32 %v5679, %v5648
        %v5685 = vadd.f32 %v5679, %v5649
        %v5686 = vadd.f32 %v5679, %v5650
        %v5687 = vadd.f32 %v5679, %v5651
        %v5688 = vadd.f32 %v5679, %v5652
        %v5689 = vadd.f32 %v5679, %v5653
        %v5690 = vadd.f32 %v5679, %v5654
        %v5691 = vadd.f32 %v5679, %v5655
        %v5692 = vadd.f32 %v5679, %v5656
        %v5693 = vadd.f32 %v5679, %v5657
        %v5694 = vadd.f32 %v5679, %v5658
        %v5695 = vadd.f32 %v5679, %v5659
        %v5696 = vadd.f32 %v5679, %v5660
        %v5697 = vadd.f32 %v5679, %v5661
        %v5698 = vadd.f32 %v5679, %v5662
        %v5699 = vadd.f32 %v5679, %v5663
        %v5700 = vadd.f32 %v5679, %v5664
        %v5701 = vadd.f32 %v5679, %v5665
        %v5702 = vadd.f32 %v5679, %v5666
        %v5703 = vadd.f32 %v5679, %v5667
        %v5704 = vadd.f32 %v5679, %v5668
        %v5705 = vadd.f32 %v5679, %v5669
        %v5706 = vadd.f32 %v5679, %v5670
        %v5707 = vadd.f32 %v5679, %v5671
        %v5708 = vadd.f32 %v5679, %v5672
        %v5709 = vadd.f32 %v5679, %v5673
        %v5710 = vadd.f32 %v5679, %v5674
        %v5711 = vadd.f32 %v5679, %v5675
        %v5712 = vadd.f32 %v5679, %v5676
        %v5713 = vmul.f32 %v5681, %v2081
        %v5714 = vmul.f32 %v5682, %v2083
        %v5715 = vmul.f32 %v5683, %v2122
        %v5716 = vmul.f32 %v5684, %v2124
        %v5717 = vmul.f32 %v5685, %v2163
        %v5718 = vmul.f32 %v5686, %v2165
        %v5719 = vmul.f32 %v5687, %v2204
        %v5720 = vmul.f32 %v5688, %v2206
        %v5721 = vmul.f32 %v5689, %v2245
        %v5722 = vmul.f32 %v5690, %v2247
        %v5723 = vmul.f32 %v5691, %v2286
        %v5724 = vmul.f32 %v5692, %v2288
        %v5725 = vmul.f32 %v5693, %v2327
        %v5726 = vmul.f32 %v5694, %v2329
        %v5727 = vmul.f32 %v5695, %v2368
        %v5728 = vmul.f32 %v5696, %v2370
        %v5729 = vmul.f32 %v5697, %v2409
        %v5730 = vmul.f32 %v5698, %v2411
        %v5731 = vmul.f32 %v5699, %v2450
        %v5732 = vmul.f32 %v5700, %v2452
        %v5733 = vmul.f32 %v5701, %v2491
        %v5734 = vmul.f32 %v5702, %v2493
        %v5735 = vmul.f32 %v5703, %v2532
        %v5736 = vmul.f32 %v5704, %v2534
        %v5737 = vmul.f32 %v5705, %v2573
        %v5738 = vmul.f32 %v5706, %v2575
        %v5739 = vmul.f32 %v5707, %v2614
        %v5740 = vmul.f32 %v5708, %v2616
        %v5741 = vmul.f32 %v5709, %v2655
        %v5742 = vmul.f32 %v5710, %v2657
        %v5743 = vmul.f32 %v5711, %v2696
        %v5744 = vmul.f32 %v5712, %v2698
        %v5745 = vadd.f32 %v5609, %v5713
        %v5746 = vadd.f32 %v5610, %v5714
        %v5747 = vadd.f32 %v5611, %v5715
        %v5748 = vadd.f32 %v5612, %v5716
        %v5749 = vadd.f32 %v5613, %v5717
        %v5750 = vadd.f32 %v5614, %v5718
        %v5751 = vadd.f32 %v5615, %v5719
        %v5752 = vadd.f32 %v5616, %v5720
        %v5753 = vadd.f32 %v5617, %v5721
        %v5754 = vadd.f32 %v5618, %v5722
        %v5755 = vadd.f32 %v5619, %v5723
        %v5756 = vadd.f32 %v5620, %v5724
        %v5757 = vadd.f32 %v5621, %v5725
        %v5758 = vadd.f32 %v5622, %v5726
        %v5759 = vadd.f32 %v5623, %v5727
        %v5760 = vadd.f32 %v5624, %v5728
        %v5761 = vadd.f32 %v5625, %v5729
        %v5762 = vadd.f32 %v5626, %v5730
        %v5763 = vadd.f32 %v5627, %v5731
        %v5764 = vadd.f32 %v5628, %v5732
        %v5765 = vadd.f32 %v5629, %v5733
        %v5766 = vadd.f32 %v5630, %v5734
        %v5767 = vadd.f32 %v5631, %v5735
        %v5768 = vadd.f32 %v5632, %v5736
        %v5769 = vadd.f32 %v5633, %v5737
        %v5770 = vadd.f32 %v5634, %v5738
        %v5771 = vadd.f32 %v5635, %v5739
        %v5772 = vadd.f32 %v5636, %v5740
        %v5773 = vadd.f32 %v5637, %v5741
        %v5774 = vadd.f32 %v5638, %v5742
        %v5775 = vadd.f32 %v5639, %v5743
        %v5776 = vadd.f32 %v5640, %v5744
        %5777 = vset.pattern.permute.xlu0 70
        %5778 = vperm.xlu0 %5777, %v5431
        %v5779 = vpop.permute.xlu0 %5778
        %v5781 = vmul.f32 %v3942, %v5779
        %v5782 = vmul.f32 %v3946, %v5779
        %v5783 = vmul.f32 %v3950, %v5779
        %v5784 = vmul.f32 %v3954, %v5779
        %v5785 = vmul.f32 %v3958, %v5779
        %v5786 = vmul.f32 %v3962, %v5779
        %v5787 = vmul.f32 %v3966, %v5779
        %v5788 = vmul.f32 %v3970, %v5779
        %v5789 = vmul.f32 %v3974, %v5779
        %v5790 = vmul.f32 %v3978, %v5779
        %v5791 = vmul.f32 %v3982, %v5779
        %v5792 = vmul.f32 %v3986, %v5779
        %v5793 = vmul.f32 %v3990, %v5779
        %v5794 = vmul.f32 %v3994, %v5779
        %v5795 = vmul.f32 %v3998, %v5779
        %v5796 = vmul.f32 %v4002, %v5779
        %v5797 = vmul.f32 %v4006, %v5779
        %v5798 = vmul.f32 %v4010, %v5779
        %v5799 = vmul.f32 %v4014, %v5779
        %v5800 = vmul.f32 %v4018, %v5779
        %v5801 = vmul.f32 %v4022, %v5779
        %v5802 = vmul.f32 %v4026, %v5779
        %v5803 = vmul.f32 %v4030, %v5779
        %v5804 = vmul.f32 %v4034, %v5779
        %v5805 = vmul.f32 %v4038, %v5779
        %v5806 = vmul.f32 %v4042, %v5779
        %v5807 = vmul.f32 %v4046, %v5779
        %v5808 = vmul.f32 %v4050, %v5779
        %v5809 = vmul.f32 %v4054, %v5779
        %v5810 = vmul.f32 %v4058, %v5779
        %v5811 = vmul.f32 %v4062, %v5779
        %v5812 = vmul.f32 %v4066, %v5779
        %5813 = vset.pattern.permute.xlu0 58
        %5814 = vperm.xlu0 %5813, %v5431
        %v5815 = vpop.permute.xlu0 %5814
        %v5817 = vadd.f32 %v5815, %v5781
        %v5818 = vadd.f32 %v5815, %v5782
        %v5819 = vadd.f32 %v5815, %v5783
        %v5820 = vadd.f32 %v5815, %v5784
        %v5821 = vadd.f32 %v5815, %v5785
        %v5822 = vadd.f32 %v5815, %v5786
        %v5823 = vadd.f32 %v5815, %v5787
        %v5824 = vadd.f32 %v5815, %v5788
        %v5825 = vadd.f32 %v5815, %v5789
        %v5826 = vadd.f32 %v5815, %v5790
        %v5827 = vadd.f32 %v5815, %v5791
        %v5828 = vadd.f32 %v5815, %v5792
        %v5829 = vadd.f32 %v5815, %v5793
        %v5830 = vadd.f32 %v5815, %v5794
        %v5831 = vadd.f32 %v5815, %v5795
        %v5832 = vadd.f32 %v5815, %v5796
        %v5833 = vadd.f32 %v5815, %v5797
        %v5834 = vadd.f32 %v5815, %v5798
        %v5835 = vadd.f32 %v5815, %v5799
        %v5836 = vadd.f32 %v5815, %v5800
        %v5837 = vadd.f32 %v5815, %v5801
        %v5838 = vadd.f32 %v5815, %v5802
        %v5839 = vadd.f32 %v5815, %v5803
        %v5840 = vadd.f32 %v5815, %v5804
        %v5841 = vadd.f32 %v5815, %v5805
        %v5842 = vadd.f32 %v5815, %v5806
        %v5843 = vadd.f32 %v5815, %v5807
        %v5844 = vadd.f32 %v5815, %v5808
        %v5845 = vadd.f32 %v5815, %v5809
        %v5846 = vadd.f32 %v5815, %v5810
        %v5847 = vadd.f32 %v5815, %v5811
        %v5848 = vadd.f32 %v5815, %v5812
        %v5849 = vmul.f32 %v5817, %v3314
        %v5850 = vmul.f32 %v5818, %v3316
        %v5851 = vmul.f32 %v5819, %v3355
        %v5852 = vmul.f32 %v5820, %v3357
        %v5853 = vmul.f32 %v5821, %v3396
        %v5854 = vmul.f32 %v5822, %v3398
        %v5855 = vmul.f32 %v5823, %v3437
        %v5856 = vmul.f32 %v5824, %v3439
        %v5857 = vmul.f32 %v5825, %v3478
        %v5858 = vmul.f32 %v5826, %v3480
        %v5859 = vmul.f32 %v5827, %v3519
        %v5860 = vmul.f32 %v5828, %v3521
        %v5861 = vmul.f32 %v5829, %v3560
        %v5862 = vmul.f32 %v5830, %v3562
        %v5863 = vmul.f32 %v5831, %v3601
        %v5864 = vmul.f32 %v5832, %v3603
        %v5865 = vmul.f32 %v5833, %v3642
        %v5866 = vmul.f32 %v5834, %v3644
        %v5867 = vmul.f32 %v5835, %v3683
        %v5868 = vmul.f32 %v5836, %v3685
        %v5869 = vmul.f32 %v5837, %v3724
        %v5870 = vmul.f32 %v5838, %v3726
        %v5871 = vmul.f32 %v5839, %v3765
        %v5872 = vmul.f32 %v5840, %v3767
        %v5873 = vmul.f32 %v5841, %v3806
        %v5874 = vmul.f32 %v5842, %v3808
        %v5875 = vmul.f32 %v5843, %v3847
        %v5876 = vmul.f32 %v5844, %v3849
        %v5877 = vmul.f32 %v5845, %v3888
        %v5878 = vmul.f32 %v5846, %v3890
        %v5879 = vmul.f32 %v5847, %v3929
        %v5880 = vmul.f32 %v5848, %v3931
        %v5881 = vadd.f32 %v5745, %v5849
        %v5882 = vadd.f32 %v5746, %v5850
        %v5883 = vadd.f32 %v5747, %v5851
        %v5884 = vadd.f32 %v5748, %v5852
        %v5885 = vadd.f32 %v5749, %v5853
        %v5886 = vadd.f32 %v5750, %v5854
        %v5887 = vadd.f32 %v5751, %v5855
        %v5888 = vadd.f32 %v5752, %v5856
        %v5889 = vadd.f32 %v5753, %v5857
        %v5890 = vadd.f32 %v5754, %v5858
        %v5891 = vadd.f32 %v5755, %v5859
        %v5892 = vadd.f32 %v5756, %v5860
        %v5893 = vadd.f32 %v5757, %v5861
        %v5894 = vadd.f32 %v5758, %v5862
        %v5895 = vadd.f32 %v5759, %v5863
        %v5896 = vadd.f32 %v5760, %v5864
        %v5897 = vadd.f32 %v5761, %v5865
        %v5898 = vadd.f32 %v5762, %v5866
        %v5899 = vadd.f32 %v5763, %v5867
        %v5900 = vadd.f32 %v5764, %v5868
        %v5901 = vadd.f32 %v5765, %v5869
        %v5902 = vadd.f32 %v5766, %v5870
        %v5903 = vadd.f32 %v5767, %v5871
        %v5904 = vadd.f32 %v5768, %v5872
        %v5905 = vadd.f32 %v5769, %v5873
        %v5906 = vadd.f32 %v5770, %v5874
        %v5907 = vadd.f32 %v5771, %v5875
        %v5908 = vadd.f32 %v5772, %v5876
        %v5909 = vadd.f32 %v5773, %v5877
        %v5910 = vadd.f32 %v5774, %v5878
        %v5911 = vadd.f32 %v5775, %v5879
        %v5912 = vadd.f32 %v5776, %v5880
        %v5945 = vcombine.low %v5881, %v5882
        %v5946 = vcombine.low %v5883, %v5884
        %v5948 = vunpack.c.l.s4 1983009808
        %v5949 = vunpack.c.0.s8 %v5948
        %v5950 = vlaneseq
        %v5951 = vshrl.u32 %v5950, 7
        %v5952 = vsub.s32 %v5949, %v5951
        %v5953 = vrot.slane %v5945, %v5952
        %v5955 = vunpack.c.l.s4 1983009808
        %v5956 = vunpack.c.0.s8 %v5955
        %v5957 = vlaneseq
        %v5958 = vshrl.u32 %v5957, 7
        %v5959 = vsub.s32 %v5956, %v5958
        %v5960 = vrot.slane %v5946, %v5959
        %v5961 = vcombine.low %v5953, %v5960
        %v5962 = vcombine.low %v5885, %v5886
        %v5963 = vcombine.low %v5887, %v5888
        %v5965 = vunpack.c.l.s4 1983009808
        %v5966 = vunpack.c.0.s8 %v5965
        %v5967 = vlaneseq
        %v5968 = vshrl.u32 %v5967, 7
        %v5969 = vsub.s32 %v5966, %v5968
        %v5970 = vrot.slane %v5962, %v5969
        %v5972 = vunpack.c.l.s4 1983009808
        %v5973 = vunpack.c.0.s8 %v5972
        %v5974 = vlaneseq
        %v5975 = vshrl.u32 %v5974, 7
        %v5976 = vsub.s32 %v5973, %v5975
        %v5977 = vrot.slane %v5963, %v5976
        %v5978 = vcombine.low %v5970, %v5977
        %v5979 = vcombine.low %v5889, %v5890
        %v5980 = vcombine.low %v5891, %v5892
        %v5982 = vunpack.c.l.s4 1983009808
        %v5983 = vunpack.c.0.s8 %v5982
        %v5984 = vlaneseq
        %v5985 = vshrl.u32 %v5984, 7
        %v5986 = vsub.s32 %v5983, %v5985
        %v5987 = vrot.slane %v5979, %v5986
        %v5989 = vunpack.c.l.s4 1983009808
        %v5990 = vunpack.c.0.s8 %v5989
        %v5991 = vlaneseq
        %v5992 = vshrl.u32 %v5991, 7
        %v5993 = vsub.s32 %v5990, %v5992
        %v5994 = vrot.slane %v5980, %v5993
        %v5995 = vcombine.low %v5987, %v5994
        %v5996 = vcombine.low %v5893, %v5894
        %v5997 = vcombine.low %v5895, %v5896
        %v5999 = vunpack.c.l.s4 1983009808
        %v6000 = vunpack.c.0.s8 %v5999
        %v6001 = vlaneseq
        %v6002 = vshrl.u32 %v6001, 7
        %v6003 = vsub.s32 %v6000, %v6002
        %v6004 = vrot.slane %v5996, %v6003
        %v6006 = vunpack.c.l.s4 1983009808
        %v6007 = vunpack.c.0.s8 %v6006
        %v6008 = vlaneseq
        %v6009 = vshrl.u32 %v6008, 7
        %v6010 = vsub.s32 %v6007, %v6009
        %v6011 = vrot.slane %v5997, %v6010
        %v6012 = vcombine.low %v6004, %v6011
        %v6013 = vcombine.low %v5897, %v5898
        %v6014 = vcombine.low %v5899, %v5900
        %v6016 = vunpack.c.l.s4 1983009808
        %v6017 = vunpack.c.0.s8 %v6016
        %v6018 = vlaneseq
        %v6019 = vshrl.u32 %v6018, 7
        %v6020 = vsub.s32 %v6017, %v6019
        %v6021 = vrot.slane %v6013, %v6020
        %v6023 = vunpack.c.l.s4 1983009808
        %v6024 = vunpack.c.0.s8 %v6023
        %v6025 = vlaneseq
        %v6026 = vshrl.u32 %v6025, 7
        %v6027 = vsub.s32 %v6024, %v6026
        %v6028 = vrot.slane %v6014, %v6027
        %v6029 = vcombine.low %v6021, %v6028
        %v6030 = vcombine.low %v5901, %v5902
        %v6031 = vcombine.low %v5903, %v5904
        %v6033 = vunpack.c.l.s4 1983009808
        %v6034 = vunpack.c.0.s8 %v6033
        %v6035 = vlaneseq
        %v6036 = vshrl.u32 %v6035, 7
        %v6037 = vsub.s32 %v6034, %v6036
        %v6038 = vrot.slane %v6030, %v6037
        %v6040 = vunpack.c.l.s4 1983009808
        %v6041 = vunpack.c.0.s8 %v6040
        %v6042 = vlaneseq
        %v6043 = vshrl.u32 %v6042, 7
        %v6044 = vsub.s32 %v6041, %v6043
        %v6045 = vrot.slane %v6031, %v6044
        %v6046 = vcombine.low %v6038, %v6045
        %v6047 = vcombine.low %v5905, %v5906
        %v6048 = vcombine.low %v5907, %v5908
        %v6050 = vunpack.c.l.s4 1983009808
        %v6051 = vunpack.c.0.s8 %v6050
        %v6052 = vlaneseq
        %v6053 = vshrl.u32 %v6052, 7
        %v6054 = vsub.s32 %v6051, %v6053
        %v6055 = vrot.slane %v6047, %v6054
        %v6057 = vunpack.c.l.s4 1983009808
        %v6058 = vunpack.c.0.s8 %v6057
        %v6059 = vlaneseq
        %v6060 = vshrl.u32 %v6059, 7
        %v6061 = vsub.s32 %v6058, %v6060
        %v6062 = vrot.slane %v6048, %v6061
        %v6063 = vcombine.low %v6055, %v6062
        %v6064 = vcombine.low %v5909, %v5910
        %v6065 = vcombine.low %v5911, %v5912
        %v6067 = vunpack.c.l.s4 1983009808
        %v6068 = vunpack.c.0.s8 %v6067
        %v6069 = vlaneseq
        %v6070 = vshrl.u32 %v6069, 7
        %v6071 = vsub.s32 %v6068, %v6070
        %v6072 = vrot.slane %v6064, %v6071
        %v6074 = vunpack.c.l.s4 1983009808
        %v6075 = vunpack.c.0.s8 %v6074
        %v6076 = vlaneseq
        %v6077 = vshrl.u32 %v6076, 7
        %v6078 = vsub.s32 %v6075, %v6077
        %v6079 = vrot.slane %v6065, %v6078
        %v6080 = vcombine.low %v6072, %v6079
        %s6089 = scalar_lea.vmem %s222, 128 [#allocation6]
        %6090 = vst [vmem:[%s6089] sm:$0xff] %v5961
        %6091 = vst [vmem:[%s6089 + $0x8] sm:$0xff] %v5978
        %6092 = vst [vmem:[%s6089 + $0x10] sm:$0xff] %v5995
        %6093 = vst [vmem:[%s6089 + $0x18] sm:$0xff] %v6012
        %6094 = vst [vmem:[%s6089 + $0x20] sm:$0xff] %v6029
        %6095 = vst [vmem:[%s6089 + $0x28] sm:$0xff] %v6046
        %6096 = vst [vmem:[%s6089 + $0x30] sm:$0xff] %v6063
        %6097 = vst [vmem:[%s6089 + $0x38] sm:$0xff] %v6080
        %s6098 = sand.u32 %s101, 1
        %s6099 = sand.u32 %s101, 1
        %s6100 = smul.addr %s6099, 192
        %s6101 = scalar_lea.vmem [#allocation6], %s6100
        // Predicated region
        $region41: #{metahuman_forward.1} parent=31 // pred_check
          %p6102 = pneg %p111
        $region42: #{metahuman_forward.1} parent=31 // pred_check_branch
          %6104 = sbr.rel (%p6102) target = $region44
        $region43: #{metahuman_forward.1} parent=31 // pred_region
          %s6105 = smul.u32 32, %s20
          %s6106 = smul.addr %s6105, 2
          %s6107 = scalar_lea.vmem %s3, %s6106
          // Predicated region
          $region45: #{metahuman_forward.1} parent=43 // pred_check
            _
          $region46: #{metahuman_forward.1} parent=43 // pred_check_branch
            %6109 = sbr.rel (0) target = $region48
          $region47: #{metahuman_forward.1} parent=43 // pred_region
            // Predicated region
            $region49: #{metahuman_forward.1} parent=47 // pred_check
              _
            $region50: #{metahuman_forward.1} parent=47 // pred_check_branch
              %6111 = sbr.rel (0) target = $region52
            $region51: #{metahuman_forward.1} parent=47 // pred_region
              loop: start=0, step=1, limit=1
              $region53: #{metahuman_forward.1} parent=51 // loop_pre_header
                _
              $region54: #{metahuman_forward.1} parent=51 // loop_header
                %s6113 = sphi 0, %s6117
                %p6114 = scmp.ge.s32.totalorder %s6113, 1
                %s6118 = sphi %s6101, %s6101
                %s6119 = sphi %s6107, %s6107
              $region55: #{metahuman_forward.1} parent=51 // loop_header_branch
                %6116 = sbr.rel (%p6114) target = $region59
              $region56: #{metahuman_forward.1} parent=51 // loop_body
                %v6120 = vld [vmem:[%s6118] sm:$0xff]
                %6121 = vst [vmem:[%s6119] sm:$0xff] %v6120
                %v6122 = vld [vmem:[%s6118 + $0x8] sm:$0xff]
                %6123 = vst [vmem:[%s6119 + $0x8] sm:$0xff] %v6122
                %v6124 = vld [vmem:[%s6118 + $0x10] sm:$0xff]
                %6125 = vst [vmem:[%s6119 + $0x10] sm:$0xff] %v6124
                %v6126 = vld [vmem:[%s6118 + $0x18] sm:$0xff]
                %6127 = vst [vmem:[%s6119 + $0x18] sm:$0xff] %v6126
                %v6128 = vld [vmem:[%s6118 + $0x20] sm:$0xff]
                %6129 = vst [vmem:[%s6119 + $0x20] sm:$0xff] %v6128
                %v6130 = vld [vmem:[%s6118 + $0x28] sm:$0xff]
                %6131 = vst [vmem:[%s6119 + $0x28] sm:$0xff] %v6130
                %v6132 = vld [vmem:[%s6118 + $0x30] sm:$0xff]
                %6133 = vst [vmem:[%s6119 + $0x30] sm:$0xff] %v6132
                %v6134 = vld [vmem:[%s6118 + $0x38] sm:$0xff]
                %6135 = vst [vmem:[%s6119 + $0x38] sm:$0xff] %v6134
                %v6136 = vld [vmem:[%s6118 + $0x40] sm:$0xff]
                %6137 = vst [vmem:[%s6119 + $0x80] sm:$0xff] %v6136
                %v6138 = vld [vmem:[%s6118 + $0x48] sm:$0xff]
                %6139 = vst [vmem:[%s6119 + $0x88] sm:$0xff] %v6138
                %v6140 = vld [vmem:[%s6118 + $0x50] sm:$0xff]
                %6141 = vst [vmem:[%s6119 + $0x90] sm:$0xff] %v6140
                %v6142 = vld [vmem:[%s6118 + $0x58] sm:$0xff]
                %6143 = vst [vmem:[%s6119 + $0x98] sm:$0xff] %v6142
                %v6144 = vld [vmem:[%s6118 + $0x60] sm:$0xff]
                %6145 = vst [vmem:[%s6119 + $0xa0] sm:$0xff] %v6144
                %v6146 = vld [vmem:[%s6118 + $0x68] sm:$0xff]
                %6147 = vst [vmem:[%s6119 + $0xa8] sm:$0xff] %v6146
                %v6148 = vld [vmem:[%s6118 + $0x70] sm:$0xff]
                %6149 = vst [vmem:[%s6119 + $0xb0] sm:$0xff] %v6148
                %v6150 = vld [vmem:[%s6118 + $0x78] sm:$0xff]
                %6151 = vst [vmem:[%s6119 + $0xb8] sm:$0xff] %v6150
                %v6152 = vld [vmem:[%s6118 + $0x80] sm:$0xff]
                %6153 = vst [vmem:[%s6119 + $0x100] sm:$0xff] %v6152
                %v6154 = vld [vmem:[%s6118 + $0x88] sm:$0xff]
                %6155 = vst [vmem:[%s6119 + $0x108] sm:$0xff] %v6154
                %v6156 = vld [vmem:[%s6118 + $0x90] sm:$0xff]
                %6157 = vst [vmem:[%s6119 + $0x110] sm:$0xff] %v6156
                %v6158 = vld [vmem:[%s6118 + $0x98] sm:$0xff]
                %6159 = vst [vmem:[%s6119 + $0x118] sm:$0xff] %v6158
                %v6160 = vld [vmem:[%s6118 + $0xa0] sm:$0xff]
                %6161 = vst [vmem:[%s6119 + $0x120] sm:$0xff] %v6160
                %v6162 = vld [vmem:[%s6118 + $0xa8] sm:$0xff]
                %6163 = vst [vmem:[%s6119 + $0x128] sm:$0xff] %v6162
                %v6164 = vld [vmem:[%s6118 + $0xb0] sm:$0xff]
                %6165 = vst [vmem:[%s6119 + $0x130] sm:$0xff] %v6164
                %v6166 = vld [vmem:[%s6118 + $0xb8] sm:$0xff]
                %6167 = vst [vmem:[%s6119 + $0x138] sm:$0xff] %v6166
              $region57: #{metahuman_forward.1} parent=51 // loop_footer
                %s6117 = sadd.s32 1, %s6113
              $region58: #{metahuman_forward.1} parent=51 // loop_footer_branch
                %6112 = sbr.rel target = $region54
              $region59: #{metahuman_forward.1} parent=51 // loop_exit
                _
            $region52: #{metahuman_forward.1} parent=47 // pred_fallthru
              _
            // Predicated region
            $region60: #{metahuman_forward.1} parent=47 // pred_check
              _
            $region61: #{metahuman_forward.1} parent=47 // pred_check_branch
              %6169 = sbr.rel target = $region63
            $region62: #{metahuman_forward.1} parent=47 // pred_region
              _
            $region63: #{metahuman_forward.1} parent=47 // pred_fallthru
              _
          $region48: #{metahuman_forward.1} parent=43 // pred_fallthru
            _
          %6170 = vnop
        $region44: #{metahuman_forward.1} parent=31 // pred_fallthru
          _
      $region32: #{metahuman_forward.1} parent=5 // pred_fallthru
        _
      %p6171 = scmp.le.s32.totalorder 2, %s15
      // Predicated region
      $region64: #{metahuman_forward.1} parent=5 // pred_check
        %p6172 = pneg %p6171
      $region65: #{metahuman_forward.1} parent=5 // pred_check_branch
        %6174 = sbr.rel (%p6172) target = $region67
      $region66: #{metahuman_forward.1} parent=5 // pred_region
        %s6175 = ssub.s32 %s15, 2
        // Predicated region
        $region68: #{metahuman_forward.1} parent=66 // pred_check
          %p6176 = pneg %p117
        $region69: #{metahuman_forward.1} parent=66 // pred_check_branch
          %6178 = sbr.rel (%p6176) target = $region71
        $region70: #{metahuman_forward.1} parent=66 // pred_region
          %s6179 = sand.u32 %s102, 1
          %s6180 = sand.u32 %s102, 1
          %s6181 = smul.addr %s6180, 192
          %s6182 = scalar_lea.vmem [#allocation6], %s6181
        $region71: #{metahuman_forward.1} parent=66 // pred_fallthru
          _
      $region67: #{metahuman_forward.1} parent=5 // pred_fallthru
        _
    $region6: #{metahuman_forward.1} parent=1 // loop_footer
      %s19 = sadd.s32 1, %s15
    $region7: #{metahuman_forward.1} parent=1 // loop_footer_branch
      %14 = sbr.rel target = $region3
    $region8: #{metahuman_forward.1} parent=1 // loop_exit
      _
    %6183 = vsyncpa [#allocation3], 1
    %s6184 = scalar_lea.sflag [#allocation3], 1
    %6185 = vsyncpa %s6184, 1
    %6186 = vsyncpa [#allocation5], 1
    %s6187 = scalar_lea.sflag [#allocation5], 1
    %6188 = vsyncpa %s6187, 1

</llo_original>
